<compile_context>
chip_gen: v5e
topology: v5e:2x2
jax: 0.10.0
libtpu: 0.0.40
codegen_flags: <defaults>
</compile_context>

<pallas_src>
import functools
import math

import jax
import jax.numpy as jnp
from jax.experimental import pallas as pl
from jax.experimental.pallas import tpu as pltpu  # noqa: F401  (not needed: no grid / manual DMA)

# ----------------------- small, module-consistent shapes -----------------------
B = 2            # batch
S = 8            # sequence length
D_MODEL = 32     # d_model (in_emb)
N_HEAD = 4       # nhead
D_FF = 64        # dim_feedforward
N_LAYERS = 2     # num_layers
FC_HIDDEN = 32   # fc_hidden_size (== out_emb for 'transformer' encoder_type)
FC_OUT = 1       # fc_output_size
HEAD_DIM = D_MODEL // N_HEAD
LN_EPS = 1e-5

N_SEQ = 2 * B            # both siamese slices' sequences, flattened together
N_ROWS = N_SEQ * S       # rows of the flattened activation


# ------------------------------- kernel helpers --------------------------------
def _layer_norm(x, gamma, beta):
    mu = jnp.mean(x, axis=-1, keepdims=True)
    xc = x - mu
    var = jnp.mean(xc * xc, axis=-1, keepdims=True)
    return xc * jax.lax.rsqrt(var + LN_EPS) * gamma + beta


def _softmax_last(x):
    m = jnp.max(x, axis=-1, keepdims=True)
    e = jnp.exp(x - m)
    return e / jnp.sum(e, axis=-1, keepdims=True)


# ----------------- single fused Pallas kernel: whole forward pass ---------------
def siamese_fused_kernel(
        x_ref,                          # (N_ROWS, D)  rows = [slice1 batch rows ; slice2 batch rows]
        pe_ref,                         # (N_ROWS, D)  tiled positional encoding (zeros if disabled)
        wqkv_ref, bqkv_ref,             # (NL, D, 3D), (NL, 1, 3D)  packed Q|K|V
        wo_ref, bo_ref,                 # (NL, D, D),  (NL, 1, D)
        ln1_ref,                        # (NL, 2, D)   row0 = gamma, row1 = beta
        w1_ref, b1_ref,                 # (NL, D, DFF), (NL, 1, DFF)
        w2_ref, b2_ref,                 # (NL, DFF, D), (NL, 1, D)
        ln2_ref,                        # (NL, 2, D)
        we_ref, be_ref,                 # (D, FCH), (1, FCH)       embed_layer Linear
        wf1_ref, bf1_ref,               # (2*FCH, FCH), (1, FCH)   fc[0]
        wf2_ref, bf2_ref,               # (FCH, FCH), (1, FCH)     fc[3]
        wf3_ref, bf3_ref,               # (FCH, FCO), (1, FCO)     fc[6]
        o_ref):                         # (B, FCO)
    scale = 1.0 / math.sqrt(HEAD_DIM)

    # positional encoding add (fused in-kernel)
    x = x_ref[...] + pe_ref[...]                                        # (32, 32) f32

    # ---------------- transformer encoder: static unroll over layers ----------------
    for layer in range(N_LAYERS):
        # fused Q|K|V projection: one lane-dense (32,32)x(32,96) matmul
        qkv = jnp.dot(x, wqkv_ref[layer],
                      preferred_element_type=jnp.float32) + bqkv_ref[layer]   # (32, 96)
        wo = wo_ref[layer]                                                    # (32, 32)

        # per-sequence attention (static unroll over the 2*B sequences);
        # output projection folded per head: sum_h (p_h @ v_h) @ wo[h-rows]
        attn_rows = []
        for s in range(N_SEQ):
            r0 = s * S
            qkv_s = qkv[r0:r0 + S, :]                                         # (8, 96)
            acc = jnp.zeros((S, D_MODEL), jnp.float32)
            for h in range(N_HEAD):
                c0 = h * HEAD_DIM
                qh = qkv_s[:, c0:c0 + HEAD_DIM]
                kh = qkv_s[:, D_MODEL + c0:D_MODEL + c0 + HEAD_DIM]
                vh = qkv_s[:, 2 * D_MODEL + c0:2 * D_MODEL + c0 + HEAD_DIM]
                scores = jnp.dot(qh, kh.T, preferred_element_type=jnp.float32) * scale
                p = _softmax_last(scores)                                     # (8, 8)
                ov = jnp.dot(p, vh, preferred_element_type=jnp.float32)       # (8, 8)
                acc = acc + jnp.dot(ov, wo[c0:c0 + HEAD_DIM, :],
                                    preferred_element_type=jnp.float32)       # (8, 32)
            attn_rows.append(acc)
        attn = jnp.concatenate(attn_rows, axis=0) + bo_ref[layer]             # (32, 32)

        ln1 = ln1_ref[layer]
        x = _layer_norm(x + attn, ln1[0:1, :], ln1[1:2, :])

        h1 = jnp.maximum(jnp.dot(x, w1_ref[layer],
                                 preferred_element_type=jnp.float32) + b1_ref[layer], 0.0)
        ffn = jnp.dot(h1, w2_ref[layer],
                      preferred_element_type=jnp.float32) + b2_ref[layer]

        ln2 = ln2_ref[layer]
        x = _layer_norm(x + ffn, ln2[0:1, :], ln2[1:2, :])

    # ---------------- siamese head: max-pool + embed + fc + sigmoid ----------------
    # torch.max(x, dim=1) per (slice, batch) sequence
    pooled = jnp.concatenate(
        [jnp.max(x[s * S:(s + 1) * S, :], axis=0, keepdims=True) for s in range(N_SEQ)],
        axis=0)                                                               # (2B, D)
    emb = jnp.dot(pooled, we_ref[...],
                  preferred_element_type=jnp.float32) + be_ref[...]           # (2B, FCH)
    emb1 = emb[0:B, :]                                                        # slice-1 embeddings
    emb2 = emb[B:2 * B, :]                                                    # slice-2 embeddings

    # z = concat([emb1, emb2], axis=1);  z @ wf1 == emb1 @ wf1[:H] + emb2 @ wf1[H:]
    h = jnp.maximum(
        jnp.dot(emb1, wf1_ref[0:FC_HIDDEN, :], preferred_element_type=jnp.float32)
        + jnp.dot(emb2, wf1_ref[FC_HIDDEN:2 * FC_HIDDEN, :], preferred_element_type=jnp.float32)
        + bf1_ref[...], 0.0)
    h = jnp.maximum(jnp.dot(h, wf2_ref[...],
                            preferred_element_type=jnp.float32) + bf2_ref[...], 0.0)
    logits = jnp.dot(h, wf3_ref[...],
                     preferred_element_type=jnp.float32) + bf3_ref[...]       # (B, 1)
    o_ref[...] = jax.nn.sigmoid(logits)                                       # output_transform='sigmoid'


# ------------------------------ params / glue -----------------------------------
def sinusoidal_pe(seq_len, d_model):
    pos = jnp.arange(seq_len, dtype=jnp.float32)[:, None]
    i = jnp.arange(0, d_model, 2, dtype=jnp.float32)
    div = jnp.exp(-math.log(10000.0) * i / d_model)
    pe = jnp.zeros((seq_len, d_model), jnp.float32)
    pe = pe.at[:, 0::2].set(jnp.sin(pos * div))
    pe = pe.at[:, 1::2].set(jnp.cos(pos * div))
    return pe


def _init_linear(key, fan_in, fan_out):
    kw, kb = jax.random.split(key)
    bound = 1.0 / math.sqrt(fan_in)
    w = jax.random.uniform(kw, (fan_in, fan_out), jnp.float32, -bound, bound)
    b = jax.random.uniform(kb, (1, fan_out), jnp.float32, -bound, bound)
    return w, b


def init_params(key):
    wqkv_l, bqkv_l, wo_l, bo_l, ln1_l = [], [], [], [], []
    w1_l, b1_l, w2_l, b2_l, ln2_l = [], [], [], [], []
    for _ in range(N_LAYERS):
        key, kq, kk, kv, ko, k1, k2 = jax.random.split(key, 7)
        wq, bq = _init_linear(kq, D_MODEL, D_MODEL)
        wk, bk = _init_linear(kk, D_MODEL, D_MODEL)
        wv, bv = _init_linear(kv, D_MODEL, D_MODEL)
        wo, bo = _init_linear(ko, D_MODEL, D_MODEL)
        w1, b1 = _init_linear(k1, D_MODEL, D_FF)
        w2, b2 = _init_linear(k2, D_FF, D_MODEL)
        wqkv_l.append(jnp.concatenate([wq, wk, wv], axis=1))      # (D, 3D) packed
        bqkv_l.append(jnp.concatenate([bq, bk, bv], axis=1))      # (1, 3D)
        wo_l.append(wo)
        bo_l.append(bo)
        ln1_l.append(jnp.concatenate([jnp.ones((1, D_MODEL), jnp.float32),
                                      jnp.zeros((1, D_MODEL), jnp.float32)], axis=0))
        w1_l.append(w1)
        b1_l.append(b1)
        w2_l.append(w2)
        b2_l.append(b2)
        ln2_l.append(jnp.concatenate([jnp.ones((1, D_MODEL), jnp.float32),
                                      jnp.zeros((1, D_MODEL), jnp.float32)], axis=0))

    enc = dict(wqkv=jnp.stack(wqkv_l), bqkv=jnp.stack(bqkv_l),
               wo=jnp.stack(wo_l), bo=jnp.stack(bo_l), ln1=jnp.stack(ln1_l),
               w1=jnp.stack(w1_l), b1=jnp.stack(b1_l),
               w2=jnp.stack(w2_l), b2=jnp.stack(b2_l), ln2=jnp.stack(ln2_l))

    key, ke, kf1, kf2, kf3 = jax.random.split(key, 5)
    we, be = _init_linear(ke, D_MODEL, FC_HIDDEN)                 # embed_layer Linear
    wf1, bf1 = _init_linear(kf1, 2 * FC_HIDDEN, FC_HIDDEN)        # fc[0]
    wf2, bf2 = _init_linear(kf2, FC_HIDDEN, FC_HIDDEN)            # fc[3]
    wf3, bf3 = _init_linear(kf3, FC_HIDDEN, FC_OUT)               # fc[6]
    head = dict(we=we, be=be, wf1=wf1, bf1=bf1, wf2=wf2, bf2=bf2, wf3=wf3, bf3=bf3)
    return dict(enc=enc, head=head)


_ENC_KEYS = ("wqkv", "bqkv", "wo", "bo", "ln1", "w1", "b1", "w2", "b2", "ln2")
_HEAD_KEYS = ("we", "be", "wf1", "bf1", "wf2", "bf2", "wf3", "bf3")


@functools.partial(jax.jit, static_argnames=("add_positional_encoding",))
def siamese_forward(slice_1, slice_2, params, add_positional_encoding=True):
    # flatten both siamese slices + batch into rows: (2*B*S, D)
    x_all = jnp.concatenate([slice_1, slice_2], axis=0).reshape(N_ROWS, D_MODEL)
    if add_positional_encoding:
        pe = jnp.tile(sinusoidal_pe(S, D_MODEL), (N_SEQ, 1))
    else:
        pe = jnp.zeros((N_ROWS, D_MODEL), jnp.float32)

    args = ([x_all, pe]
            + [params["enc"][k] for k in _ENC_KEYS]
            + [params["head"][k] for k in _HEAD_KEYS])

    # single fused launch; no grid -> whole arrays resident in VMEM (footprint << VMEM limit)
    return pl.pallas_call(
        siamese_fused_kernel,
        out_shape=jax.ShapeDtypeStruct((B, FC_OUT), jnp.float32),
    )(*args)


# ----------------------------------- main ---------------------------------------
if __name__ == "__main__":
    key = jax.random.PRNGKey(0)
    k_p, k_x1, k_x2 = jax.random.split(key, 3)
    params = init_params(k_p)
    slice_1 = jax.random.normal(k_x1, (B, S, D_MODEL), jnp.float32)
    slice_2 = jax.random.normal(k_x2, (B, S, D_MODEL), jnp.float32)

    out = siamese_forward(slice_1, slice_2, params)
    out = jax.block_until_ready(out)
    assert out.shape == (B, FC_OUT)
    assert bool(jnp.all((out >= 0.0) & (out <= 1.0)))
    # TODO(synk): reguformer / performer / dropdim encoder branches are external modules
    # not included in the reference file; only the 'transformer' branch is implemented.
    print("KERNEL_OK")
</pallas_src>

<mosaic_0001>
module attributes {stable_mosaic.version = 11 : i64} {
  func.func @siamese_fused_kernel(%arg0: memref<32x32xf32, #tpu.memory_space<vmem>>, %arg1: memref<32x32xf32, #tpu.memory_space<vmem>>, %arg2: memref<2x32x96xf32, #tpu.memory_space<vmem>>, %arg3: memref<2x1x96xf32, #tpu.memory_space<vmem>>, %arg4: memref<2x32x32xf32, #tpu.memory_space<vmem>>, %arg5: memref<2x1x32xf32, #tpu.memory_space<vmem>>, %arg6: memref<2x2x32xf32, #tpu.memory_space<vmem>>, %arg7: memref<2x32x64xf32, #tpu.memory_space<vmem>>, %arg8: memref<2x1x64xf32, #tpu.memory_space<vmem>>, %arg9: memref<2x64x32xf32, #tpu.memory_space<vmem>>, %arg10: memref<2x1x32xf32, #tpu.memory_space<vmem>>, %arg11: memref<2x2x32xf32, #tpu.memory_space<vmem>>, %arg12: memref<32x32xf32, #tpu.memory_space<vmem>>, %arg13: memref<1x32xf32, #tpu.memory_space<vmem>>, %arg14: memref<64x32xf32, #tpu.memory_space<vmem>>, %arg15: memref<1x32xf32, #tpu.memory_space<vmem>>, %arg16: memref<32x32xf32, #tpu.memory_space<vmem>>, %arg17: memref<1x32xf32, #tpu.memory_space<vmem>>, %arg18: memref<32x1xf32, #tpu.memory_space<vmem>>, %arg19: memref<1x1xf32, #tpu.memory_space<vmem>>, %arg20: memref<2x1xf32, #tpu.memory_space<vmem>>) attributes {dimension_semantics = [], scalar_prefetch = 0 : i64, scratch_operands = 0 : i64, tpu.core_type = #tpu.core_type<tc>} {
    %c0 = arith.constant 0 : index
    %c0_0 = arith.constant 0 : index
    %0 = vector.load %arg0[%c0, %c0_0] : memref<32x32xf32, #tpu.memory_space<vmem>>, vector<32x32xf32>
    %c0_1 = arith.constant 0 : index
    %c0_2 = arith.constant 0 : index
    %1 = vector.load %arg1[%c0_1, %c0_2] : memref<32x32xf32, #tpu.memory_space<vmem>>, vector<32x32xf32>
    %2 = arith.addf %0, %1 : vector<32x32xf32>
    %c0_3 = arith.constant 0 : index
    %c0_4 = arith.constant 0 : index
    %c0_5 = arith.constant 0 : index
    %3 = vector.load %arg2[%c0_3, %c0_4, %c0_5] : memref<2x32x96xf32, #tpu.memory_space<vmem>>, vector<1x32x96xf32>
    %4 = vector.shape_cast %3 : vector<1x32x96xf32> to vector<32x96xf32>
    %cst = arith.constant dense<0.000000e+00> : vector<32x96xf32>
    %5 = tpu.matmul %2, %4, %cst {dimension_numbers = #tpu.dot_dimension_numbers<[1], [0], [0], [1], [0, 0, 1, 1], [], []>} : vector<32x32xf32>, vector<32x96xf32>, vector<32x96xf32> -> vector<32x96xf32>
    %c0_6 = arith.constant 0 : index
    %c0_7 = arith.constant 0 : index
    %c0_8 = arith.constant 0 : index
    %6 = vector.load %arg3[%c0_6, %c0_7, %c0_8] : memref<2x1x96xf32, #tpu.memory_space<vmem>>, vector<1x1x96xf32>
    %7 = vector.shape_cast %6 : vector<1x1x96xf32> to vector<1x96xf32>
    %8 = vector.broadcast %7 : vector<1x96xf32> to vector<32x96xf32>
    %9 = arith.addf %5, %8 : vector<32x96xf32>
    %c0_9 = arith.constant 0 : index
    %c0_10 = arith.constant 0 : index
    %c0_11 = arith.constant 0 : index
    %10 = vector.load %arg4[%c0_9, %c0_10, %c0_11] : memref<2x32x32xf32, #tpu.memory_space<vmem>>, vector<1x32x32xf32>
    %11 = vector.shape_cast %10 : vector<1x32x32xf32> to vector<32x32xf32>
    %12 = vector.extract_strided_slice %9 {offsets = [0, 0], sizes = [8, 96], strides = [1, 1]} : vector<32x96xf32> to vector<8x96xf32>
    %cst_12 = arith.constant 0.000000e+00 : f32
    %13 = vector.broadcast %cst_12 : f32 to vector<8x32xf32>
    %14 = vector.extract_strided_slice %12 {offsets = [0, 0], sizes = [8, 8], strides = [1, 1]} : vector<8x96xf32> to vector<8x8xf32>
    %15 = vector.extract_strided_slice %12 {offsets = [0, 32], sizes = [8, 8], strides = [1, 1]} : vector<8x96xf32> to vector<8x8xf32>
    %16 = vector.extract_strided_slice %12 {offsets = [0, 64], sizes = [8, 8], strides = [1, 1]} : vector<8x96xf32> to vector<8x8xf32>
    %17 = tpu.transpose %15, [1, 0] : vector<8x8xf32> -> vector<8x8xf32>
    %cst_13 = arith.constant dense<0.000000e+00> : vector<8x8xf32>
    %18 = tpu.matmul %14, %17, %cst_13 {dimension_numbers = #tpu.dot_dimension_numbers<[1], [0], [0], [1], [0, 0, 1, 1], [], []>} : vector<8x8xf32>, vector<8x8xf32>, vector<8x8xf32> -> vector<8x8xf32>
    %cst_14 = arith.constant 0.353553385 : f32
    %19 = vector.broadcast %cst_14 : f32 to vector<8x8xf32>
    %20 = arith.mulf %18, %19 : vector<8x8xf32>
    %cst_15 = arith.constant dense<0xFF800000> : vector<8xf32>
    %21 = vector.multi_reduction <maximumf>, %20, %cst_15 [1] : vector<8x8xf32> to vector<8xf32>
    %22 = vector.shape_cast %21 : vector<8xf32> to vector<8x1xf32>
    %23 = vector.broadcast %22 : vector<8x1xf32> to vector<8x8xf32>
    %24 = arith.subf %20, %23 : vector<8x8xf32>
    %25 = math.exp %24 : vector<8x8xf32>
    %cst_16 = arith.constant dense<0.000000e+00> : vector<8xf32>
    %26 = vector.multi_reduction <add>, %25, %cst_16 [1] : vector<8x8xf32> to vector<8xf32>
    %27 = vector.shape_cast %26 : vector<8xf32> to vector<8x1xf32>
    %28 = vector.broadcast %27 : vector<8x1xf32> to vector<8x8xf32>
    %29 = arith.divf %25, %28 : vector<8x8xf32>
    %cst_17 = arith.constant dense<0.000000e+00> : vector<8x8xf32>
    %30 = tpu.matmul %29, %16, %cst_17 {dimension_numbers = #tpu.dot_dimension_numbers<[1], [0], [0], [1], [0, 0, 1, 1], [], []>} : vector<8x8xf32>, vector<8x8xf32>, vector<8x8xf32> -> vector<8x8xf32>
    %31 = vector.extract_strided_slice %11 {offsets = [0, 0], sizes = [8, 32], strides = [1, 1]} : vector<32x32xf32> to vector<8x32xf32>
    %cst_18 = arith.constant dense<0.000000e+00> : vector<8x32xf32>
    %32 = tpu.matmul %30, %31, %cst_18 {dimension_numbers = #tpu.dot_dimension_numbers<[1], [0], [0], [1], [0, 0, 1, 1], [], []>} : vector<8x8xf32>, vector<8x32xf32>, vector<8x32xf32> -> vector<8x32xf32>
    %33 = arith.addf %13, %32 : vector<8x32xf32>
    %34 = vector.extract_strided_slice %12 {offsets = [0, 8], sizes = [8, 8], strides = [1, 1]} : vector<8x96xf32> to vector<8x8xf32>
    %35 = vector.extract_strided_slice %12 {offsets = [0, 40], sizes = [8, 8], strides = [1, 1]} : vector<8x96xf32> to vector<8x8xf32>
    %36 = vector.extract_strided_slice %12 {offsets = [0, 72], sizes = [8, 8], strides = [1, 1]} : vector<8x96xf32> to vector<8x8xf32>
    %37 = tpu.transpose %35, [1, 0] : vector<8x8xf32> -> vector<8x8xf32>
    %cst_19 = arith.constant dense<0.000000e+00> : vector<8x8xf32>
    %38 = tpu.matmul %34, %37, %cst_19 {dimension_numbers = #tpu.dot_dimension_numbers<[1], [0], [0], [1], [0, 0, 1, 1], [], []>} : vector<8x8xf32>, vector<8x8xf32>, vector<8x8xf32> -> vector<8x8xf32>
    %cst_20 = arith.constant 0.353553385 : f32
    %39 = vector.broadcast %cst_20 : f32 to vector<8x8xf32>
    %40 = arith.mulf %38, %39 : vector<8x8xf32>
    %cst_21 = arith.constant dense<0xFF800000> : vector<8xf32>
    %41 = vector.multi_reduction <maximumf>, %40, %cst_21 [1] : vector<8x8xf32> to vector<8xf32>
    %42 = vector.shape_cast %41 : vector<8xf32> to vector<8x1xf32>
    %43 = vector.broadcast %42 : vector<8x1xf32> to vector<8x8xf32>
    %44 = arith.subf %40, %43 : vector<8x8xf32>
    %45 = math.exp %44 : vector<8x8xf32>
    %cst_22 = arith.constant dense<0.000000e+00> : vector<8xf32>
    %46 = vector.multi_reduction <add>, %45, %cst_22 [1] : vector<8x8xf32> to vector<8xf32>
    %47 = vector.shape_cast %46 : vector<8xf32> to vector<8x1xf32>
    %48 = vector.broadcast %47 : vector<8x1xf32> to vector<8x8xf32>
    %49 = arith.divf %45, %48 : vector<8x8xf32>
    %cst_23 = arith.constant dense<0.000000e+00> : vector<8x8xf32>
    %50 = tpu.matmul %49, %36, %cst_23 {dimension_numbers = #tpu.dot_dimension_numbers<[1], [0], [0], [1], [0, 0, 1, 1], [], []>} : vector<8x8xf32>, vector<8x8xf32>, vector<8x8xf32> -> vector<8x8xf32>
    %51 = vector.extract_strided_slice %11 {offsets = [8, 0], sizes = [8, 32], strides = [1, 1]} : vector<32x32xf32> to vector<8x32xf32>
    %cst_24 = arith.constant dense<0.000000e+00> : vector<8x32xf32>
    %52 = tpu.matmul %50, %51, %cst_24 {dimension_numbers = #tpu.dot_dimension_numbers<[1], [0], [0], [1], [0, 0, 1, 1], [], []>} : vector<8x8xf32>, vector<8x32xf32>, vector<8x32xf32> -> vector<8x32xf32>
    %53 = arith.addf %33, %52 : vector<8x32xf32>
    %54 = vector.extract_strided_slice %12 {offsets = [0, 16], sizes = [8, 8], strides = [1, 1]} : vector<8x96xf32> to vector<8x8xf32>
    %55 = vector.extract_strided_slice %12 {offsets = [0, 48], sizes = [8, 8], strides = [1, 1]} : vector<8x96xf32> to vector<8x8xf32>
    %56 = vector.extract_strided_slice %12 {offsets = [0, 80], sizes = [8, 8], strides = [1, 1]} : vector<8x96xf32> to vector<8x8xf32>
    %57 = tpu.transpose %55, [1, 0] : vector<8x8xf32> -> vector<8x8xf32>
    %cst_25 = arith.constant dense<0.000000e+00> : vector<8x8xf32>
    %58 = tpu.matmul %54, %57, %cst_25 {dimension_numbers = #tpu.dot_dimension_numbers<[1], [0], [0], [1], [0, 0, 1, 1], [], []>} : vector<8x8xf32>, vector<8x8xf32>, vector<8x8xf32> -> vector<8x8xf32>
    %cst_26 = arith.constant 0.353553385 : f32
    %59 = vector.broadcast %cst_26 : f32 to vector<8x8xf32>
    %60 = arith.mulf %58, %59 : vector<8x8xf32>
    %cst_27 = arith.constant dense<0xFF800000> : vector<8xf32>
    %61 = vector.multi_reduction <maximumf>, %60, %cst_27 [1] : vector<8x8xf32> to vector<8xf32>
    %62 = vector.shape_cast %61 : vector<8xf32> to vector<8x1xf32>
    %63 = vector.broadcast %62 : vector<8x1xf32> to vector<8x8xf32>
    %64 = arith.subf %60, %63 : vector<8x8xf32>
    %65 = math.exp %64 : vector<8x8xf32>
    %cst_28 = arith.constant dense<0.000000e+00> : vector<8xf32>
    %66 = vector.multi_reduction <add>, %65, %cst_28 [1] : vector<8x8xf32> to vector<8xf32>
    %67 = vector.shape_cast %66 : vector<8xf32> to vector<8x1xf32>
    %68 = vector.broadcast %67 : vector<8x1xf32> to vector<8x8xf32>
    %69 = arith.divf %65, %68 : vector<8x8xf32>
    %cst_29 = arith.constant dense<0.000000e+00> : vector<8x8xf32>
    %70 = tpu.matmul %69, %56, %cst_29 {dimension_numbers = #tpu.dot_dimension_numbers<[1], [0], [0], [1], [0, 0, 1, 1], [], []>} : vector<8x8xf32>, vector<8x8xf32>, vector<8x8xf32> -> vector<8x8xf32>
    %71 = vector.extract_strided_slice %11 {offsets = [16, 0], sizes = [8, 32], strides = [1, 1]} : vector<32x32xf32> to vector<8x32xf32>
    %cst_30 = arith.constant dense<0.000000e+00> : vector<8x32xf32>
    %72 = tpu.matmul %70, %71, %cst_30 {dimension_numbers = #tpu.dot_dimension_numbers<[1], [0], [0], [1], [0, 0, 1, 1], [], []>} : vector<8x8xf32>, vector<8x32xf32>, vector<8x32xf32> -> vector<8x32xf32>
    %73 = arith.addf %53, %72 : vector<8x32xf32>
    %74 = vector.extract_strided_slice %12 {offsets = [0, 24], sizes = [8, 8], strides = [1, 1]} : vector<8x96xf32> to vector<8x8xf32>
    %75 = vector.extract_strided_slice %12 {offsets = [0, 56], sizes = [8, 8], strides = [1, 1]} : vector<8x96xf32> to vector<8x8xf32>
    %76 = vector.extract_strided_slice %12 {offsets = [0, 88], sizes = [8, 8], strides = [1, 1]} : vector<8x96xf32> to vector<8x8xf32>
    %77 = tpu.transpose %75, [1, 0] : vector<8x8xf32> -> vector<8x8xf32>
    %cst_31 = arith.constant dense<0.000000e+00> : vector<8x8xf32>
    %78 = tpu.matmul %74, %77, %cst_31 {dimension_numbers = #tpu.dot_dimension_numbers<[1], [0], [0], [1], [0, 0, 1, 1], [], []>} : vector<8x8xf32>, vector<8x8xf32>, vector<8x8xf32> -> vector<8x8xf32>
    %cst_32 = arith.constant 0.353553385 : f32
    %79 = vector.broadcast %cst_32 : f32 to vector<8x8xf32>
    %80 = arith.mulf %78, %79 : vector<8x8xf32>
    %cst_33 = arith.constant dense<0xFF800000> : vector<8xf32>
    %81 = vector.multi_reduction <maximumf>, %80, %cst_33 [1] : vector<8x8xf32> to vector<8xf32>
    %82 = vector.shape_cast %81 : vector<8xf32> to vector<8x1xf32>
    %83 = vector.broadcast %82 : vector<8x1xf32> to vector<8x8xf32>
    %84 = arith.subf %80, %83 : vector<8x8xf32>
    %85 = math.exp %84 : vector<8x8xf32>
    %cst_34 = arith.constant dense<0.000000e+00> : vector<8xf32>
    %86 = vector.multi_reduction <add>, %85, %cst_34 [1] : vector<8x8xf32> to vector<8xf32>
    %87 = vector.shape_cast %86 : vector<8xf32> to vector<8x1xf32>
    %88 = vector.broadcast %87 : vector<8x1xf32> to vector<8x8xf32>
    %89 = arith.divf %85, %88 : vector<8x8xf32>
    %cst_35 = arith.constant dense<0.000000e+00> : vector<8x8xf32>
    %90 = tpu.matmul %89, %76, %cst_35 {dimension_numbers = #tpu.dot_dimension_numbers<[1], [0], [0], [1], [0, 0, 1, 1], [], []>} : vector<8x8xf32>, vector<8x8xf32>, vector<8x8xf32> -> vector<8x8xf32>
    %91 = vector.extract_strided_slice %11 {offsets = [24, 0], sizes = [8, 32], strides = [1, 1]} : vector<32x32xf32> to vector<8x32xf32>
    %cst_36 = arith.constant dense<0.000000e+00> : vector<8x32xf32>
    %92 = tpu.matmul %90, %91, %cst_36 {dimension_numbers = #tpu.dot_dimension_numbers<[1], [0], [0], [1], [0, 0, 1, 1], [], []>} : vector<8x8xf32>, vector<8x32xf32>, vector<8x32xf32> -> vector<8x32xf32>
    %93 = arith.addf %73, %92 : vector<8x32xf32>
    %94 = vector.extract_strided_slice %9 {offsets = [8, 0], sizes = [8, 96], strides = [1, 1]} : vector<32x96xf32> to vector<8x96xf32>
    %cst_37 = arith.constant 0.000000e+00 : f32
    %95 = vector.broadcast %cst_37 : f32 to vector<8x32xf32>
    %96 = vector.extract_strided_slice %94 {offsets = [0, 0], sizes = [8, 8], strides = [1, 1]} : vector<8x96xf32> to vector<8x8xf32>
    %97 = vector.extract_strided_slice %94 {offsets = [0, 32], sizes = [8, 8], strides = [1, 1]} : vector<8x96xf32> to vector<8x8xf32>
    %98 = vector.extract_strided_slice %94 {offsets = [0, 64], sizes = [8, 8], strides = [1, 1]} : vector<8x96xf32> to vector<8x8xf32>
    %99 = tpu.transpose %97, [1, 0] : vector<8x8xf32> -> vector<8x8xf32>
    %cst_38 = arith.constant dense<0.000000e+00> : vector<8x8xf32>
    %100 = tpu.matmul %96, %99, %cst_38 {dimension_numbers = #tpu.dot_dimension_numbers<[1], [0], [0], [1], [0, 0, 1, 1], [], []>} : vector<8x8xf32>, vector<8x8xf32>, vector<8x8xf32> -> vector<8x8xf32>
    %cst_39 = arith.constant 0.353553385 : f32
    %101 = vector.broadcast %cst_39 : f32 to vector<8x8xf32>
    %102 = arith.mulf %100, %101 : vector<8x8xf32>
    %cst_40 = arith.constant dense<0xFF800000> : vector<8xf32>
    %103 = vector.multi_reduction <maximumf>, %102, %cst_40 [1] : vector<8x8xf32> to vector<8xf32>
    %104 = vector.shape_cast %103 : vector<8xf32> to vector<8x1xf32>
    %105 = vector.broadcast %104 : vector<8x1xf32> to vector<8x8xf32>
    %106 = arith.subf %102, %105 : vector<8x8xf32>
    %107 = math.exp %106 : vector<8x8xf32>
    %cst_41 = arith.constant dense<0.000000e+00> : vector<8xf32>
    %108 = vector.multi_reduction <add>, %107, %cst_41 [1] : vector<8x8xf32> to vector<8xf32>
    %109 = vector.shape_cast %108 : vector<8xf32> to vector<8x1xf32>
    %110 = vector.broadcast %109 : vector<8x1xf32> to vector<8x8xf32>
    %111 = arith.divf %107, %110 : vector<8x8xf32>
    %cst_42 = arith.constant dense<0.000000e+00> : vector<8x8xf32>
    %112 = tpu.matmul %111, %98, %cst_42 {dimension_numbers = #tpu.dot_dimension_numbers<[1], [0], [0], [1], [0, 0, 1, 1], [], []>} : vector<8x8xf32>, vector<8x8xf32>, vector<8x8xf32> -> vector<8x8xf32>
    %113 = vector.extract_strided_slice %11 {offsets = [0, 0], sizes = [8, 32], strides = [1, 1]} : vector<32x32xf32> to vector<8x32xf32>
    %cst_43 = arith.constant dense<0.000000e+00> : vector<8x32xf32>
    %114 = tpu.matmul %112, %113, %cst_43 {dimension_numbers = #tpu.dot_dimension_numbers<[1], [0], [0], [1], [0, 0, 1, 1], [], []>} : vector<8x8xf32>, vector<8x32xf32>, vector<8x32xf32> -> vector<8x32xf32>
    %115 = arith.addf %95, %114 : vector<8x32xf32>
    %116 = vector.extract_strided_slice %94 {offsets = [0, 8], sizes = [8, 8], strides = [1, 1]} : vector<8x96xf32> to vector<8x8xf32>
    %117 = vector.extract_strided_slice %94 {offsets = [0, 40], sizes = [8, 8], strides = [1, 1]} : vector<8x96xf32> to vector<8x8xf32>
    %118 = vector.extract_strided_slice %94 {offsets = [0, 72], sizes = [8, 8], strides = [1, 1]} : vector<8x96xf32> to vector<8x8xf32>
    %119 = tpu.transpose %117, [1, 0] : vector<8x8xf32> -> vector<8x8xf32>
    %cst_44 = arith.constant dense<0.000000e+00> : vector<8x8xf32>
    %120 = tpu.matmul %116, %119, %cst_44 {dimension_numbers = #tpu.dot_dimension_numbers<[1], [0], [0], [1], [0, 0, 1, 1], [], []>} : vector<8x8xf32>, vector<8x8xf32>, vector<8x8xf32> -> vector<8x8xf32>
    %cst_45 = arith.constant 0.353553385 : f32
    %121 = vector.broadcast %cst_45 : f32 to vector<8x8xf32>
    %122 = arith.mulf %120, %121 : vector<8x8xf32>
    %cst_46 = arith.constant dense<0xFF800000> : vector<8xf32>
    %123 = vector.multi_reduction <maximumf>, %122, %cst_46 [1] : vector<8x8xf32> to vector<8xf32>
    %124 = vector.shape_cast %123 : vector<8xf32> to vector<8x1xf32>
    %125 = vector.broadcast %124 : vector<8x1xf32> to vector<8x8xf32>
    %126 = arith.subf %122, %125 : vector<8x8xf32>
    %127 = math.exp %126 : vector<8x8xf32>
    %cst_47 = arith.constant dense<0.000000e+00> : vector<8xf32>
    %128 = vector.multi_reduction <add>, %127, %cst_47 [1] : vector<8x8xf32> to vector<8xf32>
    %129 = vector.shape_cast %128 : vector<8xf32> to vector<8x1xf32>
    %130 = vector.broadcast %129 : vector<8x1xf32> to vector<8x8xf32>
    %131 = arith.divf %127, %130 : vector<8x8xf32>
    %cst_48 = arith.constant dense<0.000000e+00> : vector<8x8xf32>
    %132 = tpu.matmul %131, %118, %cst_48 {dimension_numbers = #tpu.dot_dimension_numbers<[1], [0], [0], [1], [0, 0, 1, 1], [], []>} : vector<8x8xf32>, vector<8x8xf32>, vector<8x8xf32> -> vector<8x8xf32>
    %133 = vector.extract_strided_slice %11 {offsets = [8, 0], sizes = [8, 32], strides = [1, 1]} : vector<32x32xf32> to vector<8x32xf32>
    %cst_49 = arith.constant dense<0.000000e+00> : vector<8x32xf32>
    %134 = tpu.matmul %132, %133, %cst_49 {dimension_numbers = #tpu.dot_dimension_numbers<[1], [0], [0], [1], [0, 0, 1, 1], [], []>} : vector<8x8xf32>, vector<8x32xf32>, vector<8x32xf32> -> vector<8x32xf32>
    %135 = arith.addf %115, %134 : vector<8x32xf32>
    %136 = vector.extract_strided_slice %94 {offsets = [0, 16], sizes = [8, 8], strides = [1, 1]} : vector<8x96xf32> to vector<8x8xf32>
    %137 = vector.extract_strided_slice %94 {offsets = [0, 48], sizes = [8, 8], strides = [1, 1]} : vector<8x96xf32> to vector<8x8xf32>
    %138 = vector.extract_strided_slice %94 {offsets = [0, 80], sizes = [8, 8], strides = [1, 1]} : vector<8x96xf32> to vector<8x8xf32>
    %139 = tpu.transpose %137, [1, 0] : vector<8x8xf32> -> vector<8x8xf32>
    %cst_50 = arith.constant dense<0.000000e+00> : vector<8x8xf32>
    %140 = tpu.matmul %136, %139, %cst_50 {dimension_numbers = #tpu.dot_dimension_numbers<[1], [0], [0], [1], [0, 0, 1, 1], [], []>} : vector<8x8xf32>, vector<8x8xf32>, vector<8x8xf32> -> vector<8x8xf32>
    %cst_51 = arith.constant 0.353553385 : f32
    %141 = vector.broadcast %cst_51 : f32 to vector<8x8xf32>
    %142 = arith.mulf %140, %141 : vector<8x8xf32>
    %cst_52 = arith.constant dense<0xFF800000> : vector<8xf32>
    %143 = vector.multi_reduction <maximumf>, %142, %cst_52 [1] : vector<8x8xf32> to vector<8xf32>
    %144 = vector.shape_cast %143 : vector<8xf32> to vector<8x1xf32>
    %145 = vector.broadcast %144 : vector<8x1xf32> to vector<8x8xf32>
    %146 = arith.subf %142, %145 : vector<8x8xf32>
    %147 = math.exp %146 : vector<8x8xf32>
    %cst_53 = arith.constant dense<0.000000e+00> : vector<8xf32>
    %148 = vector.multi_reduction <add>, %147, %cst_53 [1] : vector<8x8xf32> to vector<8xf32>
    %149 = vector.shape_cast %148 : vector<8xf32> to vector<8x1xf32>
    %150 = vector.broadcast %149 : vector<8x1xf32> to vector<8x8xf32>
    %151 = arith.divf %147, %150 : vector<8x8xf32>
    %cst_54 = arith.constant dense<0.000000e+00> : vector<8x8xf32>
    %152 = tpu.matmul %151, %138, %cst_54 {dimension_numbers = #tpu.dot_dimension_numbers<[1], [0], [0], [1], [0, 0, 1, 1], [], []>} : vector<8x8xf32>, vector<8x8xf32>, vector<8x8xf32> -> vector<8x8xf32>
    %153 = vector.extract_strided_slice %11 {offsets = [16, 0], sizes = [8, 32], strides = [1, 1]} : vector<32x32xf32> to vector<8x32xf32>
    %cst_55 = arith.constant dense<0.000000e+00> : vector<8x32xf32>
    %154 = tpu.matmul %152, %153, %cst_55 {dimension_numbers = #tpu.dot_dimension_numbers<[1], [0], [0], [1], [0, 0, 1, 1], [], []>} : vector<8x8xf32>, vector<8x32xf32>, vector<8x32xf32> -> vector<8x32xf32>
    %155 = arith.addf %135, %154 : vector<8x32xf32>
    %156 = vector.extract_strided_slice %94 {offsets = [0, 24], sizes = [8, 8], strides = [1, 1]} : vector<8x96xf32> to vector<8x8xf32>
    %157 = vector.extract_strided_slice %94 {offsets = [0, 56], sizes = [8, 8], strides = [1, 1]} : vector<8x96xf32> to vector<8x8xf32>
    %158 = vector.extract_strided_slice %94 {offsets = [0, 88], sizes = [8, 8], strides = [1, 1]} : vector<8x96xf32> to vector<8x8xf32>
    %159 = tpu.transpose %157, [1, 0] : vector<8x8xf32> -> vector<8x8xf32>
    %cst_56 = arith.constant dense<0.000000e+00> : vector<8x8xf32>
    %160 = tpu.matmul %156, %159, %cst_56 {dimension_numbers = #tpu.dot_dimension_numbers<[1], [0], [0], [1], [0, 0, 1, 1], [], []>} : vector<8x8xf32>, vector<8x8xf32>, vector<8x8xf32> -> vector<8x8xf32>
    %cst_57 = arith.constant 0.353553385 : f32
    %161 = vector.broadcast %cst_57 : f32 to vector<8x8xf32>
    %162 = arith.mulf %160, %161 : vector<8x8xf32>
    %cst_58 = arith.constant dense<0xFF800000> : vector<8xf32>
    %163 = vector.multi_reduction <maximumf>, %162, %cst_58 [1] : vector<8x8xf32> to vector<8xf32>
    %164 = vector.shape_cast %163 : vector<8xf32> to vector<8x1xf32>
    %165 = vector.broadcast %164 : vector<8x1xf32> to vector<8x8xf32>
    %166 = arith.subf %162, %165 : vector<8x8xf32>
    %167 = math.exp %166 : vector<8x8xf32>
    %cst_59 = arith.constant dense<0.000000e+00> : vector<8xf32>
    %168 = vector.multi_reduction <add>, %167, %cst_59 [1] : vector<8x8xf32> to vector<8xf32>
    %169 = vector.shape_cast %168 : vector<8xf32> to vector<8x1xf32>
    %170 = vector.broadcast %169 : vector<8x1xf32> to vector<8x8xf32>
    %171 = arith.divf %167, %170 : vector<8x8xf32>
    %cst_60 = arith.constant dense<0.000000e+00> : vector<8x8xf32>
    %172 = tpu.matmul %171, %158, %cst_60 {dimension_numbers = #tpu.dot_dimension_numbers<[1], [0], [0], [1], [0, 0, 1, 1], [], []>} : vector<8x8xf32>, vector<8x8xf32>, vector<8x8xf32> -> vector<8x8xf32>
    %173 = vector.extract_strided_slice %11 {offsets = [24, 0], sizes = [8, 32], strides = [1, 1]} : vector<32x32xf32> to vector<8x32xf32>
    %cst_61 = arith.constant dense<0.000000e+00> : vector<8x32xf32>
    %174 = tpu.matmul %172, %173, %cst_61 {dimension_numbers = #tpu.dot_dimension_numbers<[1], [0], [0], [1], [0, 0, 1, 1], [], []>} : vector<8x8xf32>, vector<8x32xf32>, vector<8x32xf32> -> vector<8x32xf32>
    %175 = arith.addf %155, %174 : vector<8x32xf32>
    %176 = vector.extract_strided_slice %9 {offsets = [16, 0], sizes = [8, 96], strides = [1, 1]} : vector<32x96xf32> to vector<8x96xf32>
    %cst_62 = arith.constant 0.000000e+00 : f32
    %177 = vector.broadcast %cst_62 : f32 to vector<8x32xf32>
    %178 = vector.extract_strided_slice %176 {offsets = [0, 0], sizes = [8, 8], strides = [1, 1]} : vector<8x96xf32> to vector<8x8xf32>
    %179 = vector.extract_strided_slice %176 {offsets = [0, 32], sizes = [8, 8], strides = [1, 1]} : vector<8x96xf32> to vector<8x8xf32>
    %180 = vector.extract_strided_slice %176 {offsets = [0, 64], sizes = [8, 8], strides = [1, 1]} : vector<8x96xf32> to vector<8x8xf32>
    %181 = tpu.transpose %179, [1, 0] : vector<8x8xf32> -> vector<8x8xf32>
    %cst_63 = arith.constant dense<0.000000e+00> : vector<8x8xf32>
    %182 = tpu.matmul %178, %181, %cst_63 {dimension_numbers = #tpu.dot_dimension_numbers<[1], [0], [0], [1], [0, 0, 1, 1], [], []>} : vector<8x8xf32>, vector<8x8xf32>, vector<8x8xf32> -> vector<8x8xf32>
    %cst_64 = arith.constant 0.353553385 : f32
    %183 = vector.broadcast %cst_64 : f32 to vector<8x8xf32>
    %184 = arith.mulf %182, %183 : vector<8x8xf32>
    %cst_65 = arith.constant dense<0xFF800000> : vector<8xf32>
    %185 = vector.multi_reduction <maximumf>, %184, %cst_65 [1] : vector<8x8xf32> to vector<8xf32>
    %186 = vector.shape_cast %185 : vector<8xf32> to vector<8x1xf32>
    %187 = vector.broadcast %186 : vector<8x1xf32> to vector<8x8xf32>
    %188 = arith.subf %184, %187 : vector<8x8xf32>
    %189 = math.exp %188 : vector<8x8xf32>
    %cst_66 = arith.constant dense<0.000000e+00> : vector<8xf32>
    %190 = vector.multi_reduction <add>, %189, %cst_66 [1] : vector<8x8xf32> to vector<8xf32>
    %191 = vector.shape_cast %190 : vector<8xf32> to vector<8x1xf32>
    %192 = vector.broadcast %191 : vector<8x1xf32> to vector<8x8xf32>
    %193 = arith.divf %189, %192 : vector<8x8xf32>
    %cst_67 = arith.constant dense<0.000000e+00> : vector<8x8xf32>
    %194 = tpu.matmul %193, %180, %cst_67 {dimension_numbers = #tpu.dot_dimension_numbers<[1], [0], [0], [1], [0, 0, 1, 1], [], []>} : vector<8x8xf32>, vector<8x8xf32>, vector<8x8xf32> -> vector<8x8xf32>
    %195 = vector.extract_strided_slice %11 {offsets = [0, 0], sizes = [8, 32], strides = [1, 1]} : vector<32x32xf32> to vector<8x32xf32>
    %cst_68 = arith.constant dense<0.000000e+00> : vector<8x32xf32>
    %196 = tpu.matmul %194, %195, %cst_68 {dimension_numbers = #tpu.dot_dimension_numbers<[1], [0], [0], [1], [0, 0, 1, 1], [], []>} : vector<8x8xf32>, vector<8x32xf32>, vector<8x32xf32> -> vector<8x32xf32>
    %197 = arith.addf %177, %196 : vector<8x32xf32>
    %198 = vector.extract_strided_slice %176 {offsets = [0, 8], sizes = [8, 8], strides = [1, 1]} : vector<8x96xf32> to vector<8x8xf32>
    %199 = vector.extract_strided_slice %176 {offsets = [0, 40], sizes = [8, 8], strides = [1, 1]} : vector<8x96xf32> to vector<8x8xf32>
    %200 = vector.extract_strided_slice %176 {offsets = [0, 72], sizes = [8, 8], strides = [1, 1]} : vector<8x96xf32> to vector<8x8xf32>
    %201 = tpu.transpose %199, [1, 0] : vector<8x8xf32> -> vector<8x8xf32>
    %cst_69 = arith.constant dense<0.000000e+00> : vector<8x8xf32>
    %202 = tpu.matmul %198, %201, %cst_69 {dimension_numbers = #tpu.dot_dimension_numbers<[1], [0], [0], [1], [0, 0, 1, 1], [], []>} : vector<8x8xf32>, vector<8x8xf32>, vector<8x8xf32> -> vector<8x8xf32>
    %cst_70 = arith.constant 0.353553385 : f32
    %203 = vector.broadcast %cst_70 : f32 to vector<8x8xf32>
    %204 = arith.mulf %202, %203 : vector<8x8xf32>
    %cst_71 = arith.constant dense<0xFF800000> : vector<8xf32>
    %205 = vector.multi_reduction <maximumf>, %204, %cst_71 [1] : vector<8x8xf32> to vector<8xf32>
    %206 = vector.shape_cast %205 : vector<8xf32> to vector<8x1xf32>
    %207 = vector.broadcast %206 : vector<8x1xf32> to vector<8x8xf32>
    %208 = arith.subf %204, %207 : vector<8x8xf32>
    %209 = math.exp %208 : vector<8x8xf32>
    %cst_72 = arith.constant dense<0.000000e+00> : vector<8xf32>
    %210 = vector.multi_reduction <add>, %209, %cst_72 [1] : vector<8x8xf32> to vector<8xf32>
    %211 = vector.shape_cast %210 : vector<8xf32> to vector<8x1xf32>
    %212 = vector.broadcast %211 : vector<8x1xf32> to vector<8x8xf32>
    %213 = arith.divf %209, %212 : vector<8x8xf32>
    %cst_73 = arith.constant dense<0.000000e+00> : vector<8x8xf32>
    %214 = tpu.matmul %213, %200, %cst_73 {dimension_numbers = #tpu.dot_dimension_numbers<[1], [0], [0], [1], [0, 0, 1, 1], [], []>} : vector<8x8xf32>, vector<8x8xf32>, vector<8x8xf32> -> vector<8x8xf32>
    %215 = vector.extract_strided_slice %11 {offsets = [8, 0], sizes = [8, 32], strides = [1, 1]} : vector<32x32xf32> to vector<8x32xf32>
    %cst_74 = arith.constant dense<0.000000e+00> : vector<8x32xf32>
    %216 = tpu.matmul %214, %215, %cst_74 {dimension_numbers = #tpu.dot_dimension_numbers<[1], [0], [0], [1], [0, 0, 1, 1], [], []>} : vector<8x8xf32>, vector<8x32xf32>, vector<8x32xf32> -> vector<8x32xf32>
    %217 = arith.addf %197, %216 : vector<8x32xf32>
    %218 = vector.extract_strided_slice %176 {offsets = [0, 16], sizes = [8, 8], strides = [1, 1]} : vector<8x96xf32> to vector<8x8xf32>
    %219 = vector.extract_strided_slice %176 {offsets = [0, 48], sizes = [8, 8], strides = [1, 1]} : vector<8x96xf32> to vector<8x8xf32>
    %220 = vector.extract_strided_slice %176 {offsets = [0, 80], sizes = [8, 8], strides = [1, 1]} : vector<8x96xf32> to vector<8x8xf32>
    %221 = tpu.transpose %219, [1, 0] : vector<8x8xf32> -> vector<8x8xf32>
    %cst_75 = arith.constant dense<0.000000e+00> : vector<8x8xf32>
    %222 = tpu.matmul %218, %221, %cst_75 {dimension_numbers = #tpu.dot_dimension_numbers<[1], [0], [0], [1], [0, 0, 1, 1], [], []>} : vector<8x8xf32>, vector<8x8xf32>, vector<8x8xf32> -> vector<8x8xf32>
    %cst_76 = arith.constant 0.353553385 : f32
    %223 = vector.broadcast %cst_76 : f32 to vector<8x8xf32>
    %224 = arith.mulf %222, %223 : vector<8x8xf32>
    %cst_77 = arith.constant dense<0xFF800000> : vector<8xf32>
    %225 = vector.multi_reduction <maximumf>, %224, %cst_77 [1] : vector<8x8xf32> to vector<8xf32>
    %226 = vector.shape_cast %225 : vector<8xf32> to vector<8x1xf32>
    %227 = vector.broadcast %226 : vector<8x1xf32> to vector<8x8xf32>
    %228 = arith.subf %224, %227 : vector<8x8xf32>
    %229 = math.exp %228 : vector<8x8xf32>
    %cst_78 = arith.constant dense<0.000000e+00> : vector<8xf32>
    %230 = vector.multi_reduction <add>, %229, %cst_78 [1] : vector<8x8xf32> to vector<8xf32>
    %231 = vector.shape_cast %230 : vector<8xf32> to vector<8x1xf32>
    %232 = vector.broadcast %231 : vector<8x1xf32> to vector<8x8xf32>
    %233 = arith.divf %229, %232 : vector<8x8xf32>
    %cst_79 = arith.constant dense<0.000000e+00> : vector<8x8xf32>
    %234 = tpu.matmul %233, %220, %cst_79 {dimension_numbers = #tpu.dot_dimension_numbers<[1], [0], [0], [1], [0, 0, 1, 1], [], []>} : vector<8x8xf32>, vector<8x8xf32>, vector<8x8xf32> -> vector<8x8xf32>
    %235 = vector.extract_strided_slice %11 {offsets = [16, 0], sizes = [8, 32], strides = [1, 1]} : vector<32x32xf32> to vector<8x32xf32>
    %cst_80 = arith.constant dense<0.000000e+00> : vector<8x32xf32>
    %236 = tpu.matmul %234, %235, %cst_80 {dimension_numbers = #tpu.dot_dimension_numbers<[1], [0], [0], [1], [0, 0, 1, 1], [], []>} : vector<8x8xf32>, vector<8x32xf32>, vector<8x32xf32> -> vector<8x32xf32>
    %237 = arith.addf %217, %236 : vector<8x32xf32>
    %238 = vector.extract_strided_slice %176 {offsets = [0, 24], sizes = [8, 8], strides = [1, 1]} : vector<8x96xf32> to vector<8x8xf32>
    %239 = vector.extract_strided_slice %176 {offsets = [0, 56], sizes = [8, 8], strides = [1, 1]} : vector<8x96xf32> to vector<8x8xf32>
    %240 = vector.extract_strided_slice %176 {offsets = [0, 88], sizes = [8, 8], strides = [1, 1]} : vector<8x96xf32> to vector<8x8xf32>
    %241 = tpu.transpose %239, [1, 0] : vector<8x8xf32> -> vector<8x8xf32>
    %cst_81 = arith.constant dense<0.000000e+00> : vector<8x8xf32>
    %242 = tpu.matmul %238, %241, %cst_81 {dimension_numbers = #tpu.dot_dimension_numbers<[1], [0], [0], [1], [0, 0, 1, 1], [], []>} : vector<8x8xf32>, vector<8x8xf32>, vector<8x8xf32> -> vector<8x8xf32>
    %cst_82 = arith.constant 0.353553385 : f32
    %243 = vector.broadcast %cst_82 : f32 to vector<8x8xf32>
    %244 = arith.mulf %242, %243 : vector<8x8xf32>
    %cst_83 = arith.constant dense<0xFF800000> : vector<8xf32>
    %245 = vector.multi_reduction <maximumf>, %244, %cst_83 [1] : vector<8x8xf32> to vector<8xf32>
    %246 = vector.shape_cast %245 : vector<8xf32> to vector<8x1xf32>
    %247 = vector.broadcast %246 : vector<8x1xf32> to vector<8x8xf32>
    %248 = arith.subf %244, %247 : vector<8x8xf32>
    %249 = math.exp %248 : vector<8x8xf32>
    %cst_84 = arith.constant dense<0.000000e+00> : vector<8xf32>
    %250 = vector.multi_reduction <add>, %249, %cst_84 [1] : vector<8x8xf32> to vector<8xf32>
    %251 = vector.shape_cast %250 : vector<8xf32> to vector<8x1xf32>
    %252 = vector.broadcast %251 : vector<8x1xf32> to vector<8x8xf32>
    %253 = arith.divf %249, %252 : vector<8x8xf32>
    %cst_85 = arith.constant dense<0.000000e+00> : vector<8x8xf32>
    %254 = tpu.matmul %253, %240, %cst_85 {dimension_numbers = #tpu.dot_dimension_numbers<[1], [0], [0], [1], [0, 0, 1, 1], [], []>} : vector<8x8xf32>, vector<8x8xf32>, vector<8x8xf32> -> vector<8x8xf32>
    %255 = vector.extract_strided_slice %11 {offsets = [24, 0], sizes = [8, 32], strides = [1, 1]} : vector<32x32xf32> to vector<8x32xf32>
    %cst_86 = arith.constant dense<0.000000e+00> : vector<8x32xf32>
    %256 = tpu.matmul %254, %255, %cst_86 {dimension_numbers = #tpu.dot_dimension_numbers<[1], [0], [0], [1], [0, 0, 1, 1], [], []>} : vector<8x8xf32>, vector<8x32xf32>, vector<8x32xf32> -> vector<8x32xf32>
    %257 = arith.addf %237, %256 : vector<8x32xf32>
    %258 = vector.extract_strided_slice %9 {offsets = [24, 0], sizes = [8, 96], strides = [1, 1]} : vector<32x96xf32> to vector<8x96xf32>
    %cst_87 = arith.constant 0.000000e+00 : f32
    %259 = vector.broadcast %cst_87 : f32 to vector<8x32xf32>
    %260 = vector.extract_strided_slice %258 {offsets = [0, 0], sizes = [8, 8], strides = [1, 1]} : vector<8x96xf32> to vector<8x8xf32>
    %261 = vector.extract_strided_slice %258 {offsets = [0, 32], sizes = [8, 8], strides = [1, 1]} : vector<8x96xf32> to vector<8x8xf32>
    %262 = vector.extract_strided_slice %258 {offsets = [0, 64], sizes = [8, 8], strides = [1, 1]} : vector<8x96xf32> to vector<8x8xf32>
    %263 = tpu.transpose %261, [1, 0] : vector<8x8xf32> -> vector<8x8xf32>
    %cst_88 = arith.constant dense<0.000000e+00> : vector<8x8xf32>
    %264 = tpu.matmul %260, %263, %cst_88 {dimension_numbers = #tpu.dot_dimension_numbers<[1], [0], [0], [1], [0, 0, 1, 1], [], []>} : vector<8x8xf32>, vector<8x8xf32>, vector<8x8xf32> -> vector<8x8xf32>
    %cst_89 = arith.constant 0.353553385 : f32
    %265 = vector.broadcast %cst_89 : f32 to vector<8x8xf32>
    %266 = arith.mulf %264, %265 : vector<8x8xf32>
    %cst_90 = arith.constant dense<0xFF800000> : vector<8xf32>
    %267 = vector.multi_reduction <maximumf>, %266, %cst_90 [1] : vector<8x8xf32> to vector<8xf32>
    %268 = vector.shape_cast %267 : vector<8xf32> to vector<8x1xf32>
    %269 = vector.broadcast %268 : vector<8x1xf32> to vector<8x8xf32>
    %270 = arith.subf %266, %269 : vector<8x8xf32>
    %271 = math.exp %270 : vector<8x8xf32>
    %cst_91 = arith.constant dense<0.000000e+00> : vector<8xf32>
    %272 = vector.multi_reduction <add>, %271, %cst_91 [1] : vector<8x8xf32> to vector<8xf32>
    %273 = vector.shape_cast %272 : vector<8xf32> to vector<8x1xf32>
    %274 = vector.broadcast %273 : vector<8x1xf32> to vector<8x8xf32>
    %275 = arith.divf %271, %274 : vector<8x8xf32>
    %cst_92 = arith.constant dense<0.000000e+00> : vector<8x8xf32>
    %276 = tpu.matmul %275, %262, %cst_92 {dimension_numbers = #tpu.dot_dimension_numbers<[1], [0], [0], [1], [0, 0, 1, 1], [], []>} : vector<8x8xf32>, vector<8x8xf32>, vector<8x8xf32> -> vector<8x8xf32>
    %277 = vector.extract_strided_slice %11 {offsets = [0, 0], sizes = [8, 32], strides = [1, 1]} : vector<32x32xf32> to vector<8x32xf32>
    %cst_93 = arith.constant dense<0.000000e+00> : vector<8x32xf32>
    %278 = tpu.matmul %276, %277, %cst_93 {dimension_numbers = #tpu.dot_dimension_numbers<[1], [0], [0], [1], [0, 0, 1, 1], [], []>} : vector<8x8xf32>, vector<8x32xf32>, vector<8x32xf32> -> vector<8x32xf32>
    %279 = arith.addf %259, %278 : vector<8x32xf32>
    %280 = vector.extract_strided_slice %258 {offsets = [0, 8], sizes = [8, 8], strides = [1, 1]} : vector<8x96xf32> to vector<8x8xf32>
    %281 = vector.extract_strided_slice %258 {offsets = [0, 40], sizes = [8, 8], strides = [1, 1]} : vector<8x96xf32> to vector<8x8xf32>
    %282 = vector.extract_strided_slice %258 {offsets = [0, 72], sizes = [8, 8], strides = [1, 1]} : vector<8x96xf32> to vector<8x8xf32>
    %283 = tpu.transpose %281, [1, 0] : vector<8x8xf32> -> vector<8x8xf32>
    %cst_94 = arith.constant dense<0.000000e+00> : vector<8x8xf32>
    %284 = tpu.matmul %280, %283, %cst_94 {dimension_numbers = #tpu.dot_dimension_numbers<[1], [0], [0], [1], [0, 0, 1, 1], [], []>} : vector<8x8xf32>, vector<8x8xf32>, vector<8x8xf32> -> vector<8x8xf32>
    %cst_95 = arith.constant 0.353553385 : f32
    %285 = vector.broadcast %cst_95 : f32 to vector<8x8xf32>
    %286 = arith.mulf %284, %285 : vector<8x8xf32>
    %cst_96 = arith.constant dense<0xFF800000> : vector<8xf32>
    %287 = vector.multi_reduction <maximumf>, %286, %cst_96 [1] : vector<8x8xf32> to vector<8xf32>
    %288 = vector.shape_cast %287 : vector<8xf32> to vector<8x1xf32>
    %289 = vector.broadcast %288 : vector<8x1xf32> to vector<8x8xf32>
    %290 = arith.subf %286, %289 : vector<8x8xf32>
    %291 = math.exp %290 : vector<8x8xf32>
    %cst_97 = arith.constant dense<0.000000e+00> : vector<8xf32>
    %292 = vector.multi_reduction <add>, %291, %cst_97 [1] : vector<8x8xf32> to vector<8xf32>
    %293 = vector.shape_cast %292 : vector<8xf32> to vector<8x1xf32>
    %294 = vector.broadcast %293 : vector<8x1xf32> to vector<8x8xf32>
    %295 = arith.divf %291, %294 : vector<8x8xf32>
    %cst_98 = arith.constant dense<0.000000e+00> : vector<8x8xf32>
    %296 = tpu.matmul %295, %282, %cst_98 {dimension_numbers = #tpu.dot_dimension_numbers<[1], [0], [0], [1], [0, 0, 1, 1], [], []>} : vector<8x8xf32>, vector<8x8xf32>, vector<8x8xf32> -> vector<8x8xf32>
    %297 = vector.extract_strided_slice %11 {offsets = [8, 0], sizes = [8, 32], strides = [1, 1]} : vector<32x32xf32> to vector<8x32xf32>
    %cst_99 = arith.constant dense<0.000000e+00> : vector<8x32xf32>
    %298 = tpu.matmul %296, %297, %cst_99 {dimension_numbers = #tpu.dot_dimension_numbers<[1], [0], [0], [1], [0, 0, 1, 1], [], []>} : vector<8x8xf32>, vector<8x32xf32>, vector<8x32xf32> -> vector<8x32xf32>
    %299 = arith.addf %279, %298 : vector<8x32xf32>
    %300 = vector.extract_strided_slice %258 {offsets = [0, 16], sizes = [8, 8], strides = [1, 1]} : vector<8x96xf32> to vector<8x8xf32>
    %301 = vector.extract_strided_slice %258 {offsets = [0, 48], sizes = [8, 8], strides = [1, 1]} : vector<8x96xf32> to vector<8x8xf32>
    %302 = vector.extract_strided_slice %258 {offsets = [0, 80], sizes = [8, 8], strides = [1, 1]} : vector<8x96xf32> to vector<8x8xf32>
    %303 = tpu.transpose %301, [1, 0] : vector<8x8xf32> -> vector<8x8xf32>
    %cst_100 = arith.constant dense<0.000000e+00> : vector<8x8xf32>
    %304 = tpu.matmul %300, %303, %cst_100 {dimension_numbers = #tpu.dot_dimension_numbers<[1], [0], [0], [1], [0, 0, 1, 1], [], []>} : vector<8x8xf32>, vector<8x8xf32>, vector<8x8xf32> -> vector<8x8xf32>
    %cst_101 = arith.constant 0.353553385 : f32
    %305 = vector.broadcast %cst_101 : f32 to vector<8x8xf32>
    %306 = arith.mulf %304, %305 : vector<8x8xf32>
    %cst_102 = arith.constant dense<0xFF800000> : vector<8xf32>
    %307 = vector.multi_reduction <maximumf>, %306, %cst_102 [1] : vector<8x8xf32> to vector<8xf32>
    %308 = vector.shape_cast %307 : vector<8xf32> to vector<8x1xf32>
    %309 = vector.broadcast %308 : vector<8x1xf32> to vector<8x8xf32>
    %310 = arith.subf %306, %309 : vector<8x8xf32>
    %311 = math.exp %310 : vector<8x8xf32>
    %cst_103 = arith.constant dense<0.000000e+00> : vector<8xf32>
    %312 = vector.multi_reduction <add>, %311, %cst_103 [1] : vector<8x8xf32> to vector<8xf32>
    %313 = vector.shape_cast %312 : vector<8xf32> to vector<8x1xf32>
    %314 = vector.broadcast %313 : vector<8x1xf32> to vector<8x8xf32>
    %315 = arith.divf %311, %314 : vector<8x8xf32>
    %cst_104 = arith.constant dense<0.000000e+00> : vector<8x8xf32>
    %316 = tpu.matmul %315, %302, %cst_104 {dimension_numbers = #tpu.dot_dimension_numbers<[1], [0], [0], [1], [0, 0, 1, 1], [], []>} : vector<8x8xf32>, vector<8x8xf32>, vector<8x8xf32> -> vector<8x8xf32>
    %317 = vector.extract_strided_slice %11 {offsets = [16, 0], sizes = [8, 32], strides = [1, 1]} : vector<32x32xf32> to vector<8x32xf32>
    %cst_105 = arith.constant dense<0.000000e+00> : vector<8x32xf32>
    %318 = tpu.matmul %316, %317, %cst_105 {dimension_numbers = #tpu.dot_dimension_numbers<[1], [0], [0], [1], [0, 0, 1, 1], [], []>} : vector<8x8xf32>, vector<8x32xf32>, vector<8x32xf32> -> vector<8x32xf32>
    %319 = arith.addf %299, %318 : vector<8x32xf32>
    %320 = vector.extract_strided_slice %258 {offsets = [0, 24], sizes = [8, 8], strides = [1, 1]} : vector<8x96xf32> to vector<8x8xf32>
    %321 = vector.extract_strided_slice %258 {offsets = [0, 56], sizes = [8, 8], strides = [1, 1]} : vector<8x96xf32> to vector<8x8xf32>
    %322 = vector.extract_strided_slice %258 {offsets = [0, 88], sizes = [8, 8], strides = [1, 1]} : vector<8x96xf32> to vector<8x8xf32>
    %323 = tpu.transpose %321, [1, 0] : vector<8x8xf32> -> vector<8x8xf32>
    %cst_106 = arith.constant dense<0.000000e+00> : vector<8x8xf32>
    %324 = tpu.matmul %320, %323, %cst_106 {dimension_numbers = #tpu.dot_dimension_numbers<[1], [0], [0], [1], [0, 0, 1, 1], [], []>} : vector<8x8xf32>, vector<8x8xf32>, vector<8x8xf32> -> vector<8x8xf32>
    %cst_107 = arith.constant 0.353553385 : f32
    %325 = vector.broadcast %cst_107 : f32 to vector<8x8xf32>
    %326 = arith.mulf %324, %325 : vector<8x8xf32>
    %cst_108 = arith.constant dense<0xFF800000> : vector<8xf32>
    %327 = vector.multi_reduction <maximumf>, %326, %cst_108 [1] : vector<8x8xf32> to vector<8xf32>
    %328 = vector.shape_cast %327 : vector<8xf32> to vector<8x1xf32>
    %329 = vector.broadcast %328 : vector<8x1xf32> to vector<8x8xf32>
    %330 = arith.subf %326, %329 : vector<8x8xf32>
    %331 = math.exp %330 : vector<8x8xf32>
    %cst_109 = arith.constant dense<0.000000e+00> : vector<8xf32>
    %332 = vector.multi_reduction <add>, %331, %cst_109 [1] : vector<8x8xf32> to vector<8xf32>
    %333 = vector.shape_cast %332 : vector<8xf32> to vector<8x1xf32>
    %334 = vector.broadcast %333 : vector<8x1xf32> to vector<8x8xf32>
    %335 = arith.divf %331, %334 : vector<8x8xf32>
    %cst_110 = arith.constant dense<0.000000e+00> : vector<8x8xf32>
    %336 = tpu.matmul %335, %322, %cst_110 {dimension_numbers = #tpu.dot_dimension_numbers<[1], [0], [0], [1], [0, 0, 1, 1], [], []>} : vector<8x8xf32>, vector<8x8xf32>, vector<8x8xf32> -> vector<8x8xf32>
    %337 = vector.extract_strided_slice %11 {offsets = [24, 0], sizes = [8, 32], strides = [1, 1]} : vector<32x32xf32> to vector<8x32xf32>
    %cst_111 = arith.constant dense<0.000000e+00> : vector<8x32xf32>
    %338 = tpu.matmul %336, %337, %cst_111 {dimension_numbers = #tpu.dot_dimension_numbers<[1], [0], [0], [1], [0, 0, 1, 1], [], []>} : vector<8x8xf32>, vector<8x32xf32>, vector<8x32xf32> -> vector<8x32xf32>
    %339 = arith.addf %319, %338 : vector<8x32xf32>
    %340 = tpu.concatenate %93, %175, %257, %339 in 0 : vector<8x32xf32>, vector<8x32xf32>, vector<8x32xf32>, vector<8x32xf32> -> vector<32x32xf32>
    %c0_112 = arith.constant 0 : index
    %c0_113 = arith.constant 0 : index
    %c0_114 = arith.constant 0 : index
    %341 = vector.load %arg5[%c0_112, %c0_113, %c0_114] : memref<2x1x32xf32, #tpu.memory_space<vmem>>, vector<1x1x32xf32>
    %342 = vector.shape_cast %341 : vector<1x1x32xf32> to vector<1x32xf32>
    %343 = vector.broadcast %342 : vector<1x32xf32> to vector<32x32xf32>
    %344 = arith.addf %340, %343 : vector<32x32xf32>
    %c0_115 = arith.constant 0 : index
    %c0_116 = arith.constant 0 : index
    %c0_117 = arith.constant 0 : index
    %345 = vector.load %arg6[%c0_115, %c0_116, %c0_117] : memref<2x2x32xf32, #tpu.memory_space<vmem>>, vector<1x2x32xf32>
    %346 = vector.shape_cast %345 : vector<1x2x32xf32> to vector<2x32xf32>
    %347 = arith.addf %2, %344 : vector<32x32xf32>
    %348 = vector.extract_strided_slice %346 {offsets = [0, 0], sizes = [1, 32], strides = [1, 1]} : vector<2x32xf32> to vector<1x32xf32>
    %349 = vector.extract_strided_slice %346 {offsets = [1, 0], sizes = [1, 32], strides = [1, 1]} : vector<2x32xf32> to vector<1x32xf32>
    %cst_118 = arith.constant dense<0.000000e+00> : vector<32xf32>
    %350 = vector.multi_reduction <add>, %347, %cst_118 [1] : vector<32x32xf32> to vector<32xf32>
    %351 = vector.shape_cast %350 : vector<32xf32> to vector<32x1xf32>
    %cst_119 = arith.constant 3.200000e+01 : f32
    %352 = vector.broadcast %cst_119 : f32 to vector<32x1xf32>
    %353 = arith.divf %351, %352 : vector<32x1xf32>
    %354 = vector.broadcast %353 : vector<32x1xf32> to vector<32x32xf32>
    %355 = arith.subf %347, %354 : vector<32x32xf32>
    %356 = arith.mulf %355, %355 : vector<32x32xf32>
    %cst_120 = arith.constant dense<0.000000e+00> : vector<32xf32>
    %357 = vector.multi_reduction <add>, %356, %cst_120 [1] : vector<32x32xf32> to vector<32xf32>
    %358 = vector.shape_cast %357 : vector<32xf32> to vector<32x1xf32>
    %cst_121 = arith.constant 3.200000e+01 : f32
    %359 = vector.broadcast %cst_121 : f32 to vector<32x1xf32>
    %360 = arith.divf %358, %359 : vector<32x1xf32>
    %cst_122 = arith.constant 9.99999974E-6 : f32
    %361 = vector.broadcast %cst_122 : f32 to vector<32x1xf32>
    %362 = arith.addf %360, %361 : vector<32x1xf32>
    %363 = math.rsqrt %362 : vector<32x1xf32>
    %364 = vector.broadcast %363 : vector<32x1xf32> to vector<32x32xf32>
    %365 = arith.mulf %355, %364 : vector<32x32xf32>
    %366 = vector.broadcast %348 : vector<1x32xf32> to vector<32x32xf32>
    %367 = arith.mulf %365, %366 : vector<32x32xf32>
    %368 = vector.broadcast %349 : vector<1x32xf32> to vector<32x32xf32>
    %369 = arith.addf %367, %368 : vector<32x32xf32>
    %c0_123 = arith.constant 0 : index
    %c0_124 = arith.constant 0 : index
    %c0_125 = arith.constant 0 : index
    %370 = vector.load %arg7[%c0_123, %c0_124, %c0_125] : memref<2x32x64xf32, #tpu.memory_space<vmem>>, vector<1x32x64xf32>
    %371 = vector.shape_cast %370 : vector<1x32x64xf32> to vector<32x64xf32>
    %cst_126 = arith.constant dense<0.000000e+00> : vector<32x64xf32>
    %372 = tpu.matmul %369, %371, %cst_126 {dimension_numbers = #tpu.dot_dimension_numbers<[1], [0], [0], [1], [0, 0, 1, 1], [], []>} : vector<32x32xf32>, vector<32x64xf32>, vector<32x64xf32> -> vector<32x64xf32>
    %c0_127 = arith.constant 0 : index
    %c0_128 = arith.constant 0 : index
    %c0_129 = arith.constant 0 : index
    %373 = vector.load %arg8[%c0_127, %c0_128, %c0_129] : memref<2x1x64xf32, #tpu.memory_space<vmem>>, vector<1x1x64xf32>
    %374 = vector.shape_cast %373 : vector<1x1x64xf32> to vector<1x64xf32>
    %375 = vector.broadcast %374 : vector<1x64xf32> to vector<32x64xf32>
    %376 = arith.addf %372, %375 : vector<32x64xf32>
    %cst_130 = arith.constant 0.000000e+00 : f32
    %377 = vector.broadcast %cst_130 : f32 to vector<32x64xf32>
    %378 = arith.maximumf %376, %377 : vector<32x64xf32>
    %c0_131 = arith.constant 0 : index
    %c0_132 = arith.constant 0 : index
    %c0_133 = arith.constant 0 : index
    %379 = vector.load %arg9[%c0_131, %c0_132, %c0_133] : memref<2x64x32xf32, #tpu.memory_space<vmem>>, vector<1x64x32xf32>
    %380 = vector.shape_cast %379 : vector<1x64x32xf32> to vector<64x32xf32>
    %cst_134 = arith.constant dense<0.000000e+00> : vector<32x32xf32>
    %381 = tpu.matmul %378, %380, %cst_134 {dimension_numbers = #tpu.dot_dimension_numbers<[1], [0], [0], [1], [0, 0, 1, 1], [], []>} : vector<32x64xf32>, vector<64x32xf32>, vector<32x32xf32> -> vector<32x32xf32>
    %c0_135 = arith.constant 0 : index
    %c0_136 = arith.constant 0 : index
    %c0_137 = arith.constant 0 : index
    %382 = vector.load %arg10[%c0_135, %c0_136, %c0_137] : memref<2x1x32xf32, #tpu.memory_space<vmem>>, vector<1x1x32xf32>
    %383 = vector.shape_cast %382 : vector<1x1x32xf32> to vector<1x32xf32>
    %384 = vector.broadcast %383 : vector<1x32xf32> to vector<32x32xf32>
    %385 = arith.addf %381, %384 : vector<32x32xf32>
    %c0_138 = arith.constant 0 : index
    %c0_139 = arith.constant 0 : index
    %c0_140 = arith.constant 0 : index
    %386 = vector.load %arg11[%c0_138, %c0_139, %c0_140] : memref<2x2x32xf32, #tpu.memory_space<vmem>>, vector<1x2x32xf32>
    %387 = vector.shape_cast %386 : vector<1x2x32xf32> to vector<2x32xf32>
    %388 = arith.addf %369, %385 : vector<32x32xf32>
    %389 = vector.extract_strided_slice %387 {offsets = [0, 0], sizes = [1, 32], strides = [1, 1]} : vector<2x32xf32> to vector<1x32xf32>
    %390 = vector.extract_strided_slice %387 {offsets = [1, 0], sizes = [1, 32], strides = [1, 1]} : vector<2x32xf32> to vector<1x32xf32>
    %cst_141 = arith.constant dense<0.000000e+00> : vector<32xf32>
    %391 = vector.multi_reduction <add>, %388, %cst_141 [1] : vector<32x32xf32> to vector<32xf32>
    %392 = vector.shape_cast %391 : vector<32xf32> to vector<32x1xf32>
    %cst_142 = arith.constant 3.200000e+01 : f32
    %393 = vector.broadcast %cst_142 : f32 to vector<32x1xf32>
    %394 = arith.divf %392, %393 : vector<32x1xf32>
    %395 = vector.broadcast %394 : vector<32x1xf32> to vector<32x32xf32>
    %396 = arith.subf %388, %395 : vector<32x32xf32>
    %397 = arith.mulf %396, %396 : vector<32x32xf32>
    %cst_143 = arith.constant dense<0.000000e+00> : vector<32xf32>
    %398 = vector.multi_reduction <add>, %397, %cst_143 [1] : vector<32x32xf32> to vector<32xf32>
    %399 = vector.shape_cast %398 : vector<32xf32> to vector<32x1xf32>
    %cst_144 = arith.constant 3.200000e+01 : f32
    %400 = vector.broadcast %cst_144 : f32 to vector<32x1xf32>
    %401 = arith.divf %399, %400 : vector<32x1xf32>
    %cst_145 = arith.constant 9.99999974E-6 : f32
    %402 = vector.broadcast %cst_145 : f32 to vector<32x1xf32>
    %403 = arith.addf %401, %402 : vector<32x1xf32>
    %404 = math.rsqrt %403 : vector<32x1xf32>
    %405 = vector.broadcast %404 : vector<32x1xf32> to vector<32x32xf32>
    %406 = arith.mulf %396, %405 : vector<32x32xf32>
    %407 = vector.broadcast %389 : vector<1x32xf32> to vector<32x32xf32>
    %408 = arith.mulf %406, %407 : vector<32x32xf32>
    %409 = vector.broadcast %390 : vector<1x32xf32> to vector<32x32xf32>
    %410 = arith.addf %408, %409 : vector<32x32xf32>
    %c1 = arith.constant 1 : index
    %c0_146 = arith.constant 0 : index
    %c0_147 = arith.constant 0 : index
    %411 = vector.load %arg2[%c1, %c0_146, %c0_147] : memref<2x32x96xf32, #tpu.memory_space<vmem>>, vector<1x32x96xf32>
    %412 = vector.shape_cast %411 : vector<1x32x96xf32> to vector<32x96xf32>
    %cst_148 = arith.constant dense<0.000000e+00> : vector<32x96xf32>
    %413 = tpu.matmul %410, %412, %cst_148 {dimension_numbers = #tpu.dot_dimension_numbers<[1], [0], [0], [1], [0, 0, 1, 1], [], []>} : vector<32x32xf32>, vector<32x96xf32>, vector<32x96xf32> -> vector<32x96xf32>
    %c1_149 = arith.constant 1 : index
    %c0_150 = arith.constant 0 : index
    %c0_151 = arith.constant 0 : index
    %414 = vector.load %arg3[%c1_149, %c0_150, %c0_151] : memref<2x1x96xf32, #tpu.memory_space<vmem>>, vector<1x1x96xf32>
    %415 = vector.shape_cast %414 : vector<1x1x96xf32> to vector<1x96xf32>
    %416 = vector.broadcast %415 : vector<1x96xf32> to vector<32x96xf32>
    %417 = arith.addf %413, %416 : vector<32x96xf32>
    %c1_152 = arith.constant 1 : index
    %c0_153 = arith.constant 0 : index
    %c0_154 = arith.constant 0 : index
    %418 = vector.load %arg4[%c1_152, %c0_153, %c0_154] : memref<2x32x32xf32, #tpu.memory_space<vmem>>, vector<1x32x32xf32>
    %419 = vector.shape_cast %418 : vector<1x32x32xf32> to vector<32x32xf32>
    %420 = vector.extract_strided_slice %417 {offsets = [0, 0], sizes = [8, 96], strides = [1, 1]} : vector<32x96xf32> to vector<8x96xf32>
    %cst_155 = arith.constant 0.000000e+00 : f32
    %421 = vector.broadcast %cst_155 : f32 to vector<8x32xf32>
    %422 = vector.extract_strided_slice %420 {offsets = [0, 0], sizes = [8, 8], strides = [1, 1]} : vector<8x96xf32> to vector<8x8xf32>
    %423 = vector.extract_strided_slice %420 {offsets = [0, 32], sizes = [8, 8], strides = [1, 1]} : vector<8x96xf32> to vector<8x8xf32>
    %424 = vector.extract_strided_slice %420 {offsets = [0, 64], sizes = [8, 8], strides = [1, 1]} : vector<8x96xf32> to vector<8x8xf32>
    %425 = tpu.transpose %423, [1, 0] : vector<8x8xf32> -> vector<8x8xf32>
    %cst_156 = arith.constant dense<0.000000e+00> : vector<8x8xf32>
    %426 = tpu.matmul %422, %425, %cst_156 {dimension_numbers = #tpu.dot_dimension_numbers<[1], [0], [0], [1], [0, 0, 1, 1], [], []>} : vector<8x8xf32>, vector<8x8xf32>, vector<8x8xf32> -> vector<8x8xf32>
    %cst_157 = arith.constant 0.353553385 : f32
    %427 = vector.broadcast %cst_157 : f32 to vector<8x8xf32>
    %428 = arith.mulf %426, %427 : vector<8x8xf32>
    %cst_158 = arith.constant dense<0xFF800000> : vector<8xf32>
    %429 = vector.multi_reduction <maximumf>, %428, %cst_158 [1] : vector<8x8xf32> to vector<8xf32>
    %430 = vector.shape_cast %429 : vector<8xf32> to vector<8x1xf32>
    %431 = vector.broadcast %430 : vector<8x1xf32> to vector<8x8xf32>
    %432 = arith.subf %428, %431 : vector<8x8xf32>
    %433 = math.exp %432 : vector<8x8xf32>
    %cst_159 = arith.constant dense<0.000000e+00> : vector<8xf32>
    %434 = vector.multi_reduction <add>, %433, %cst_159 [1] : vector<8x8xf32> to vector<8xf32>
    %435 = vector.shape_cast %434 : vector<8xf32> to vector<8x1xf32>
    %436 = vector.broadcast %435 : vector<8x1xf32> to vector<8x8xf32>
    %437 = arith.divf %433, %436 : vector<8x8xf32>
    %cst_160 = arith.constant dense<0.000000e+00> : vector<8x8xf32>
    %438 = tpu.matmul %437, %424, %cst_160 {dimension_numbers = #tpu.dot_dimension_numbers<[1], [0], [0], [1], [0, 0, 1, 1], [], []>} : vector<8x8xf32>, vector<8x8xf32>, vector<8x8xf32> -> vector<8x8xf32>
    %439 = vector.extract_strided_slice %419 {offsets = [0, 0], sizes = [8, 32], strides = [1, 1]} : vector<32x32xf32> to vector<8x32xf32>
    %cst_161 = arith.constant dense<0.000000e+00> : vector<8x32xf32>
    %440 = tpu.matmul %438, %439, %cst_161 {dimension_numbers = #tpu.dot_dimension_numbers<[1], [0], [0], [1], [0, 0, 1, 1], [], []>} : vector<8x8xf32>, vector<8x32xf32>, vector<8x32xf32> -> vector<8x32xf32>
    %441 = arith.addf %421, %440 : vector<8x32xf32>
    %442 = vector.extract_strided_slice %420 {offsets = [0, 8], sizes = [8, 8], strides = [1, 1]} : vector<8x96xf32> to vector<8x8xf32>
    %443 = vector.extract_strided_slice %420 {offsets = [0, 40], sizes = [8, 8], strides = [1, 1]} : vector<8x96xf32> to vector<8x8xf32>
    %444 = vector.extract_strided_slice %420 {offsets = [0, 72], sizes = [8, 8], strides = [1, 1]} : vector<8x96xf32> to vector<8x8xf32>
    %445 = tpu.transpose %443, [1, 0] : vector<8x8xf32> -> vector<8x8xf32>
    %cst_162 = arith.constant dense<0.000000e+00> : vector<8x8xf32>
    %446 = tpu.matmul %442, %445, %cst_162 {dimension_numbers = #tpu.dot_dimension_numbers<[1], [0], [0], [1], [0, 0, 1, 1], [], []>} : vector<8x8xf32>, vector<8x8xf32>, vector<8x8xf32> -> vector<8x8xf32>
    %cst_163 = arith.constant 0.353553385 : f32
    %447 = vector.broadcast %cst_163 : f32 to vector<8x8xf32>
    %448 = arith.mulf %446, %447 : vector<8x8xf32>
    %cst_164 = arith.constant dense<0xFF800000> : vector<8xf32>
    %449 = vector.multi_reduction <maximumf>, %448, %cst_164 [1] : vector<8x8xf32> to vector<8xf32>
    %450 = vector.shape_cast %449 : vector<8xf32> to vector<8x1xf32>
    %451 = vector.broadcast %450 : vector<8x1xf32> to vector<8x8xf32>
    %452 = arith.subf %448, %451 : vector<8x8xf32>
    %453 = math.exp %452 : vector<8x8xf32>
    %cst_165 = arith.constant dense<0.000000e+00> : vector<8xf32>
    %454 = vector.multi_reduction <add>, %453, %cst_165 [1] : vector<8x8xf32> to vector<8xf32>
    %455 = vector.shape_cast %454 : vector<8xf32> to vector<8x1xf32>
    %456 = vector.broadcast %455 : vector<8x1xf32> to vector<8x8xf32>
    %457 = arith.divf %453, %456 : vector<8x8xf32>
    %cst_166 = arith.constant dense<0.000000e+00> : vector<8x8xf32>
    %458 = tpu.matmul %457, %444, %cst_166 {dimension_numbers = #tpu.dot_dimension_numbers<[1], [0], [0], [1], [0, 0, 1, 1], [], []>} : vector<8x8xf32>, vector<8x8xf32>, vector<8x8xf32> -> vector<8x8xf32>
    %459 = vector.extract_strided_slice %419 {offsets = [8, 0], sizes = [8, 32], strides = [1, 1]} : vector<32x32xf32> to vector<8x32xf32>
    %cst_167 = arith.constant dense<0.000000e+00> : vector<8x32xf32>
    %460 = tpu.matmul %458, %459, %cst_167 {dimension_numbers = #tpu.dot_dimension_numbers<[1], [0], [0], [1], [0, 0, 1, 1], [], []>} : vector<8x8xf32>, vector<8x32xf32>, vector<8x32xf32> -> vector<8x32xf32>
    %461 = arith.addf %441, %460 : vector<8x32xf32>
    %462 = vector.extract_strided_slice %420 {offsets = [0, 16], sizes = [8, 8], strides = [1, 1]} : vector<8x96xf32> to vector<8x8xf32>
    %463 = vector.extract_strided_slice %420 {offsets = [0, 48], sizes = [8, 8], strides = [1, 1]} : vector<8x96xf32> to vector<8x8xf32>
    %464 = vector.extract_strided_slice %420 {offsets = [0, 80], sizes = [8, 8], strides = [1, 1]} : vector<8x96xf32> to vector<8x8xf32>
    %465 = tpu.transpose %463, [1, 0] : vector<8x8xf32> -> vector<8x8xf32>
    %cst_168 = arith.constant dense<0.000000e+00> : vector<8x8xf32>
    %466 = tpu.matmul %462, %465, %cst_168 {dimension_numbers = #tpu.dot_dimension_numbers<[1], [0], [0], [1], [0, 0, 1, 1], [], []>} : vector<8x8xf32>, vector<8x8xf32>, vector<8x8xf32> -> vector<8x8xf32>
    %cst_169 = arith.constant 0.353553385 : f32
    %467 = vector.broadcast %cst_169 : f32 to vector<8x8xf32>
    %468 = arith.mulf %466, %467 : vector<8x8xf32>
    %cst_170 = arith.constant dense<0xFF800000> : vector<8xf32>
    %469 = vector.multi_reduction <maximumf>, %468, %cst_170 [1] : vector<8x8xf32> to vector<8xf32>
    %470 = vector.shape_cast %469 : vector<8xf32> to vector<8x1xf32>
    %471 = vector.broadcast %470 : vector<8x1xf32> to vector<8x8xf32>
    %472 = arith.subf %468, %471 : vector<8x8xf32>
    %473 = math.exp %472 : vector<8x8xf32>
    %cst_171 = arith.constant dense<0.000000e+00> : vector<8xf32>
    %474 = vector.multi_reduction <add>, %473, %cst_171 [1] : vector<8x8xf32> to vector<8xf32>
    %475 = vector.shape_cast %474 : vector<8xf32> to vector<8x1xf32>
    %476 = vector.broadcast %475 : vector<8x1xf32> to vector<8x8xf32>
    %477 = arith.divf %473, %476 : vector<8x8xf32>
    %cst_172 = arith.constant dense<0.000000e+00> : vector<8x8xf32>
    %478 = tpu.matmul %477, %464, %cst_172 {dimension_numbers = #tpu.dot_dimension_numbers<[1], [0], [0], [1], [0, 0, 1, 1], [], []>} : vector<8x8xf32>, vector<8x8xf32>, vector<8x8xf32> -> vector<8x8xf32>
    %479 = vector.extract_strided_slice %419 {offsets = [16, 0], sizes = [8, 32], strides = [1, 1]} : vector<32x32xf32> to vector<8x32xf32>
    %cst_173 = arith.constant dense<0.000000e+00> : vector<8x32xf32>
    %480 = tpu.matmul %478, %479, %cst_173 {dimension_numbers = #tpu.dot_dimension_numbers<[1], [0], [0], [1], [0, 0, 1, 1], [], []>} : vector<8x8xf32>, vector<8x32xf32>, vector<8x32xf32> -> vector<8x32xf32>
    %481 = arith.addf %461, %480 : vector<8x32xf32>
    %482 = vector.extract_strided_slice %420 {offsets = [0, 24], sizes = [8, 8], strides = [1, 1]} : vector<8x96xf32> to vector<8x8xf32>
    %483 = vector.extract_strided_slice %420 {offsets = [0, 56], sizes = [8, 8], strides = [1, 1]} : vector<8x96xf32> to vector<8x8xf32>
    %484 = vector.extract_strided_slice %420 {offsets = [0, 88], sizes = [8, 8], strides = [1, 1]} : vector<8x96xf32> to vector<8x8xf32>
    %485 = tpu.transpose %483, [1, 0] : vector<8x8xf32> -> vector<8x8xf32>
    %cst_174 = arith.constant dense<0.000000e+00> : vector<8x8xf32>
    %486 = tpu.matmul %482, %485, %cst_174 {dimension_numbers = #tpu.dot_dimension_numbers<[1], [0], [0], [1], [0, 0, 1, 1], [], []>} : vector<8x8xf32>, vector<8x8xf32>, vector<8x8xf32> -> vector<8x8xf32>
    %cst_175 = arith.constant 0.353553385 : f32
    %487 = vector.broadcast %cst_175 : f32 to vector<8x8xf32>
    %488 = arith.mulf %486, %487 : vector<8x8xf32>
    %cst_176 = arith.constant dense<0xFF800000> : vector<8xf32>
    %489 = vector.multi_reduction <maximumf>, %488, %cst_176 [1] : vector<8x8xf32> to vector<8xf32>
    %490 = vector.shape_cast %489 : vector<8xf32> to vector<8x1xf32>
    %491 = vector.broadcast %490 : vector<8x1xf32> to vector<8x8xf32>
    %492 = arith.subf %488, %491 : vector<8x8xf32>
    %493 = math.exp %492 : vector<8x8xf32>
    %cst_177 = arith.constant dense<0.000000e+00> : vector<8xf32>
    %494 = vector.multi_reduction <add>, %493, %cst_177 [1] : vector<8x8xf32> to vector<8xf32>
    %495 = vector.shape_cast %494 : vector<8xf32> to vector<8x1xf32>
    %496 = vector.broadcast %495 : vector<8x1xf32> to vector<8x8xf32>
    %497 = arith.divf %493, %496 : vector<8x8xf32>
    %cst_178 = arith.constant dense<0.000000e+00> : vector<8x8xf32>
    %498 = tpu.matmul %497, %484, %cst_178 {dimension_numbers = #tpu.dot_dimension_numbers<[1], [0], [0], [1], [0, 0, 1, 1], [], []>} : vector<8x8xf32>, vector<8x8xf32>, vector<8x8xf32> -> vector<8x8xf32>
    %499 = vector.extract_strided_slice %419 {offsets = [24, 0], sizes = [8, 32], strides = [1, 1]} : vector<32x32xf32> to vector<8x32xf32>
    %cst_179 = arith.constant dense<0.000000e+00> : vector<8x32xf32>
    %500 = tpu.matmul %498, %499, %cst_179 {dimension_numbers = #tpu.dot_dimension_numbers<[1], [0], [0], [1], [0, 0, 1, 1], [], []>} : vector<8x8xf32>, vector<8x32xf32>, vector<8x32xf32> -> vector<8x32xf32>
    %501 = arith.addf %481, %500 : vector<8x32xf32>
    %502 = vector.extract_strided_slice %417 {offsets = [8, 0], sizes = [8, 96], strides = [1, 1]} : vector<32x96xf32> to vector<8x96xf32>
    %cst_180 = arith.constant 0.000000e+00 : f32
    %503 = vector.broadcast %cst_180 : f32 to vector<8x32xf32>
    %504 = vector.extract_strided_slice %502 {offsets = [0, 0], sizes = [8, 8], strides = [1, 1]} : vector<8x96xf32> to vector<8x8xf32>
    %505 = vector.extract_strided_slice %502 {offsets = [0, 32], sizes = [8, 8], strides = [1, 1]} : vector<8x96xf32> to vector<8x8xf32>
    %506 = vector.extract_strided_slice %502 {offsets = [0, 64], sizes = [8, 8], strides = [1, 1]} : vector<8x96xf32> to vector<8x8xf32>
    %507 = tpu.transpose %505, [1, 0] : vector<8x8xf32> -> vector<8x8xf32>
    %cst_181 = arith.constant dense<0.000000e+00> : vector<8x8xf32>
    %508 = tpu.matmul %504, %507, %cst_181 {dimension_numbers = #tpu.dot_dimension_numbers<[1], [0], [0], [1], [0, 0, 1, 1], [], []>} : vector<8x8xf32>, vector<8x8xf32>, vector<8x8xf32> -> vector<8x8xf32>
    %cst_182 = arith.constant 0.353553385 : f32
    %509 = vector.broadcast %cst_182 : f32 to vector<8x8xf32>
    %510 = arith.mulf %508, %509 : vector<8x8xf32>
    %cst_183 = arith.constant dense<0xFF800000> : vector<8xf32>
    %511 = vector.multi_reduction <maximumf>, %510, %cst_183 [1] : vector<8x8xf32> to vector<8xf32>
    %512 = vector.shape_cast %511 : vector<8xf32> to vector<8x1xf32>
    %513 = vector.broadcast %512 : vector<8x1xf32> to vector<8x8xf32>
    %514 = arith.subf %510, %513 : vector<8x8xf32>
    %515 = math.exp %514 : vector<8x8xf32>
    %cst_184 = arith.constant dense<0.000000e+00> : vector<8xf32>
    %516 = vector.multi_reduction <add>, %515, %cst_184 [1] : vector<8x8xf32> to vector<8xf32>
    %517 = vector.shape_cast %516 : vector<8xf32> to vector<8x1xf32>
    %518 = vector.broadcast %517 : vector<8x1xf32> to vector<8x8xf32>
    %519 = arith.divf %515, %518 : vector<8x8xf32>
    %cst_185 = arith.constant dense<0.000000e+00> : vector<8x8xf32>
    %520 = tpu.matmul %519, %506, %cst_185 {dimension_numbers = #tpu.dot_dimension_numbers<[1], [0], [0], [1], [0, 0, 1, 1], [], []>} : vector<8x8xf32>, vector<8x8xf32>, vector<8x8xf32> -> vector<8x8xf32>
    %521 = vector.extract_strided_slice %419 {offsets = [0, 0], sizes = [8, 32], strides = [1, 1]} : vector<32x32xf32> to vector<8x32xf32>
    %cst_186 = arith.constant dense<0.000000e+00> : vector<8x32xf32>
    %522 = tpu.matmul %520, %521, %cst_186 {dimension_numbers = #tpu.dot_dimension_numbers<[1], [0], [0], [1], [0, 0, 1, 1], [], []>} : vector<8x8xf32>, vector<8x32xf32>, vector<8x32xf32> -> vector<8x32xf32>
    %523 = arith.addf %503, %522 : vector<8x32xf32>
    %524 = vector.extract_strided_slice %502 {offsets = [0, 8], sizes = [8, 8], strides = [1, 1]} : vector<8x96xf32> to vector<8x8xf32>
    %525 = vector.extract_strided_slice %502 {offsets = [0, 40], sizes = [8, 8], strides = [1, 1]} : vector<8x96xf32> to vector<8x8xf32>
    %526 = vector.extract_strided_slice %502 {offsets = [0, 72], sizes = [8, 8], strides = [1, 1]} : vector<8x96xf32> to vector<8x8xf32>
    %527 = tpu.transpose %525, [1, 0] : vector<8x8xf32> -> vector<8x8xf32>
    %cst_187 = arith.constant dense<0.000000e+00> : vector<8x8xf32>
    %528 = tpu.matmul %524, %527, %cst_187 {dimension_numbers = #tpu.dot_dimension_numbers<[1], [0], [0], [1], [0, 0, 1, 1], [], []>} : vector<8x8xf32>, vector<8x8xf32>, vector<8x8xf32> -> vector<8x8xf32>
    %cst_188 = arith.constant 0.353553385 : f32
    %529 = vector.broadcast %cst_188 : f32 to vector<8x8xf32>
    %530 = arith.mulf %528, %529 : vector<8x8xf32>
    %cst_189 = arith.constant dense<0xFF800000> : vector<8xf32>
    %531 = vector.multi_reduction <maximumf>, %530, %cst_189 [1] : vector<8x8xf32> to vector<8xf32>
    %532 = vector.shape_cast %531 : vector<8xf32> to vector<8x1xf32>
    %533 = vector.broadcast %532 : vector<8x1xf32> to vector<8x8xf32>
    %534 = arith.subf %530, %533 : vector<8x8xf32>
    %535 = math.exp %534 : vector<8x8xf32>
    %cst_190 = arith.constant dense<0.000000e+00> : vector<8xf32>
    %536 = vector.multi_reduction <add>, %535, %cst_190 [1] : vector<8x8xf32> to vector<8xf32>
    %537 = vector.shape_cast %536 : vector<8xf32> to vector<8x1xf32>
    %538 = vector.broadcast %537 : vector<8x1xf32> to vector<8x8xf32>
    %539 = arith.divf %535, %538 : vector<8x8xf32>
    %cst_191 = arith.constant dense<0.000000e+00> : vector<8x8xf32>
    %540 = tpu.matmul %539, %526, %cst_191 {dimension_numbers = #tpu.dot_dimension_numbers<[1], [0], [0], [1], [0, 0, 1, 1], [], []>} : vector<8x8xf32>, vector<8x8xf32>, vector<8x8xf32> -> vector<8x8xf32>
    %541 = vector.extract_strided_slice %419 {offsets = [8, 0], sizes = [8, 32], strides = [1, 1]} : vector<32x32xf32> to vector<8x32xf32>
    %cst_192 = arith.constant dense<0.000000e+00> : vector<8x32xf32>
    %542 = tpu.matmul %540, %541, %cst_192 {dimension_numbers = #tpu.dot_dimension_numbers<[1], [0], [0], [1], [0, 0, 1, 1], [], []>} : vector<8x8xf32>, vector<8x32xf32>, vector<8x32xf32> -> vector<8x32xf32>
    %543 = arith.addf %523, %542 : vector<8x32xf32>
    %544 = vector.extract_strided_slice %502 {offsets = [0, 16], sizes = [8, 8], strides = [1, 1]} : vector<8x96xf32> to vector<8x8xf32>
    %545 = vector.extract_strided_slice %502 {offsets = [0, 48], sizes = [8, 8], strides = [1, 1]} : vector<8x96xf32> to vector<8x8xf32>
    %546 = vector.extract_strided_slice %502 {offsets = [0, 80], sizes = [8, 8], strides = [1, 1]} : vector<8x96xf32> to vector<8x8xf32>
    %547 = tpu.transpose %545, [1, 0] : vector<8x8xf32> -> vector<8x8xf32>
    %cst_193 = arith.constant dense<0.000000e+00> : vector<8x8xf32>
    %548 = tpu.matmul %544, %547, %cst_193 {dimension_numbers = #tpu.dot_dimension_numbers<[1], [0], [0], [1], [0, 0, 1, 1], [], []>} : vector<8x8xf32>, vector<8x8xf32>, vector<8x8xf32> -> vector<8x8xf32>
    %cst_194 = arith.constant 0.353553385 : f32
    %549 = vector.broadcast %cst_194 : f32 to vector<8x8xf32>
    %550 = arith.mulf %548, %549 : vector<8x8xf32>
    %cst_195 = arith.constant dense<0xFF800000> : vector<8xf32>
    %551 = vector.multi_reduction <maximumf>, %550, %cst_195 [1] : vector<8x8xf32> to vector<8xf32>
    %552 = vector.shape_cast %551 : vector<8xf32> to vector<8x1xf32>
    %553 = vector.broadcast %552 : vector<8x1xf32> to vector<8x8xf32>
    %554 = arith.subf %550, %553 : vector<8x8xf32>
    %555 = math.exp %554 : vector<8x8xf32>
    %cst_196 = arith.constant dense<0.000000e+00> : vector<8xf32>
    %556 = vector.multi_reduction <add>, %555, %cst_196 [1] : vector<8x8xf32> to vector<8xf32>
    %557 = vector.shape_cast %556 : vector<8xf32> to vector<8x1xf32>
    %558 = vector.broadcast %557 : vector<8x1xf32> to vector<8x8xf32>
    %559 = arith.divf %555, %558 : vector<8x8xf32>
    %cst_197 = arith.constant dense<0.000000e+00> : vector<8x8xf32>
    %560 = tpu.matmul %559, %546, %cst_197 {dimension_numbers = #tpu.dot_dimension_numbers<[1], [0], [0], [1], [0, 0, 1, 1], [], []>} : vector<8x8xf32>, vector<8x8xf32>, vector<8x8xf32> -> vector<8x8xf32>
    %561 = vector.extract_strided_slice %419 {offsets = [16, 0], sizes = [8, 32], strides = [1, 1]} : vector<32x32xf32> to vector<8x32xf32>
    %cst_198 = arith.constant dense<0.000000e+00> : vector<8x32xf32>
    %562 = tpu.matmul %560, %561, %cst_198 {dimension_numbers = #tpu.dot_dimension_numbers<[1], [0], [0], [1], [0, 0, 1, 1], [], []>} : vector<8x8xf32>, vector<8x32xf32>, vector<8x32xf32> -> vector<8x32xf32>
    %563 = arith.addf %543, %562 : vector<8x32xf32>
    %564 = vector.extract_strided_slice %502 {offsets = [0, 24], sizes = [8, 8], strides = [1, 1]} : vector<8x96xf32> to vector<8x8xf32>
    %565 = vector.extract_strided_slice %502 {offsets = [0, 56], sizes = [8, 8], strides = [1, 1]} : vector<8x96xf32> to vector<8x8xf32>
    %566 = vector.extract_strided_slice %502 {offsets = [0, 88], sizes = [8, 8], strides = [1, 1]} : vector<8x96xf32> to vector<8x8xf32>
    %567 = tpu.transpose %565, [1, 0] : vector<8x8xf32> -> vector<8x8xf32>
    %cst_199 = arith.constant dense<0.000000e+00> : vector<8x8xf32>
    %568 = tpu.matmul %564, %567, %cst_199 {dimension_numbers = #tpu.dot_dimension_numbers<[1], [0], [0], [1], [0, 0, 1, 1], [], []>} : vector<8x8xf32>, vector<8x8xf32>, vector<8x8xf32> -> vector<8x8xf32>
    %cst_200 = arith.constant 0.353553385 : f32
    %569 = vector.broadcast %cst_200 : f32 to vector<8x8xf32>
    %570 = arith.mulf %568, %569 : vector<8x8xf32>
    %cst_201 = arith.constant dense<0xFF800000> : vector<8xf32>
    %571 = vector.multi_reduction <maximumf>, %570, %cst_201 [1] : vector<8x8xf32> to vector<8xf32>
    %572 = vector.shape_cast %571 : vector<8xf32> to vector<8x1xf32>
    %573 = vector.broadcast %572 : vector<8x1xf32> to vector<8x8xf32>
    %574 = arith.subf %570, %573 : vector<8x8xf32>
    %575 = math.exp %574 : vector<8x8xf32>
    %cst_202 = arith.constant dense<0.000000e+00> : vector<8xf32>
    %576 = vector.multi_reduction <add>, %575, %cst_202 [1] : vector<8x8xf32> to vector<8xf32>
    %577 = vector.shape_cast %576 : vector<8xf32> to vector<8x1xf32>
    %578 = vector.broadcast %577 : vector<8x1xf32> to vector<8x8xf32>
    %579 = arith.divf %575, %578 : vector<8x8xf32>
    %cst_203 = arith.constant dense<0.000000e+00> : vector<8x8xf32>
    %580 = tpu.matmul %579, %566, %cst_203 {dimension_numbers = #tpu.dot_dimension_numbers<[1], [0], [0], [1], [0, 0, 1, 1], [], []>} : vector<8x8xf32>, vector<8x8xf32>, vector<8x8xf32> -> vector<8x8xf32>
    %581 = vector.extract_strided_slice %419 {offsets = [24, 0], sizes = [8, 32], strides = [1, 1]} : vector<32x32xf32> to vector<8x32xf32>
    %cst_204 = arith.constant dense<0.000000e+00> : vector<8x32xf32>
    %582 = tpu.matmul %580, %581, %cst_204 {dimension_numbers = #tpu.dot_dimension_numbers<[1], [0], [0], [1], [0, 0, 1, 1], [], []>} : vector<8x8xf32>, vector<8x32xf32>, vector<8x32xf32> -> vector<8x32xf32>
    %583 = arith.addf %563, %582 : vector<8x32xf32>
    %584 = vector.extract_strided_slice %417 {offsets = [16, 0], sizes = [8, 96], strides = [1, 1]} : vector<32x96xf32> to vector<8x96xf32>
    %cst_205 = arith.constant 0.000000e+00 : f32
    %585 = vector.broadcast %cst_205 : f32 to vector<8x32xf32>
    %586 = vector.extract_strided_slice %584 {offsets = [0, 0], sizes = [8, 8], strides = [1, 1]} : vector<8x96xf32> to vector<8x8xf32>
    %587 = vector.extract_strided_slice %584 {offsets = [0, 32], sizes = [8, 8], strides = [1, 1]} : vector<8x96xf32> to vector<8x8xf32>
    %588 = vector.extract_strided_slice %584 {offsets = [0, 64], sizes = [8, 8], strides = [1, 1]} : vector<8x96xf32> to vector<8x8xf32>
    %589 = tpu.transpose %587, [1, 0] : vector<8x8xf32> -> vector<8x8xf32>
    %cst_206 = arith.constant dense<0.000000e+00> : vector<8x8xf32>
    %590 = tpu.matmul %586, %589, %cst_206 {dimension_numbers = #tpu.dot_dimension_numbers<[1], [0], [0], [1], [0, 0, 1, 1], [], []>} : vector<8x8xf32>, vector<8x8xf32>, vector<8x8xf32> -> vector<8x8xf32>
    %cst_207 = arith.constant 0.353553385 : f32
    %591 = vector.broadcast %cst_207 : f32 to vector<8x8xf32>
    %592 = arith.mulf %590, %591 : vector<8x8xf32>
    %cst_208 = arith.constant dense<0xFF800000> : vector<8xf32>
    %593 = vector.multi_reduction <maximumf>, %592, %cst_208 [1] : vector<8x8xf32> to vector<8xf32>
    %594 = vector.shape_cast %593 : vector<8xf32> to vector<8x1xf32>
    %595 = vector.broadcast %594 : vector<8x1xf32> to vector<8x8xf32>
    %596 = arith.subf %592, %595 : vector<8x8xf32>
    %597 = math.exp %596 : vector<8x8xf32>
    %cst_209 = arith.constant dense<0.000000e+00> : vector<8xf32>
    %598 = vector.multi_reduction <add>, %597, %cst_209 [1] : vector<8x8xf32> to vector<8xf32>
    %599 = vector.shape_cast %598 : vector<8xf32> to vector<8x1xf32>
    %600 = vector.broadcast %599 : vector<8x1xf32> to vector<8x8xf32>
    %601 = arith.divf %597, %600 : vector<8x8xf32>
    %cst_210 = arith.constant dense<0.000000e+00> : vector<8x8xf32>
    %602 = tpu.matmul %601, %588, %cst_210 {dimension_numbers = #tpu.dot_dimension_numbers<[1], [0], [0], [1], [0, 0, 1, 1], [], []>} : vector<8x8xf32>, vector<8x8xf32>, vector<8x8xf32> -> vector<8x8xf32>
    %603 = vector.extract_strided_slice %419 {offsets = [0, 0], sizes = [8, 32], strides = [1, 1]} : vector<32x32xf32> to vector<8x32xf32>
    %cst_211 = arith.constant dense<0.000000e+00> : vector<8x32xf32>
    %604 = tpu.matmul %602, %603, %cst_211 {dimension_numbers = #tpu.dot_dimension_numbers<[1], [0], [0], [1], [0, 0, 1, 1], [], []>} : vector<8x8xf32>, vector<8x32xf32>, vector<8x32xf32> -> vector<8x32xf32>
    %605 = arith.addf %585, %604 : vector<8x32xf32>
    %606 = vector.extract_strided_slice %584 {offsets = [0, 8], sizes = [8, 8], strides = [1, 1]} : vector<8x96xf32> to vector<8x8xf32>
    %607 = vector.extract_strided_slice %584 {offsets = [0, 40], sizes = [8, 8], strides = [1, 1]} : vector<8x96xf32> to vector<8x8xf32>
    %608 = vector.extract_strided_slice %584 {offsets = [0, 72], sizes = [8, 8], strides = [1, 1]} : vector<8x96xf32> to vector<8x8xf32>
    %609 = tpu.transpose %607, [1, 0] : vector<8x8xf32> -> vector<8x8xf32>
    %cst_212 = arith.constant dense<0.000000e+00> : vector<8x8xf32>
    %610 = tpu.matmul %606, %609, %cst_212 {dimension_numbers = #tpu.dot_dimension_numbers<[1], [0], [0], [1], [0, 0, 1, 1], [], []>} : vector<8x8xf32>, vector<8x8xf32>, vector<8x8xf32> -> vector<8x8xf32>
    %cst_213 = arith.constant 0.353553385 : f32
    %611 = vector.broadcast %cst_213 : f32 to vector<8x8xf32>
    %612 = arith.mulf %610, %611 : vector<8x8xf32>
    %cst_214 = arith.constant dense<0xFF800000> : vector<8xf32>
    %613 = vector.multi_reduction <maximumf>, %612, %cst_214 [1] : vector<8x8xf32> to vector<8xf32>
    %614 = vector.shape_cast %613 : vector<8xf32> to vector<8x1xf32>
    %615 = vector.broadcast %614 : vector<8x1xf32> to vector<8x8xf32>
    %616 = arith.subf %612, %615 : vector<8x8xf32>
    %617 = math.exp %616 : vector<8x8xf32>
    %cst_215 = arith.constant dense<0.000000e+00> : vector<8xf32>
    %618 = vector.multi_reduction <add>, %617, %cst_215 [1] : vector<8x8xf32> to vector<8xf32>
    %619 = vector.shape_cast %618 : vector<8xf32> to vector<8x1xf32>
    %620 = vector.broadcast %619 : vector<8x1xf32> to vector<8x8xf32>
    %621 = arith.divf %617, %620 : vector<8x8xf32>
    %cst_216 = arith.constant dense<0.000000e+00> : vector<8x8xf32>
    %622 = tpu.matmul %621, %608, %cst_216 {dimension_numbers = #tpu.dot_dimension_numbers<[1], [0], [0], [1], [0, 0, 1, 1], [], []>} : vector<8x8xf32>, vector<8x8xf32>, vector<8x8xf32> -> vector<8x8xf32>
    %623 = vector.extract_strided_slice %419 {offsets = [8, 0], sizes = [8, 32], strides = [1, 1]} : vector<32x32xf32> to vector<8x32xf32>
    %cst_217 = arith.constant dense<0.000000e+00> : vector<8x32xf32>
    %624 = tpu.matmul %622, %623, %cst_217 {dimension_numbers = #tpu.dot_dimension_numbers<[1], [0], [0], [1], [0, 0, 1, 1], [], []>} : vector<8x8xf32>, vector<8x32xf32>, vector<8x32xf32> -> vector<8x32xf32>
    %625 = arith.addf %605, %624 : vector<8x32xf32>
    %626 = vector.extract_strided_slice %584 {offsets = [0, 16], sizes = [8, 8], strides = [1, 1]} : vector<8x96xf32> to vector<8x8xf32>
    %627 = vector.extract_strided_slice %584 {offsets = [0, 48], sizes = [8, 8], strides = [1, 1]} : vector<8x96xf32> to vector<8x8xf32>
    %628 = vector.extract_strided_slice %584 {offsets = [0, 80], sizes = [8, 8], strides = [1, 1]} : vector<8x96xf32> to vector<8x8xf32>
    %629 = tpu.transpose %627, [1, 0] : vector<8x8xf32> -> vector<8x8xf32>
    %cst_218 = arith.constant dense<0.000000e+00> : vector<8x8xf32>
    %630 = tpu.matmul %626, %629, %cst_218 {dimension_numbers = #tpu.dot_dimension_numbers<[1], [0], [0], [1], [0, 0, 1, 1], [], []>} : vector<8x8xf32>, vector<8x8xf32>, vector<8x8xf32> -> vector<8x8xf32>
    %cst_219 = arith.constant 0.353553385 : f32
    %631 = vector.broadcast %cst_219 : f32 to vector<8x8xf32>
    %632 = arith.mulf %630, %631 : vector<8x8xf32>
    %cst_220 = arith.constant dense<0xFF800000> : vector<8xf32>
    %633 = vector.multi_reduction <maximumf>, %632, %cst_220 [1] : vector<8x8xf32> to vector<8xf32>
    %634 = vector.shape_cast %633 : vector<8xf32> to vector<8x1xf32>
    %635 = vector.broadcast %634 : vector<8x1xf32> to vector<8x8xf32>
    %636 = arith.subf %632, %635 : vector<8x8xf32>
    %637 = math.exp %636 : vector<8x8xf32>
    %cst_221 = arith.constant dense<0.000000e+00> : vector<8xf32>
    %638 = vector.multi_reduction <add>, %637, %cst_221 [1] : vector<8x8xf32> to vector<8xf32>
    %639 = vector.shape_cast %638 : vector<8xf32> to vector<8x1xf32>
    %640 = vector.broadcast %639 : vector<8x1xf32> to vector<8x8xf32>
    %641 = arith.divf %637, %640 : vector<8x8xf32>
    %cst_222 = arith.constant dense<0.000000e+00> : vector<8x8xf32>
    %642 = tpu.matmul %641, %628, %cst_222 {dimension_numbers = #tpu.dot_dimension_numbers<[1], [0], [0], [1], [0, 0, 1, 1], [], []>} : vector<8x8xf32>, vector<8x8xf32>, vector<8x8xf32> -> vector<8x8xf32>
    %643 = vector.extract_strided_slice %419 {offsets = [16, 0], sizes = [8, 32], strides = [1, 1]} : vector<32x32xf32> to vector<8x32xf32>
    %cst_223 = arith.constant dense<0.000000e+00> : vector<8x32xf32>
    %644 = tpu.matmul %642, %643, %cst_223 {dimension_numbers = #tpu.dot_dimension_numbers<[1], [0], [0], [1], [0, 0, 1, 1], [], []>} : vector<8x8xf32>, vector<8x32xf32>, vector<8x32xf32> -> vector<8x32xf32>
    %645 = arith.addf %625, %644 : vector<8x32xf32>
    %646 = vector.extract_strided_slice %584 {offsets = [0, 24], sizes = [8, 8], strides = [1, 1]} : vector<8x96xf32> to vector<8x8xf32>
    %647 = vector.extract_strided_slice %584 {offsets = [0, 56], sizes = [8, 8], strides = [1, 1]} : vector<8x96xf32> to vector<8x8xf32>
    %648 = vector.extract_strided_slice %584 {offsets = [0, 88], sizes = [8, 8], strides = [1, 1]} : vector<8x96xf32> to vector<8x8xf32>
    %649 = tpu.transpose %647, [1, 0] : vector<8x8xf32> -> vector<8x8xf32>
    %cst_224 = arith.constant dense<0.000000e+00> : vector<8x8xf32>
    %650 = tpu.matmul %646, %649, %cst_224 {dimension_numbers = #tpu.dot_dimension_numbers<[1], [0], [0], [1], [0, 0, 1, 1], [], []>} : vector<8x8xf32>, vector<8x8xf32>, vector<8x8xf32> -> vector<8x8xf32>
    %cst_225 = arith.constant 0.353553385 : f32
    %651 = vector.broadcast %cst_225 : f32 to vector<8x8xf32>
    %652 = arith.mulf %650, %651 : vector<8x8xf32>
    %cst_226 = arith.constant dense<0xFF800000> : vector<8xf32>
    %653 = vector.multi_reduction <maximumf>, %652, %cst_226 [1] : vector<8x8xf32> to vector<8xf32>
    %654 = vector.shape_cast %653 : vector<8xf32> to vector<8x1xf32>
    %655 = vector.broadcast %654 : vector<8x1xf32> to vector<8x8xf32>
    %656 = arith.subf %652, %655 : vector<8x8xf32>
    %657 = math.exp %656 : vector<8x8xf32>
    %cst_227 = arith.constant dense<0.000000e+00> : vector<8xf32>
    %658 = vector.multi_reduction <add>, %657, %cst_227 [1] : vector<8x8xf32> to vector<8xf32>
    %659 = vector.shape_cast %658 : vector<8xf32> to vector<8x1xf32>
    %660 = vector.broadcast %659 : vector<8x1xf32> to vector<8x8xf32>
    %661 = arith.divf %657, %660 : vector<8x8xf32>
    %cst_228 = arith.constant dense<0.000000e+00> : vector<8x8xf32>
    %662 = tpu.matmul %661, %648, %cst_228 {dimension_numbers = #tpu.dot_dimension_numbers<[1], [0], [0], [1], [0, 0, 1, 1], [], []>} : vector<8x8xf32>, vector<8x8xf32>, vector<8x8xf32> -> vector<8x8xf32>
    %663 = vector.extract_strided_slice %419 {offsets = [24, 0], sizes = [8, 32], strides = [1, 1]} : vector<32x32xf32> to vector<8x32xf32>
    %cst_229 = arith.constant dense<0.000000e+00> : vector<8x32xf32>
    %664 = tpu.matmul %662, %663, %cst_229 {dimension_numbers = #tpu.dot_dimension_numbers<[1], [0], [0], [1], [0, 0, 1, 1], [], []>} : vector<8x8xf32>, vector<8x32xf32>, vector<8x32xf32> -> vector<8x32xf32>
    %665 = arith.addf %645, %664 : vector<8x32xf32>
    %666 = vector.extract_strided_slice %417 {offsets = [24, 0], sizes = [8, 96], strides = [1, 1]} : vector<32x96xf32> to vector<8x96xf32>
    %cst_230 = arith.constant 0.000000e+00 : f32
    %667 = vector.broadcast %cst_230 : f32 to vector<8x32xf32>
    %668 = vector.extract_strided_slice %666 {offsets = [0, 0], sizes = [8, 8], strides = [1, 1]} : vector<8x96xf32> to vector<8x8xf32>
    %669 = vector.extract_strided_slice %666 {offsets = [0, 32], sizes = [8, 8], strides = [1, 1]} : vector<8x96xf32> to vector<8x8xf32>
    %670 = vector.extract_strided_slice %666 {offsets = [0, 64], sizes = [8, 8], strides = [1, 1]} : vector<8x96xf32> to vector<8x8xf32>
    %671 = tpu.transpose %669, [1, 0] : vector<8x8xf32> -> vector<8x8xf32>
    %cst_231 = arith.constant dense<0.000000e+00> : vector<8x8xf32>
    %672 = tpu.matmul %668, %671, %cst_231 {dimension_numbers = #tpu.dot_dimension_numbers<[1], [0], [0], [1], [0, 0, 1, 1], [], []>} : vector<8x8xf32>, vector<8x8xf32>, vector<8x8xf32> -> vector<8x8xf32>
    %cst_232 = arith.constant 0.353553385 : f32
    %673 = vector.broadcast %cst_232 : f32 to vector<8x8xf32>
    %674 = arith.mulf %672, %673 : vector<8x8xf32>
    %cst_233 = arith.constant dense<0xFF800000> : vector<8xf32>
    %675 = vector.multi_reduction <maximumf>, %674, %cst_233 [1] : vector<8x8xf32> to vector<8xf32>
    %676 = vector.shape_cast %675 : vector<8xf32> to vector<8x1xf32>
    %677 = vector.broadcast %676 : vector<8x1xf32> to vector<8x8xf32>
    %678 = arith.subf %674, %677 : vector<8x8xf32>
    %679 = math.exp %678 : vector<8x8xf32>
    %cst_234 = arith.constant dense<0.000000e+00> : vector<8xf32>
    %680 = vector.multi_reduction <add>, %679, %cst_234 [1] : vector<8x8xf32> to vector<8xf32>
    %681 = vector.shape_cast %680 : vector<8xf32> to vector<8x1xf32>
    %682 = vector.broadcast %681 : vector<8x1xf32> to vector<8x8xf32>
    %683 = arith.divf %679, %682 : vector<8x8xf32>
    %cst_235 = arith.constant dense<0.000000e+00> : vector<8x8xf32>
    %684 = tpu.matmul %683, %670, %cst_235 {dimension_numbers = #tpu.dot_dimension_numbers<[1], [0], [0], [1], [0, 0, 1, 1], [], []>} : vector<8x8xf32>, vector<8x8xf32>, vector<8x8xf32> -> vector<8x8xf32>
    %685 = vector.extract_strided_slice %419 {offsets = [0, 0], sizes = [8, 32], strides = [1, 1]} : vector<32x32xf32> to vector<8x32xf32>
    %cst_236 = arith.constant dense<0.000000e+00> : vector<8x32xf32>
    %686 = tpu.matmul %684, %685, %cst_236 {dimension_numbers = #tpu.dot_dimension_numbers<[1], [0], [0], [1], [0, 0, 1, 1], [], []>} : vector<8x8xf32>, vector<8x32xf32>, vector<8x32xf32> -> vector<8x32xf32>
    %687 = arith.addf %667, %686 : vector<8x32xf32>
    %688 = vector.extract_strided_slice %666 {offsets = [0, 8], sizes = [8, 8], strides = [1, 1]} : vector<8x96xf32> to vector<8x8xf32>
    %689 = vector.extract_strided_slice %666 {offsets = [0, 40], sizes = [8, 8], strides = [1, 1]} : vector<8x96xf32> to vector<8x8xf32>
    %690 = vector.extract_strided_slice %666 {offsets = [0, 72], sizes = [8, 8], strides = [1, 1]} : vector<8x96xf32> to vector<8x8xf32>
    %691 = tpu.transpose %689, [1, 0] : vector<8x8xf32> -> vector<8x8xf32>
    %cst_237 = arith.constant dense<0.000000e+00> : vector<8x8xf32>
    %692 = tpu.matmul %688, %691, %cst_237 {dimension_numbers = #tpu.dot_dimension_numbers<[1], [0], [0], [1], [0, 0, 1, 1], [], []>} : vector<8x8xf32>, vector<8x8xf32>, vector<8x8xf32> -> vector<8x8xf32>
    %cst_238 = arith.constant 0.353553385 : f32
    %693 = vector.broadcast %cst_238 : f32 to vector<8x8xf32>
    %694 = arith.mulf %692, %693 : vector<8x8xf32>
    %cst_239 = arith.constant dense<0xFF800000> : vector<8xf32>
    %695 = vector.multi_reduction <maximumf>, %694, %cst_239 [1] : vector<8x8xf32> to vector<8xf32>
    %696 = vector.shape_cast %695 : vector<8xf32> to vector<8x1xf32>
    %697 = vector.broadcast %696 : vector<8x1xf32> to vector<8x8xf32>
    %698 = arith.subf %694, %697 : vector<8x8xf32>
    %699 = math.exp %698 : vector<8x8xf32>
    %cst_240 = arith.constant dense<0.000000e+00> : vector<8xf32>
    %700 = vector.multi_reduction <add>, %699, %cst_240 [1] : vector<8x8xf32> to vector<8xf32>
    %701 = vector.shape_cast %700 : vector<8xf32> to vector<8x1xf32>
    %702 = vector.broadcast %701 : vector<8x1xf32> to vector<8x8xf32>
    %703 = arith.divf %699, %702 : vector<8x8xf32>
    %cst_241 = arith.constant dense<0.000000e+00> : vector<8x8xf32>
    %704 = tpu.matmul %703, %690, %cst_241 {dimension_numbers = #tpu.dot_dimension_numbers<[1], [0], [0], [1], [0, 0, 1, 1], [], []>} : vector<8x8xf32>, vector<8x8xf32>, vector<8x8xf32> -> vector<8x8xf32>
    %705 = vector.extract_strided_slice %419 {offsets = [8, 0], sizes = [8, 32], strides = [1, 1]} : vector<32x32xf32> to vector<8x32xf32>
    %cst_242 = arith.constant dense<0.000000e+00> : vector<8x32xf32>
    %706 = tpu.matmul %704, %705, %cst_242 {dimension_numbers = #tpu.dot_dimension_numbers<[1], [0], [0], [1], [0, 0, 1, 1], [], []>} : vector<8x8xf32>, vector<8x32xf32>, vector<8x32xf32> -> vector<8x32xf32>
    %707 = arith.addf %687, %706 : vector<8x32xf32>
    %708 = vector.extract_strided_slice %666 {offsets = [0, 16], sizes = [8, 8], strides = [1, 1]} : vector<8x96xf32> to vector<8x8xf32>
    %709 = vector.extract_strided_slice %666 {offsets = [0, 48], sizes = [8, 8], strides = [1, 1]} : vector<8x96xf32> to vector<8x8xf32>
    %710 = vector.extract_strided_slice %666 {offsets = [0, 80], sizes = [8, 8], strides = [1, 1]} : vector<8x96xf32> to vector<8x8xf32>
    %711 = tpu.transpose %709, [1, 0] : vector<8x8xf32> -> vector<8x8xf32>
    %cst_243 = arith.constant dense<0.000000e+00> : vector<8x8xf32>
    %712 = tpu.matmul %708, %711, %cst_243 {dimension_numbers = #tpu.dot_dimension_numbers<[1], [0], [0], [1], [0, 0, 1, 1], [], []>} : vector<8x8xf32>, vector<8x8xf32>, vector<8x8xf32> -> vector<8x8xf32>
    %cst_244 = arith.constant 0.353553385 : f32
    %713 = vector.broadcast %cst_244 : f32 to vector<8x8xf32>
    %714 = arith.mulf %712, %713 : vector<8x8xf32>
    %cst_245 = arith.constant dense<0xFF800000> : vector<8xf32>
    %715 = vector.multi_reduction <maximumf>, %714, %cst_245 [1] : vector<8x8xf32> to vector<8xf32>
    %716 = vector.shape_cast %715 : vector<8xf32> to vector<8x1xf32>
    %717 = vector.broadcast %716 : vector<8x1xf32> to vector<8x8xf32>
    %718 = arith.subf %714, %717 : vector<8x8xf32>
    %719 = math.exp %718 : vector<8x8xf32>
    %cst_246 = arith.constant dense<0.000000e+00> : vector<8xf32>
    %720 = vector.multi_reduction <add>, %719, %cst_246 [1] : vector<8x8xf32> to vector<8xf32>
    %721 = vector.shape_cast %720 : vector<8xf32> to vector<8x1xf32>
    %722 = vector.broadcast %721 : vector<8x1xf32> to vector<8x8xf32>
    %723 = arith.divf %719, %722 : vector<8x8xf32>
    %cst_247 = arith.constant dense<0.000000e+00> : vector<8x8xf32>
    %724 = tpu.matmul %723, %710, %cst_247 {dimension_numbers = #tpu.dot_dimension_numbers<[1], [0], [0], [1], [0, 0, 1, 1], [], []>} : vector<8x8xf32>, vector<8x8xf32>, vector<8x8xf32> -> vector<8x8xf32>
    %725 = vector.extract_strided_slice %419 {offsets = [16, 0], sizes = [8, 32], strides = [1, 1]} : vector<32x32xf32> to vector<8x32xf32>
    %cst_248 = arith.constant dense<0.000000e+00> : vector<8x32xf32>
    %726 = tpu.matmul %724, %725, %cst_248 {dimension_numbers = #tpu.dot_dimension_numbers<[1], [0], [0], [1], [0, 0, 1, 1], [], []>} : vector<8x8xf32>, vector<8x32xf32>, vector<8x32xf32> -> vector<8x32xf32>
    %727 = arith.addf %707, %726 : vector<8x32xf32>
    %728 = vector.extract_strided_slice %666 {offsets = [0, 24], sizes = [8, 8], strides = [1, 1]} : vector<8x96xf32> to vector<8x8xf32>
    %729 = vector.extract_strided_slice %666 {offsets = [0, 56], sizes = [8, 8], strides = [1, 1]} : vector<8x96xf32> to vector<8x8xf32>
    %730 = vector.extract_strided_slice %666 {offsets = [0, 88], sizes = [8, 8], strides = [1, 1]} : vector<8x96xf32> to vector<8x8xf32>
    %731 = tpu.transpose %729, [1, 0] : vector<8x8xf32> -> vector<8x8xf32>
    %cst_249 = arith.constant dense<0.000000e+00> : vector<8x8xf32>
    %732 = tpu.matmul %728, %731, %cst_249 {dimension_numbers = #tpu.dot_dimension_numbers<[1], [0], [0], [1], [0, 0, 1, 1], [], []>} : vector<8x8xf32>, vector<8x8xf32>, vector<8x8xf32> -> vector<8x8xf32>
    %cst_250 = arith.constant 0.353553385 : f32
    %733 = vector.broadcast %cst_250 : f32 to vector<8x8xf32>
    %734 = arith.mulf %732, %733 : vector<8x8xf32>
    %cst_251 = arith.constant dense<0xFF800000> : vector<8xf32>
    %735 = vector.multi_reduction <maximumf>, %734, %cst_251 [1] : vector<8x8xf32> to vector<8xf32>
    %736 = vector.shape_cast %735 : vector<8xf32> to vector<8x1xf32>
    %737 = vector.broadcast %736 : vector<8x1xf32> to vector<8x8xf32>
    %738 = arith.subf %734, %737 : vector<8x8xf32>
    %739 = math.exp %738 : vector<8x8xf32>
    %cst_252 = arith.constant dense<0.000000e+00> : vector<8xf32>
    %740 = vector.multi_reduction <add>, %739, %cst_252 [1] : vector<8x8xf32> to vector<8xf32>
    %741 = vector.shape_cast %740 : vector<8xf32> to vector<8x1xf32>
    %742 = vector.broadcast %741 : vector<8x1xf32> to vector<8x8xf32>
    %743 = arith.divf %739, %742 : vector<8x8xf32>
    %cst_253 = arith.constant dense<0.000000e+00> : vector<8x8xf32>
    %744 = tpu.matmul %743, %730, %cst_253 {dimension_numbers = #tpu.dot_dimension_numbers<[1], [0], [0], [1], [0, 0, 1, 1], [], []>} : vector<8x8xf32>, vector<8x8xf32>, vector<8x8xf32> -> vector<8x8xf32>
    %745 = vector.extract_strided_slice %419 {offsets = [24, 0], sizes = [8, 32], strides = [1, 1]} : vector<32x32xf32> to vector<8x32xf32>
    %cst_254 = arith.constant dense<0.000000e+00> : vector<8x32xf32>
    %746 = tpu.matmul %744, %745, %cst_254 {dimension_numbers = #tpu.dot_dimension_numbers<[1], [0], [0], [1], [0, 0, 1, 1], [], []>} : vector<8x8xf32>, vector<8x32xf32>, vector<8x32xf32> -> vector<8x32xf32>
    %747 = arith.addf %727, %746 : vector<8x32xf32>
    %748 = tpu.concatenate %501, %583, %665, %747 in 0 : vector<8x32xf32>, vector<8x32xf32>, vector<8x32xf32>, vector<8x32xf32> -> vector<32x32xf32>
    %c1_255 = arith.constant 1 : index
    %c0_256 = arith.constant 0 : index
    %c0_257 = arith.constant 0 : index
    %749 = vector.load %arg5[%c1_255, %c0_256, %c0_257] : memref<2x1x32xf32, #tpu.memory_space<vmem>>, vector<1x1x32xf32>
    %750 = vector.shape_cast %749 : vector<1x1x32xf32> to vector<1x32xf32>
    %751 = vector.broadcast %750 : vector<1x32xf32> to vector<32x32xf32>
    %752 = arith.addf %748, %751 : vector<32x32xf32>
    %c1_258 = arith.constant 1 : index
    %c0_259 = arith.constant 0 : index
    %c0_260 = arith.constant 0 : index
    %753 = vector.load %arg6[%c1_258, %c0_259, %c0_260] : memref<2x2x32xf32, #tpu.memory_space<vmem>>, vector<1x2x32xf32>
    %754 = vector.shape_cast %753 : vector<1x2x32xf32> to vector<2x32xf32>
    %755 = arith.addf %410, %752 : vector<32x32xf32>
    %756 = vector.extract_strided_slice %754 {offsets = [0, 0], sizes = [1, 32], strides = [1, 1]} : vector<2x32xf32> to vector<1x32xf32>
    %757 = vector.extract_strided_slice %754 {offsets = [1, 0], sizes = [1, 32], strides = [1, 1]} : vector<2x32xf32> to vector<1x32xf32>
    %cst_261 = arith.constant dense<0.000000e+00> : vector<32xf32>
    %758 = vector.multi_reduction <add>, %755, %cst_261 [1] : vector<32x32xf32> to vector<32xf32>
    %759 = vector.shape_cast %758 : vector<32xf32> to vector<32x1xf32>
    %cst_262 = arith.constant 3.200000e+01 : f32
    %760 = vector.broadcast %cst_262 : f32 to vector<32x1xf32>
    %761 = arith.divf %759, %760 : vector<32x1xf32>
    %762 = vector.broadcast %761 : vector<32x1xf32> to vector<32x32xf32>
    %763 = arith.subf %755, %762 : vector<32x32xf32>
    %764 = arith.mulf %763, %763 : vector<32x32xf32>
    %cst_263 = arith.constant dense<0.000000e+00> : vector<32xf32>
    %765 = vector.multi_reduction <add>, %764, %cst_263 [1] : vector<32x32xf32> to vector<32xf32>
    %766 = vector.shape_cast %765 : vector<32xf32> to vector<32x1xf32>
    %cst_264 = arith.constant 3.200000e+01 : f32
    %767 = vector.broadcast %cst_264 : f32 to vector<32x1xf32>
    %768 = arith.divf %766, %767 : vector<32x1xf32>
    %cst_265 = arith.constant 9.99999974E-6 : f32
    %769 = vector.broadcast %cst_265 : f32 to vector<32x1xf32>
    %770 = arith.addf %768, %769 : vector<32x1xf32>
    %771 = math.rsqrt %770 : vector<32x1xf32>
    %772 = vector.broadcast %771 : vector<32x1xf32> to vector<32x32xf32>
    %773 = arith.mulf %763, %772 : vector<32x32xf32>
    %774 = vector.broadcast %756 : vector<1x32xf32> to vector<32x32xf32>
    %775 = arith.mulf %773, %774 : vector<32x32xf32>
    %776 = vector.broadcast %757 : vector<1x32xf32> to vector<32x32xf32>
    %777 = arith.addf %775, %776 : vector<32x32xf32>
    %c1_266 = arith.constant 1 : index
    %c0_267 = arith.constant 0 : index
    %c0_268 = arith.constant 0 : index
    %778 = vector.load %arg7[%c1_266, %c0_267, %c0_268] : memref<2x32x64xf32, #tpu.memory_space<vmem>>, vector<1x32x64xf32>
    %779 = vector.shape_cast %778 : vector<1x32x64xf32> to vector<32x64xf32>
    %cst_269 = arith.constant dense<0.000000e+00> : vector<32x64xf32>
    %780 = tpu.matmul %777, %779, %cst_269 {dimension_numbers = #tpu.dot_dimension_numbers<[1], [0], [0], [1], [0, 0, 1, 1], [], []>} : vector<32x32xf32>, vector<32x64xf32>, vector<32x64xf32> -> vector<32x64xf32>
    %c1_270 = arith.constant 1 : index
    %c0_271 = arith.constant 0 : index
    %c0_272 = arith.constant 0 : index
    %781 = vector.load %arg8[%c1_270, %c0_271, %c0_272] : memref<2x1x64xf32, #tpu.memory_space<vmem>>, vector<1x1x64xf32>
    %782 = vector.shape_cast %781 : vector<1x1x64xf32> to vector<1x64xf32>
    %783 = vector.broadcast %782 : vector<1x64xf32> to vector<32x64xf32>
    %784 = arith.addf %780, %783 : vector<32x64xf32>
    %cst_273 = arith.constant 0.000000e+00 : f32
    %785 = vector.broadcast %cst_273 : f32 to vector<32x64xf32>
    %786 = arith.maximumf %784, %785 : vector<32x64xf32>
    %c1_274 = arith.constant 1 : index
    %c0_275 = arith.constant 0 : index
    %c0_276 = arith.constant 0 : index
    %787 = vector.load %arg9[%c1_274, %c0_275, %c0_276] : memref<2x64x32xf32, #tpu.memory_space<vmem>>, vector<1x64x32xf32>
    %788 = vector.shape_cast %787 : vector<1x64x32xf32> to vector<64x32xf32>
    %cst_277 = arith.constant dense<0.000000e+00> : vector<32x32xf32>
    %789 = tpu.matmul %786, %788, %cst_277 {dimension_numbers = #tpu.dot_dimension_numbers<[1], [0], [0], [1], [0, 0, 1, 1], [], []>} : vector<32x64xf32>, vector<64x32xf32>, vector<32x32xf32> -> vector<32x32xf32>
    %c1_278 = arith.constant 1 : index
    %c0_279 = arith.constant 0 : index
    %c0_280 = arith.constant 0 : index
    %790 = vector.load %arg10[%c1_278, %c0_279, %c0_280] : memref<2x1x32xf32, #tpu.memory_space<vmem>>, vector<1x1x32xf32>
    %791 = vector.shape_cast %790 : vector<1x1x32xf32> to vector<1x32xf32>
    %792 = vector.broadcast %791 : vector<1x32xf32> to vector<32x32xf32>
    %793 = arith.addf %789, %792 : vector<32x32xf32>
    %c1_281 = arith.constant 1 : index
    %c0_282 = arith.constant 0 : index
    %c0_283 = arith.constant 0 : index
    %794 = vector.load %arg11[%c1_281, %c0_282, %c0_283] : memref<2x2x32xf32, #tpu.memory_space<vmem>>, vector<1x2x32xf32>
    %795 = vector.shape_cast %794 : vector<1x2x32xf32> to vector<2x32xf32>
    %796 = arith.addf %777, %793 : vector<32x32xf32>
    %797 = vector.extract_strided_slice %795 {offsets = [0, 0], sizes = [1, 32], strides = [1, 1]} : vector<2x32xf32> to vector<1x32xf32>
    %798 = vector.extract_strided_slice %795 {offsets = [1, 0], sizes = [1, 32], strides = [1, 1]} : vector<2x32xf32> to vector<1x32xf32>
    %cst_284 = arith.constant dense<0.000000e+00> : vector<32xf32>
    %799 = vector.multi_reduction <add>, %796, %cst_284 [1] : vector<32x32xf32> to vector<32xf32>
    %800 = vector.shape_cast %799 : vector<32xf32> to vector<32x1xf32>
    %cst_285 = arith.constant 3.200000e+01 : f32
    %801 = vector.broadcast %cst_285 : f32 to vector<32x1xf32>
    %802 = arith.divf %800, %801 : vector<32x1xf32>
    %803 = vector.broadcast %802 : vector<32x1xf32> to vector<32x32xf32>
    %804 = arith.subf %796, %803 : vector<32x32xf32>
    %805 = arith.mulf %804, %804 : vector<32x32xf32>
    %cst_286 = arith.constant dense<0.000000e+00> : vector<32xf32>
    %806 = vector.multi_reduction <add>, %805, %cst_286 [1] : vector<32x32xf32> to vector<32xf32>
    %807 = vector.shape_cast %806 : vector<32xf32> to vector<32x1xf32>
    %cst_287 = arith.constant 3.200000e+01 : f32
    %808 = vector.broadcast %cst_287 : f32 to vector<32x1xf32>
    %809 = arith.divf %807, %808 : vector<32x1xf32>
    %cst_288 = arith.constant 9.99999974E-6 : f32
    %810 = vector.broadcast %cst_288 : f32 to vector<32x1xf32>
    %811 = arith.addf %809, %810 : vector<32x1xf32>
    %812 = math.rsqrt %811 : vector<32x1xf32>
    %813 = vector.broadcast %812 : vector<32x1xf32> to vector<32x32xf32>
    %814 = arith.mulf %804, %813 : vector<32x32xf32>
    %815 = vector.broadcast %797 : vector<1x32xf32> to vector<32x32xf32>
    %816 = arith.mulf %814, %815 : vector<32x32xf32>
    %817 = vector.broadcast %798 : vector<1x32xf32> to vector<32x32xf32>
    %818 = arith.addf %816, %817 : vector<32x32xf32>
    %819 = vector.extract_strided_slice %818 {offsets = [0, 0], sizes = [8, 32], strides = [1, 1]} : vector<32x32xf32> to vector<8x32xf32>
    %cst_289 = arith.constant dense<0xFF800000> : vector<32xf32>
    %820 = vector.multi_reduction <maximumf>, %819, %cst_289 [0] : vector<8x32xf32> to vector<32xf32>
    %821 = vector.shape_cast %820 : vector<32xf32> to vector<1x32xf32>
    %822 = vector.extract_strided_slice %818 {offsets = [8, 0], sizes = [8, 32], strides = [1, 1]} : vector<32x32xf32> to vector<8x32xf32>
    %cst_290 = arith.constant dense<0xFF800000> : vector<32xf32>
    %823 = vector.multi_reduction <maximumf>, %822, %cst_290 [0] : vector<8x32xf32> to vector<32xf32>
    %824 = vector.shape_cast %823 : vector<32xf32> to vector<1x32xf32>
    %825 = vector.extract_strided_slice %818 {offsets = [16, 0], sizes = [8, 32], strides = [1, 1]} : vector<32x32xf32> to vector<8x32xf32>
    %cst_291 = arith.constant dense<0xFF800000> : vector<32xf32>
    %826 = vector.multi_reduction <maximumf>, %825, %cst_291 [0] : vector<8x32xf32> to vector<32xf32>
    %827 = vector.shape_cast %826 : vector<32xf32> to vector<1x32xf32>
    %828 = vector.extract_strided_slice %818 {offsets = [24, 0], sizes = [8, 32], strides = [1, 1]} : vector<32x32xf32> to vector<8x32xf32>
    %cst_292 = arith.constant dense<0xFF800000> : vector<32xf32>
    %829 = vector.multi_reduction <maximumf>, %828, %cst_292 [0] : vector<8x32xf32> to vector<32xf32>
    %830 = vector.shape_cast %829 : vector<32xf32> to vector<1x32xf32>
    %831 = tpu.concatenate %821, %824, %827, %830 in 0 : vector<1x32xf32>, vector<1x32xf32>, vector<1x32xf32>, vector<1x32xf32> -> vector<4x32xf32>
    %c0_293 = arith.constant 0 : index
    %c0_294 = arith.constant 0 : index
    %832 = vector.load %arg12[%c0_293, %c0_294] : memref<32x32xf32, #tpu.memory_space<vmem>>, vector<32x32xf32>
    %cst_295 = arith.constant dense<0.000000e+00> : vector<4x32xf32>
    %833 = tpu.matmul %831, %832, %cst_295 {dimension_numbers = #tpu.dot_dimension_numbers<[1], [0], [0], [1], [0, 0, 1, 1], [], []>} : vector<4x32xf32>, vector<32x32xf32>, vector<4x32xf32> -> vector<4x32xf32>
    %c0_296 = arith.constant 0 : index
    %c0_297 = arith.constant 0 : index
    %834 = vector.load %arg13[%c0_296, %c0_297] : memref<1x32xf32, #tpu.memory_space<vmem>>, vector<1x32xf32>
    %835 = vector.broadcast %834 : vector<1x32xf32> to vector<4x32xf32>
    %836 = arith.addf %833, %835 : vector<4x32xf32>
    %837 = vector.extract_strided_slice %836 {offsets = [0, 0], sizes = [2, 32], strides = [1, 1]} : vector<4x32xf32> to vector<2x32xf32>
    %838 = vector.extract_strided_slice %836 {offsets = [2, 0], sizes = [2, 32], strides = [1, 1]} : vector<4x32xf32> to vector<2x32xf32>
    %c0_298 = arith.constant 0 : index
    %c0_299 = arith.constant 0 : index
    %839 = vector.load %arg14[%c0_298, %c0_299] : memref<64x32xf32, #tpu.memory_space<vmem>>, vector<32x32xf32>
    %cst_300 = arith.constant dense<0.000000e+00> : vector<2x32xf32>
    %840 = tpu.matmul %837, %839, %cst_300 {dimension_numbers = #tpu.dot_dimension_numbers<[1], [0], [0], [1], [0, 0, 1, 1], [], []>} : vector<2x32xf32>, vector<32x32xf32>, vector<2x32xf32> -> vector<2x32xf32>
    %c32 = arith.constant 32 : index
    %c0_301 = arith.constant 0 : index
    %841 = vector.load %arg14[%c32, %c0_301] : memref<64x32xf32, #tpu.memory_space<vmem>>, vector<32x32xf32>
    %cst_302 = arith.constant dense<0.000000e+00> : vector<2x32xf32>
    %842 = tpu.matmul %838, %841, %cst_302 {dimension_numbers = #tpu.dot_dimension_numbers<[1], [0], [0], [1], [0, 0, 1, 1], [], []>} : vector<2x32xf32>, vector<32x32xf32>, vector<2x32xf32> -> vector<2x32xf32>
    %843 = arith.addf %840, %842 : vector<2x32xf32>
    %c0_303 = arith.constant 0 : index
    %c0_304 = arith.constant 0 : index
    %844 = vector.load %arg15[%c0_303, %c0_304] : memref<1x32xf32, #tpu.memory_space<vmem>>, vector<1x32xf32>
    %845 = vector.broadcast %844 : vector<1x32xf32> to vector<2x32xf32>
    %846 = arith.addf %843, %845 : vector<2x32xf32>
    %cst_305 = arith.constant 0.000000e+00 : f32
    %847 = vector.broadcast %cst_305 : f32 to vector<2x32xf32>
    %848 = arith.maximumf %846, %847 : vector<2x32xf32>
    %c0_306 = arith.constant 0 : index
    %c0_307 = arith.constant 0 : index
    %849 = vector.load %arg16[%c0_306, %c0_307] : memref<32x32xf32, #tpu.memory_space<vmem>>, vector<32x32xf32>
    %cst_308 = arith.constant dense<0.000000e+00> : vector<2x32xf32>
    %850 = tpu.matmul %848, %849, %cst_308 {dimension_numbers = #tpu.dot_dimension_numbers<[1], [0], [0], [1], [0, 0, 1, 1], [], []>} : vector<2x32xf32>, vector<32x32xf32>, vector<2x32xf32> -> vector<2x32xf32>
    %c0_309 = arith.constant 0 : index
    %c0_310 = arith.constant 0 : index
    %851 = vector.load %arg17[%c0_309, %c0_310] : memref<1x32xf32, #tpu.memory_space<vmem>>, vector<1x32xf32>
    %852 = vector.broadcast %851 : vector<1x32xf32> to vector<2x32xf32>
    %853 = arith.addf %850, %852 : vector<2x32xf32>
    %cst_311 = arith.constant 0.000000e+00 : f32
    %854 = vector.broadcast %cst_311 : f32 to vector<2x32xf32>
    %855 = arith.maximumf %853, %854 : vector<2x32xf32>
    %c0_312 = arith.constant 0 : index
    %c0_313 = arith.constant 0 : index
    %856 = vector.load %arg18[%c0_312, %c0_313] : memref<32x1xf32, #tpu.memory_space<vmem>>, vector<32x1xf32>
    %cst_314 = arith.constant dense<0.000000e+00> : vector<2x1xf32>
    %857 = tpu.matmul %855, %856, %cst_314 {dimension_numbers = #tpu.dot_dimension_numbers<[1], [0], [0], [1], [0, 0, 1, 1], [], []>} : vector<2x32xf32>, vector<32x1xf32>, vector<2x1xf32> -> vector<2x1xf32>
    %c0_315 = arith.constant 0 : index
    %c0_316 = arith.constant 0 : index
    %858 = vector.load %arg19[%c0_315, %c0_316] : memref<1x1xf32, #tpu.memory_space<vmem>>, vector<1x1xf32>
    %859 = vector.broadcast %858 : vector<1x1xf32> to vector<2x1xf32>
    %860 = arith.addf %857, %859 : vector<2x1xf32>
    %861 = arith.negf %860 : vector<2x1xf32>
    %862 = math.exp %861 : vector<2x1xf32>
    %cst_317 = arith.constant 1.000000e+00 : f32
    %863 = vector.broadcast %cst_317 : f32 to vector<2x1xf32>
    %864 = arith.addf %863, %862 : vector<2x1xf32>
    %865 = arith.divf %863, %864 : vector<2x1xf32>
    %c0_318 = arith.constant 0 : index
    %c0_319 = arith.constant 0 : index
    %866 = vector.load %arg20[%c0_318, %c0_319] : memref<2x1xf32, #tpu.memory_space<vmem>>, vector<2x1xf32>
    tpu.vector_store %arg20[%c0_318, %c0_319], %865 {strides = array<i32>} : memref<2x1xf32, #tpu.memory_space<vmem>>, vector<2x1xf32>,
    return
  }
}

</mosaic_0001>

<llo_original>
// kernel: siamese_forward.1
$region0: #{siamese_forward.1}
  #allocation0 [shape = 'u32[]', space=smem, size = 0x4, offset = 0x4, fixed_abs, tag = 'smem constant byte address 0x4 - core index']
  #allocation1 [shape = 'u32[72,128]{1,0:T(1,128)}', space=vmem, size = 0x9000, scoped, tag = 'internal scratch']
  #allocation2 [shape = 'f32[1,1]{1,0:T(1,128)S(1)}', space=vmem, size = 0x200, scoped, tag = 'scoped memory for siamese_forward.1']
  %s0 = inlined_call_operand.vmem [shape: f32[32,32], index: 0, kind: input, shape index: {}]
  %s1 = inlined_call_operand.vmem [shape: f32[32,32], index: 1, kind: input, shape index: {}]
  %s2 = inlined_call_operand.vmem [shape: f32[2,32,96], index: 2, kind: input, shape index: {}]
  %s3 = inlined_call_operand.vmem [shape: f32[2,1,96], index: 3, kind: input, shape index: {}]
  %s4 = inlined_call_operand.vmem [shape: f32[2,32,32], index: 4, kind: input, shape index: {}]
  %s5 = inlined_call_operand.vmem [shape: f32[2,1,32], index: 5, kind: input, shape index: {}]
  %s6 = inlined_call_operand.vmem [shape: f32[2,2,32], index: 6, kind: input, shape index: {}]
  %s7 = inlined_call_operand.vmem [shape: f32[2,32,64], index: 7, kind: input, shape index: {}]
  %s8 = inlined_call_operand.vmem [shape: f32[2,1,64], index: 8, kind: input, shape index: {}]
  %s9 = inlined_call_operand.vmem [shape: f32[2,64,32], index: 9, kind: input, shape index: {}]
  %s10 = inlined_call_operand.vmem [shape: f32[2,1,32], index: 10, kind: input, shape index: {}]
  %s11 = inlined_call_operand.vmem [shape: f32[2,2,32], index: 11, kind: input, shape index: {}]
  %s12 = inlined_call_operand.vmem [shape: f32[32,32], index: 12, kind: input, shape index: {}]
  %s13 = inlined_call_operand.vmem [shape: f32[1,32], index: 13, kind: input, shape index: {}]
  %s14 = inlined_call_operand.vmem [shape: f32[64,32], index: 14, kind: input, shape index: {}]
  %s15 = inlined_call_operand.vmem [shape: f32[1,32], index: 15, kind: input, shape index: {}]
  %s16 = inlined_call_operand.vmem [shape: f32[32,32], index: 16, kind: input, shape index: {}]
  %s17 = inlined_call_operand.vmem [shape: f32[1,32], index: 17, kind: input, shape index: {}]
  %s18 = inlined_call_operand.vmem [shape: f32[32,1], index: 18, kind: input, shape index: {}]
  %s19 = inlined_call_operand.<no memory space> [shape: f32[1,1], index: 19, kind: input, shape index: {}]
  %s20 = inlined_call_operand.vmem [shape: f32[2,1], index: 20, kind: output, shape index: {}]
  %s21 = sld [smem:[#allocation0]]
  $region90: #{siamese_forward.1} parent=0
    _
  %s23 = ssub.s32 1, %s21
  %s24 = scalar_select 0, %s23, %s21
  %v25 = vstv %s19
  %26 = vst [vmem:[#allocation2] sm:$0x1] %v25
  // Predicated region
  $region2: #{siamese_forward.1} parent=0 // pred_check
    _
  $region3: #{siamese_forward.1} parent=0 // pred_check_branch
    %28 = sbr.rel (0) target = $region5
  $region4: #{siamese_forward.1} parent=0 // pred_region
    _
  $region5: #{siamese_forward.1} parent=0 // pred_fallthru
    _
  // Predicated region
  $region6: #{siamese_forward.1} parent=0 // pred_check
    _
  $region7: #{siamese_forward.1} parent=0 // pred_check_branch
    %30 = sbr.rel (0) target = $region9
  $region8: #{siamese_forward.1} parent=0 // pred_region
    _
  $region9: #{siamese_forward.1} parent=0 // pred_fallthru
    _
  // Predicated region
  $region10: #{siamese_forward.1} parent=0 // pred_check
    _
  $region11: #{siamese_forward.1} parent=0 // pred_check_branch
    %32 = sbr.rel (0) target = $region13
  $region12: #{siamese_forward.1} parent=0 // pred_region
    _
  $region13: #{siamese_forward.1} parent=0 // pred_fallthru
    _
  // Predicated region
  $region14: #{siamese_forward.1} parent=0 // pred_check
    _
  $region15: #{siamese_forward.1} parent=0 // pred_check_branch
    %34 = sbr.rel (0) target = $region17
  $region16: #{siamese_forward.1} parent=0 // pred_region
    _
  $region17: #{siamese_forward.1} parent=0 // pred_fallthru
    _
  // Predicated region
  $region18: #{siamese_forward.1} parent=0 // pred_check
    _
  $region19: #{siamese_forward.1} parent=0 // pred_check_branch
    %36 = sbr.rel (0) target = $region21
  $region20: #{siamese_forward.1} parent=0 // pred_region
    _
  $region21: #{siamese_forward.1} parent=0 // pred_fallthru
    _
  // Predicated region
  $region22: #{siamese_forward.1} parent=0 // pred_check
    _
  $region23: #{siamese_forward.1} parent=0 // pred_check_branch
    %38 = sbr.rel (0) target = $region25
  $region24: #{siamese_forward.1} parent=0 // pred_region
    _
  $region25: #{siamese_forward.1} parent=0 // pred_fallthru
    _
  // Predicated region
  $region26: #{siamese_forward.1} parent=0 // pred_check
    _
  $region27: #{siamese_forward.1} parent=0 // pred_check_branch
    %40 = sbr.rel (0) target = $region29
  $region28: #{siamese_forward.1} parent=0 // pred_region
    _
  $region29: #{siamese_forward.1} parent=0 // pred_fallthru
    _
  // Predicated region
  $region30: #{siamese_forward.1} parent=0 // pred_check
    _
  $region31: #{siamese_forward.1} parent=0 // pred_check_branch
    %42 = sbr.rel (0) target = $region33
  $region32: #{siamese_forward.1} parent=0 // pred_region
    _
  $region33: #{siamese_forward.1} parent=0 // pred_fallthru
    _
  // Predicated region
  $region34: #{siamese_forward.1} parent=0 // pred_check
    _
  $region35: #{siamese_forward.1} parent=0 // pred_check_branch
    %44 = sbr.rel (0) target = $region37
  $region36: #{siamese_forward.1} parent=0 // pred_region
    _
  $region37: #{siamese_forward.1} parent=0 // pred_fallthru
    _
  // Predicated region
  $region38: #{siamese_forward.1} parent=0 // pred_check
    _
  $region39: #{siamese_forward.1} parent=0 // pred_check_branch
    %46 = sbr.rel (0) target = $region41
  $region40: #{siamese_forward.1} parent=0 // pred_region
    _
  $region41: #{siamese_forward.1} parent=0 // pred_fallthru
    _
  // Predicated region
  $region42: #{siamese_forward.1} parent=0 // pred_check
    _
  $region43: #{siamese_forward.1} parent=0 // pred_check_branch
    %48 = sbr.rel (0) target = $region45
  $region44: #{siamese_forward.1} parent=0 // pred_region
    _
  $region45: #{siamese_forward.1} parent=0 // pred_fallthru
    _
  // Predicated region
  $region46: #{siamese_forward.1} parent=0 // pred_check
    _
  $region47: #{siamese_forward.1} parent=0 // pred_check_branch
    %50 = sbr.rel (0) target = $region49
  $region48: #{siamese_forward.1} parent=0 // pred_region
    _
  $region49: #{siamese_forward.1} parent=0 // pred_fallthru
    _
  // Predicated region
  $region50: #{siamese_forward.1} parent=0 // pred_check
    _
  $region51: #{siamese_forward.1} parent=0 // pred_check_branch
    %52 = sbr.rel (0) target = $region53
  $region52: #{siamese_forward.1} parent=0 // pred_region
    _
  $region53: #{siamese_forward.1} parent=0 // pred_fallthru
    _
  // Predicated region
  $region54: #{siamese_forward.1} parent=0 // pred_check
    _
  $region55: #{siamese_forward.1} parent=0 // pred_check_branch
    %54 = sbr.rel (0) target = $region57
  $region56: #{siamese_forward.1} parent=0 // pred_region
    _
  $region57: #{siamese_forward.1} parent=0 // pred_fallthru
    _
  // Predicated region
  $region58: #{siamese_forward.1} parent=0 // pred_check
    _
  $region59: #{siamese_forward.1} parent=0 // pred_check_branch
    %56 = sbr.rel (0) target = $region61
  $region60: #{siamese_forward.1} parent=0 // pred_region
    _
  $region61: #{siamese_forward.1} parent=0 // pred_fallthru
    _
  // Predicated region
  $region62: #{siamese_forward.1} parent=0 // pred_check
    _
  $region63: #{siamese_forward.1} parent=0 // pred_check_branch
    %58 = sbr.rel (0) target = $region65
  $region64: #{siamese_forward.1} parent=0 // pred_region
    _
  $region65: #{siamese_forward.1} parent=0 // pred_fallthru
    _
  // Predicated region
  $region66: #{siamese_forward.1} parent=0 // pred_check
    _
  $region67: #{siamese_forward.1} parent=0 // pred_check_branch
    %60 = sbr.rel (0) target = $region69
  $region68: #{siamese_forward.1} parent=0 // pred_region
    _
  $region69: #{siamese_forward.1} parent=0 // pred_fallthru
    _
  // Predicated region
  $region70: #{siamese_forward.1} parent=0 // pred_check
    _
  $region71: #{siamese_forward.1} parent=0 // pred_check_branch
    %62 = sbr.rel (0) target = $region73
  $region72: #{siamese_forward.1} parent=0 // pred_region
    _
  $region73: #{siamese_forward.1} parent=0 // pred_fallthru
    _
  // Predicated region
  $region74: #{siamese_forward.1} parent=0 // pred_check
    _
  $region75: #{siamese_forward.1} parent=0 // pred_check_branch
    %64 = sbr.rel (0) target = $region77
  $region76: #{siamese_forward.1} parent=0 // pred_region
    _
  $region77: #{siamese_forward.1} parent=0 // pred_fallthru
    _
  // Predicated region
  $region78: #{siamese_forward.1} parent=0 // pred_check
    _
  $region79: #{siamese_forward.1} parent=0 // pred_check_branch
    %66 = sbr.rel (0) target = $region81
  $region80: #{siamese_forward.1} parent=0 // pred_region
    _
  $region81: #{siamese_forward.1} parent=0 // pred_fallthru
    _
  %v67 = vld [vmem:[%s0] sm:$0xff]
  %v68 = vld [vmem:[%s0 + $0x8] sm:$0xff]
  %v69 = vld [vmem:[%s0 + $0x10] sm:$0xff]
  %v70 = vld [vmem:[%s0 + $0x18] sm:$0xff]
  %v71 = vld [vmem:[%s1] sm:$0xff]
  %v72 = vld [vmem:[%s1 + $0x8] sm:$0xff]
  %v73 = vld [vmem:[%s1 + $0x10] sm:$0xff]
  %v74 = vld [vmem:[%s1 + $0x18] sm:$0xff]
  %v75 = vadd.f32 %v67, %v71
  %v76 = vadd.f32 %v68, %v72
  %v77 = vadd.f32 %v69, %v73
  %v78 = vadd.f32 %v70, %v74
  %v79 = vld [vmem:[%s2] sm:$0xff]
  %v80 = vld [vmem:[%s2 + $0x8] sm:$0xff]
  %v81 = vld [vmem:[%s2 + $0x10] sm:$0xff]
  %v82 = vld [vmem:[%s2 + $0x18] sm:$0xff]
  %v83 = vld [vmem:[%s3] sm:$0x1]
  %v85 = vperm.slane %v83, 0
  %vm87 = vcmask 261120
  %v89 = vsel %vm87, %v75, 0
  %v92 = vsel %vm87, %v76, 0
  %v95 = vsel %vm87, %v77, 0
  %v98 = vsel %vm87, %v78, 0
  %100 = vmatpush.msra.mxu0 0.0
  %101 = vmatpush.msra.mxu0 0.0
  %102 = vmatpush.msra.mxu0 0.0
  %103 = vmatpush.msra.mxu0 0.0
  %104 = vmatpush.msra.mxu0 0.0
  %105 = vmatpush.msra.mxu0 0.0
  %106 = vmatpush.msra.mxu0 0.0
  %107 = vmatpush.msra.mxu0 0.0
  %108 = vmatpush.msra.mxu0 0.0
  %109 = vmatpush.msra.mxu0 0.0
  %110 = vmatpush.msra.mxu0 0.0
  %111 = vmatpush.msra.mxu0 0.0
  %112 = vmatpush.msra.mxu0 %v82
  %113 = vmatpush.msra.mxu0 %v81
  %114 = vmatpush.msra.mxu0 %v80
  %115 = vmatpush.msra.mxu0 %v79
  %116 = vmatmul.f32.gmra.mxu0 %v89
  %v117 = vpop.f32.mrf.mxu0
  %v118 = vadd.f32 %v85, %v117
  %119 = vmatmul.f32.gmra.mxu0 %v92
  %v120 = vpop.f32.mrf.mxu0
  %v121 = vadd.f32 %v85, %v120
  %122 = vmatmul.f32.gmra.mxu0 %v95
  %v123 = vpop.f32.mrf.mxu0
  %v124 = vadd.f32 %v85, %v123
  %125 = vmatmul.f32.gmra.mxu0 %v98
  %v126 = vpop.f32.mrf.mxu0
  %v127 = vadd.f32 %v85, %v126
  %128 = vdwg.mxu0
  %v129 = vld [vmem:[%s4] sm:$0xff]
  %v130 = vld [vmem:[%s4 + $0x8] sm:$0xff]
  %v131 = vld [vmem:[%s4 + $0x10] sm:$0xff]
  %v132 = vld [vmem:[%s4 + $0x18] sm:$0xff]
  %134 = vrot.lane.b32.xlu0 %v118, 96
  %v135 = vpop.permute.xlu0 %134
  %vm136 = vcmask 64512
  %v137 = vsel %vm136, %v118, 0
  %v139 = vsel %vm136, %v135, 0
  %141 = vmatpush.xpose.msra.mxu0 0.0
  %142 = vmatpush.xpose.msra.mxu0 0.0
  %143 = vmatpush.xpose.msra.mxu0 0.0
  %144 = vmatpush.xpose.msra.mxu0 0.0
  %145 = vmatpush.xpose.msra.mxu0 0.0
  %146 = vmatpush.xpose.msra.mxu0 0.0
  %147 = vmatpush.xpose.msra.mxu0 0.0
  %148 = vmatpush.xpose.msra.mxu0 0.0
  %149 = vmatpush.xpose.msra.mxu0 0.0
  %150 = vmatpush.xpose.msra.mxu0 0.0
  %151 = vmatpush.xpose.msra.mxu0 0.0
  %152 = vmatpush.xpose.msra.mxu0 0.0
  %153 = vmatpush.xpose.msra.mxu0 0.0
  %154 = vmatpush.xpose.msra.mxu0 0.0
  %155 = vmatpush.xpose.msra.mxu0 0.0
  %156 = vmatpush.xpose.msra.mxu0 %v139
  %157 = vmatmul.f32.gmra.mxu0 %v137
  %v158 = vpop.f32.mrf.mxu0
  %v159 = vadd.f32 0.0, %v158
  %160 = vdwg.mxu0
  %v161 = vmul.f32 %v159, 0.35355338
  %v162 = vsel %vm136, %v161, -inf
  %163 = vmax.xlane.f32.xlu0 %v162
  %v164 = vpop.xlane.xlu0 %163
  %v165 = vsub.f32 %v161, %v164
  %v166 = vmul.f32 %v165, 1.442695
  %v167 = vpow.pop %v166
  %v168 = vsel %vm136, %v167, 0.0
  %169 = vadd.xlane.f32.xlu0 %v168
  %v170 = vpop.xlane.xlu0 %169
  %v171 = vrcp.pop %v170
  %v172 = vmul.f32 %v170, %v171
  %v173 = vsub.f32 1.0, %v172
  %v174 = vmul.f32 %v171, %v173
  %v175 = vadd.f32 %v171, %v174
  %vm176 = vweird.f32 %v170
  %vm177 = vweird.f32 %v171
  %vm178 = vmor %vm176, %vm177
  %v179 = vsel %vm178, %v171, %v175
  %v180 = vand.u32 2147483647, %v170
  %vm181 = vcmp.eq.f32.partialorder %v180, 8.507059e+37
  %v182 = vand.u32 %v170, 2147483648
  %v183 = vor.u32 1.1754944e-38, %v182
  %v184 = vsel %vm181, %v183, %v179
  %v185 = vmul.f32 %v167, %v184
  %186 = vrot.lane.b32.xlu0 %v118, 64
  %v187 = vpop.permute.xlu0 %186
  %v190 = vsel %vm136, %v185, 0
  %192 = vmatpush.msra.mxu0 0.0
  %193 = vmatpush.msra.mxu0 0.0
  %194 = vmatpush.msra.mxu0 0.0
  %195 = vmatpush.msra.mxu0 0.0
  %196 = vmatpush.msra.mxu0 0.0
  %197 = vmatpush.msra.mxu0 0.0
  %198 = vmatpush.msra.mxu0 0.0
  %199 = vmatpush.msra.mxu0 0.0
  %200 = vmatpush.msra.mxu0 0.0
  %201 = vmatpush.msra.mxu0 0.0
  %202 = vmatpush.msra.mxu0 0.0
  %203 = vmatpush.msra.mxu0 0.0
  %204 = vmatpush.msra.mxu0 0.0
  %205 = vmatpush.msra.mxu0 0.0
  %206 = vmatpush.msra.mxu0 0.0
  %207 = vmatpush.msra.mxu0 %v187
  %208 = vmatmul.f32.gmra.mxu0 %v190
  %v209 = vpop.f32.mrf.mxu0
  %v210 = vadd.f32 0.0, %v209
  %211 = vdwg.mxu0
  %212 = vrot.lane.b32.xlu0 %v118, 120
  %v213 = vpop.permute.xlu0 %212
  %214 = vrot.lane.b32.xlu0 %v118, 88
  %v215 = vpop.permute.xlu0 %214
  %v216 = vsel %vm136, %v213, 0
  %v218 = vsel %vm136, %v215, 0
  %220 = vmatpush.xpose.msra.mxu0 0.0
  %221 = vmatpush.xpose.msra.mxu0 0.0
  %222 = vmatpush.xpose.msra.mxu0 0.0
  %223 = vmatpush.xpose.msra.mxu0 0.0
  %224 = vmatpush.xpose.msra.mxu0 0.0
  %225 = vmatpush.xpose.msra.mxu0 0.0
  %226 = vmatpush.xpose.msra.mxu0 0.0
  %227 = vmatpush.xpose.msra.mxu0 0.0
  %228 = vmatpush.xpose.msra.mxu0 0.0
  %229 = vmatpush.xpose.msra.mxu0 0.0
  %230 = vmatpush.xpose.msra.mxu0 0.0
  %231 = vmatpush.xpose.msra.mxu0 0.0
  %232 = vmatpush.xpose.msra.mxu0 0.0
  %233 = vmatpush.xpose.msra.mxu0 0.0
  %234 = vmatpush.xpose.msra.mxu0 0.0
  %235 = vmatpush.xpose.msra.mxu0 %v218
  %236 = vmatmul.f32.gmra.mxu0 %v216
  %v237 = vpop.f32.mrf.mxu0
  %v238 = vadd.f32 0.0, %v237
  %239 = vdwg.mxu0
  %v240 = vmul.f32 %v238, 0.35355338
  %v241 = vsel %vm136, %v240, -inf
  %242 = vmax.xlane.f32.xlu0 %v241
  %v243 = vpop.xlane.xlu0 %242
  %v244 = vsub.f32 %v240, %v243
  %v245 = vmul.f32 %v244, 1.442695
  %v246 = vpow.pop %v245
  %v247 = vsel %vm136, %v246, 0.0
  %248 = vadd.xlane.f32.xlu0 %v247
  %v249 = vpop.xlane.xlu0 %248
  %v250 = vrcp.pop %v249
  %v251 = vmul.f32 %v249, %v250
  %v252 = vsub.f32 1.0, %v251
  %v253 = vmul.f32 %v250, %v252
  %v254 = vadd.f32 %v250, %v253
  %vm255 = vweird.f32 %v249
  %vm256 = vweird.f32 %v250
  %vm257 = vmor %vm255, %vm256
  %v258 = vsel %vm257, %v250, %v254
  %v259 = vand.u32 2147483647, %v249
  %vm260 = vcmp.eq.f32.partialorder %v259, 8.507059e+37
  %v261 = vand.u32 %v249, 2147483648
  %v262 = vor.u32 1.1754944e-38, %v261
  %v263 = vsel %vm260, %v262, %v258
  %v264 = vmul.f32 %v246, %v263
  %265 = vrot.lane.b32.xlu0 %v118, 56
  %v266 = vpop.permute.xlu0 %265
  %v269 = vsel %vm136, %v264, 0
  %271 = vmatpush.msra.mxu0 0.0
  %272 = vmatpush.msra.mxu0 0.0
  %273 = vmatpush.msra.mxu0 0.0
  %274 = vmatpush.msra.mxu0 0.0
  %275 = vmatpush.msra.mxu0 0.0
  %276 = vmatpush.msra.mxu0 0.0
  %277 = vmatpush.msra.mxu0 0.0
  %278 = vmatpush.msra.mxu0 0.0
  %279 = vmatpush.msra.mxu0 0.0
  %280 = vmatpush.msra.mxu0 0.0
  %281 = vmatpush.msra.mxu0 0.0
  %282 = vmatpush.msra.mxu0 0.0
  %283 = vmatpush.msra.mxu0 0.0
  %284 = vmatpush.msra.mxu0 0.0
  %285 = vmatpush.msra.mxu0 0.0
  %286 = vmatpush.msra.mxu0 %v266
  %287 = vmatmul.f32.gmra.mxu0 %v269
  %v288 = vpop.f32.mrf.mxu0
  %v289 = vadd.f32 0.0, %v288
  %290 = vdwg.mxu0
  %v292 = vsel %vm136, %v289, 0
  %294 = vmatpush.msra.mxu0 0.0
  %295 = vmatpush.msra.mxu0 0.0
  %296 = vmatpush.msra.mxu0 0.0
  %297 = vmatpush.msra.mxu0 0.0
  %298 = vmatpush.msra.mxu0 0.0
  %299 = vmatpush.msra.mxu0 0.0
  %300 = vmatpush.msra.mxu0 0.0
  %301 = vmatpush.msra.mxu0 0.0
  %302 = vmatpush.msra.mxu0 0.0
  %303 = vmatpush.msra.mxu0 0.0
  %304 = vmatpush.msra.mxu0 0.0
  %305 = vmatpush.msra.mxu0 0.0
  %306 = vmatpush.msra.mxu0 0.0
  %307 = vmatpush.msra.mxu0 0.0
  %308 = vmatpush.msra.mxu0 0.0
  %309 = vmatpush.msra.mxu0 %v130
  %310 = vmatmul.f32.gmra.mxu0 %v292
  %v311 = vpop.f32.mrf.mxu0
  %v312 = vadd.f32 0.0, %v311
  %313 = vdwg.mxu0
  %v315 = vsel %vm136, %v210, 0
  %317 = vmatpush.msra.mxu0 0.0
  %318 = vmatpush.msra.mxu0 0.0
  %319 = vmatpush.msra.mxu0 0.0
  %320 = vmatpush.msra.mxu0 0.0
  %321 = vmatpush.msra.mxu0 0.0
  %322 = vmatpush.msra.mxu0 0.0
  %323 = vmatpush.msra.mxu0 0.0
  %324 = vmatpush.msra.mxu0 0.0
  %325 = vmatpush.msra.mxu0 0.0
  %326 = vmatpush.msra.mxu0 0.0
  %327 = vmatpush.msra.mxu0 0.0
  %328 = vmatpush.msra.mxu0 0.0
  %329 = vmatpush.msra.mxu0 0.0
  %330 = vmatpush.msra.mxu0 0.0
  %331 = vmatpush.msra.mxu0 0.0
  %332 = vmatpush.msra.mxu0 %v129
  %333 = vmatmul.f32.gmra.mxu0 %v315
  %v334 = vpop.f32.mrf.mxu0
  %v335 = vadd.f32 %v312, %v334
  %336 = vdwg.mxu0
  %337 = vrot.lane.b32.xlu0 %v118, 112
  %v338 = vpop.permute.xlu0 %337
  %339 = vrot.lane.b32.xlu0 %v118, 80
  %v340 = vpop.permute.xlu0 %339
  %v341 = vsel %vm136, %v338, 0
  %v343 = vsel %vm136, %v340, 0
  %345 = vmatpush.xpose.msra.mxu0 0.0
  %346 = vmatpush.xpose.msra.mxu0 0.0
  %347 = vmatpush.xpose.msra.mxu0 0.0
  %348 = vmatpush.xpose.msra.mxu0 0.0
  %349 = vmatpush.xpose.msra.mxu0 0.0
  %350 = vmatpush.xpose.msra.mxu0 0.0
  %351 = vmatpush.xpose.msra.mxu0 0.0
  %352 = vmatpush.xpose.msra.mxu0 0.0
  %353 = vmatpush.xpose.msra.mxu0 0.0
  %354 = vmatpush.xpose.msra.mxu0 0.0
  %355 = vmatpush.xpose.msra.mxu0 0.0
  %356 = vmatpush.xpose.msra.mxu0 0.0
  %357 = vmatpush.xpose.msra.mxu0 0.0
  %358 = vmatpush.xpose.msra.mxu0 0.0
  %359 = vmatpush.xpose.msra.mxu0 0.0
  %360 = vmatpush.xpose.msra.mxu0 %v343
  %361 = vmatmul.f32.gmra.mxu0 %v341
  %v362 = vpop.f32.mrf.mxu0
  %v363 = vadd.f32 0.0, %v362
  %364 = vdwg.mxu0
  %v365 = vmul.f32 %v363, 0.35355338
  %v366 = vsel %vm136, %v365, -inf
  %367 = vmax.xlane.f32.xlu0 %v366
  %v368 = vpop.xlane.xlu0 %367
  %v369 = vsub.f32 %v365, %v368
  %v370 = vmul.f32 %v369, 1.442695
  %v371 = vpow.pop %v370
  %v372 = vsel %vm136, %v371, 0.0
  %373 = vadd.xlane.f32.xlu0 %v372
  %v374 = vpop.xlane.xlu0 %373
  %v375 = vrcp.pop %v374
  %v376 = vmul.f32 %v374, %v375
  %v377 = vsub.f32 1.0, %v376
  %v378 = vmul.f32 %v375, %v377
  %v379 = vadd.f32 %v375, %v378
  %vm380 = vweird.f32 %v374
  %vm381 = vweird.f32 %v375
  %vm382 = vmor %vm380, %vm381
  %v383 = vsel %vm382, %v375, %v379
  %v384 = vand.u32 2147483647, %v374
  %vm385 = vcmp.eq.f32.partialorder %v384, 8.507059e+37
  %v386 = vand.u32 %v374, 2147483648
  %v387 = vor.u32 1.1754944e-38, %v386
  %v388 = vsel %vm385, %v387, %v383
  %v389 = vmul.f32 %v371, %v388
  %390 = vrot.lane.b32.xlu0 %v118, 48
  %v391 = vpop.permute.xlu0 %390
  %v394 = vsel %vm136, %v389, 0
  %396 = vmatpush.msra.mxu0 0.0
  %397 = vmatpush.msra.mxu0 0.0
  %398 = vmatpush.msra.mxu0 0.0
  %399 = vmatpush.msra.mxu0 0.0
  %400 = vmatpush.msra.mxu0 0.0
  %401 = vmatpush.msra.mxu0 0.0
  %402 = vmatpush.msra.mxu0 0.0
  %403 = vmatpush.msra.mxu0 0.0
  %404 = vmatpush.msra.mxu0 0.0
  %405 = vmatpush.msra.mxu0 0.0
  %406 = vmatpush.msra.mxu0 0.0
  %407 = vmatpush.msra.mxu0 0.0
  %408 = vmatpush.msra.mxu0 0.0
  %409 = vmatpush.msra.mxu0 0.0
  %410 = vmatpush.msra.mxu0 0.0
  %411 = vmatpush.msra.mxu0 %v391
  %412 = vmatmul.f32.gmra.mxu0 %v394
  %v413 = vpop.f32.mrf.mxu0
  %v414 = vadd.f32 0.0, %v413
  %415 = vdwg.mxu0
  %v417 = vsel %vm136, %v414, 0
  %419 = vmatpush.msra.mxu0 0.0
  %420 = vmatpush.msra.mxu0 0.0
  %421 = vmatpush.msra.mxu0 0.0
  %422 = vmatpush.msra.mxu0 0.0
  %423 = vmatpush.msra.mxu0 0.0
  %424 = vmatpush.msra.mxu0 0.0
  %425 = vmatpush.msra.mxu0 0.0
  %426 = vmatpush.msra.mxu0 0.0
  %427 = vmatpush.msra.mxu0 0.0
  %428 = vmatpush.msra.mxu0 0.0
  %429 = vmatpush.msra.mxu0 0.0
  %430 = vmatpush.msra.mxu0 0.0
  %431 = vmatpush.msra.mxu0 0.0
  %432 = vmatpush.msra.mxu0 0.0
  %433 = vmatpush.msra.mxu0 0.0
  %434 = vmatpush.msra.mxu0 %v131
  %435 = vmatmul.f32.gmra.mxu0 %v417
  %v436 = vpop.f32.mrf.mxu0
  %v437 = vadd.f32 0.0, %v436
  %438 = vdwg.mxu0
  %v439 = vadd.f32 %v335, %v437
  %440 = vrot.lane.b32.xlu0 %v118, 104
  %v441 = vpop.permute.xlu0 %440
  %442 = vrot.lane.b32.xlu0 %v118, 72
  %v443 = vpop.permute.xlu0 %442
  %v444 = vsel %vm136, %v441, 0
  %v446 = vsel %vm136, %v443, 0
  %448 = vmatpush.xpose.msra.mxu0 0.0
  %449 = vmatpush.xpose.msra.mxu0 0.0
  %450 = vmatpush.xpose.msra.mxu0 0.0
  %451 = vmatpush.xpose.msra.mxu0 0.0
  %452 = vmatpush.xpose.msra.mxu0 0.0
  %453 = vmatpush.xpose.msra.mxu0 0.0
  %454 = vmatpush.xpose.msra.mxu0 0.0
  %455 = vmatpush.xpose.msra.mxu0 0.0
  %456 = vmatpush.xpose.msra.mxu0 0.0
  %457 = vmatpush.xpose.msra.mxu0 0.0
  %458 = vmatpush.xpose.msra.mxu0 0.0
  %459 = vmatpush.xpose.msra.mxu0 0.0
  %460 = vmatpush.xpose.msra.mxu0 0.0
  %461 = vmatpush.xpose.msra.mxu0 0.0
  %462 = vmatpush.xpose.msra.mxu0 0.0
  %463 = vmatpush.xpose.msra.mxu0 %v446
  %464 = vmatmul.f32.gmra.mxu0 %v444
  %v465 = vpop.f32.mrf.mxu0
  %v466 = vadd.f32 0.0, %v465
  %467 = vdwg.mxu0
  %v468 = vmul.f32 %v466, 0.35355338
  %v469 = vsel %vm136, %v468, -inf
  %470 = vmax.xlane.f32.xlu0 %v469
  %v471 = vpop.xlane.xlu0 %470
  %v472 = vsub.f32 %v468, %v471
  %v473 = vmul.f32 %v472, 1.442695
  %v474 = vpow.pop %v473
  %v475 = vsel %vm136, %v474, 0.0
  %476 = vadd.xlane.f32.xlu0 %v475
  %v477 = vpop.xlane.xlu0 %476
  %v478 = vrcp.pop %v477
  %v479 = vmul.f32 %v477, %v478
  %v480 = vsub.f32 1.0, %v479
  %v481 = vmul.f32 %v478, %v480
  %v482 = vadd.f32 %v478, %v481
  %vm483 = vweird.f32 %v477
  %vm484 = vweird.f32 %v478
  %vm485 = vmor %vm483, %vm484
  %v486 = vsel %vm485, %v478, %v482
  %v487 = vand.u32 2147483647, %v477
  %vm488 = vcmp.eq.f32.partialorder %v487, 8.507059e+37
  %v489 = vand.u32 %v477, 2147483648
  %v490 = vor.u32 1.1754944e-38, %v489
  %v491 = vsel %vm488, %v490, %v486
  %v492 = vmul.f32 %v474, %v491
  %493 = vrot.lane.b32.xlu0 %v118, 40
  %v494 = vpop.permute.xlu0 %493
  %v497 = vsel %vm136, %v492, 0
  %499 = vmatpush.msra.mxu0 0.0
  %500 = vmatpush.msra.mxu0 0.0
  %501 = vmatpush.msra.mxu0 0.0
  %502 = vmatpush.msra.mxu0 0.0
  %503 = vmatpush.msra.mxu0 0.0
  %504 = vmatpush.msra.mxu0 0.0
  %505 = vmatpush.msra.mxu0 0.0
  %506 = vmatpush.msra.mxu0 0.0
  %507 = vmatpush.msra.mxu0 0.0
  %508 = vmatpush.msra.mxu0 0.0
  %509 = vmatpush.msra.mxu0 0.0
  %510 = vmatpush.msra.mxu0 0.0
  %511 = vmatpush.msra.mxu0 0.0
  %512 = vmatpush.msra.mxu0 0.0
  %513 = vmatpush.msra.mxu0 0.0
  %514 = vmatpush.msra.mxu0 %v494
  %515 = vmatmul.f32.gmra.mxu0 %v497
  %v516 = vpop.f32.mrf.mxu0
  %v517 = vadd.f32 0.0, %v516
  %518 = vdwg.mxu0
  %v520 = vsel %vm136, %v517, 0
  %522 = vmatpush.msra.mxu0 0.0
  %523 = vmatpush.msra.mxu0 0.0
  %524 = vmatpush.msra.mxu0 0.0
  %525 = vmatpush.msra.mxu0 0.0
  %526 = vmatpush.msra.mxu0 0.0
  %527 = vmatpush.msra.mxu0 0.0
  %528 = vmatpush.msra.mxu0 0.0
  %529 = vmatpush.msra.mxu0 0.0
  %530 = vmatpush.msra.mxu0 0.0
  %531 = vmatpush.msra.mxu0 0.0
  %532 = vmatpush.msra.mxu0 0.0
  %533 = vmatpush.msra.mxu0 0.0
  %534 = vmatpush.msra.mxu0 0.0
  %535 = vmatpush.msra.mxu0 0.0
  %536 = vmatpush.msra.mxu0 0.0
  %537 = vmatpush.msra.mxu0 %v132
  %538 = vmatmul.f32.gmra.mxu0 %v520
  %v539 = vpop.f32.mrf.mxu0
  %v540 = vadd.f32 0.0, %v539
  %541 = vdwg.mxu0
  %v542 = vadd.f32 %v439, %v540
  %544 = vrot.lane.b32.xlu0 %v121, 96
  %v545 = vpop.permute.xlu0 %544
  %v546 = vsel %vm136, %v121, 0
  %v548 = vsel %vm136, %v545, 0
  %550 = vmatpush.xpose.msra.mxu0 0.0
  %551 = vmatpush.xpose.msra.mxu0 0.0
  %552 = vmatpush.xpose.msra.mxu0 0.0
  %553 = vmatpush.xpose.msra.mxu0 0.0
  %554 = vmatpush.xpose.msra.mxu0 0.0
  %555 = vmatpush.xpose.msra.mxu0 0.0
  %556 = vmatpush.xpose.msra.mxu0 0.0
  %557 = vmatpush.xpose.msra.mxu0 0.0
  %558 = vmatpush.xpose.msra.mxu0 0.0
  %559 = vmatpush.xpose.msra.mxu0 0.0
  %560 = vmatpush.xpose.msra.mxu0 0.0
  %561 = vmatpush.xpose.msra.mxu0 0.0
  %562 = vmatpush.xpose.msra.mxu0 0.0
  %563 = vmatpush.xpose.msra.mxu0 0.0
  %564 = vmatpush.xpose.msra.mxu0 0.0
  %565 = vmatpush.xpose.msra.mxu0 %v548
  %566 = vmatmul.f32.gmra.mxu0 %v546
  %v567 = vpop.f32.mrf.mxu0
  %v568 = vadd.f32 0.0, %v567
  %569 = vdwg.mxu0
  %v570 = vmul.f32 %v568, 0.35355338
  %v571 = vsel %vm136, %v570, -inf
  %572 = vmax.xlane.f32.xlu0 %v571
  %v573 = vpop.xlane.xlu0 %572
  %v574 = vsub.f32 %v570, %v573
  %v575 = vmul.f32 %v574, 1.442695
  %v576 = vpow.pop %v575
  %v577 = vsel %vm136, %v576, 0.0
  %578 = vadd.xlane.f32.xlu0 %v577
  %v579 = vpop.xlane.xlu0 %578
  %v580 = vrcp.pop %v579
  %v581 = vmul.f32 %v579, %v580
  %v582 = vsub.f32 1.0, %v581
  %v583 = vmul.f32 %v580, %v582
  %v584 = vadd.f32 %v580, %v583
  %vm585 = vweird.f32 %v579
  %vm586 = vweird.f32 %v580
  %vm587 = vmor %vm585, %vm586
  %v588 = vsel %vm587, %v580, %v584
  %v589 = vand.u32 2147483647, %v579
  %vm590 = vcmp.eq.f32.partialorder %v589, 8.507059e+37
  %v591 = vand.u32 %v579, 2147483648
  %v592 = vor.u32 1.1754944e-38, %v591
  %v593 = vsel %vm590, %v592, %v588
  %v594 = vmul.f32 %v576, %v593
  %595 = vrot.lane.b32.xlu0 %v121, 64
  %v596 = vpop.permute.xlu0 %595
  %v599 = vsel %vm136, %v594, 0
  %601 = vmatpush.msra.mxu0 0.0
  %602 = vmatpush.msra.mxu0 0.0
  %603 = vmatpush.msra.mxu0 0.0
  %604 = vmatpush.msra.mxu0 0.0
  %605 = vmatpush.msra.mxu0 0.0
  %606 = vmatpush.msra.mxu0 0.0
  %607 = vmatpush.msra.mxu0 0.0
  %608 = vmatpush.msra.mxu0 0.0
  %609 = vmatpush.msra.mxu0 0.0
  %610 = vmatpush.msra.mxu0 0.0
  %611 = vmatpush.msra.mxu0 0.0
  %612 = vmatpush.msra.mxu0 0.0
  %613 = vmatpush.msra.mxu0 0.0
  %614 = vmatpush.msra.mxu0 0.0
  %615 = vmatpush.msra.mxu0 0.0
  %616 = vmatpush.msra.mxu0 %v596
  %617 = vmatmul.f32.gmra.mxu0 %v599
  %v618 = vpop.f32.mrf.mxu0
  %v619 = vadd.f32 0.0, %v618
  %620 = vdwg.mxu0
  %621 = vrot.lane.b32.xlu0 %v121, 120
  %v622 = vpop.permute.xlu0 %621
  %623 = vrot.lane.b32.xlu0 %v121, 88
  %v624 = vpop.permute.xlu0 %623
  %v625 = vsel %vm136, %v622, 0
  %v627 = vsel %vm136, %v624, 0
  %629 = vmatpush.xpose.msra.mxu0 0.0
  %630 = vmatpush.xpose.msra.mxu0 0.0
  %631 = vmatpush.xpose.msra.mxu0 0.0
  %632 = vmatpush.xpose.msra.mxu0 0.0
  %633 = vmatpush.xpose.msra.mxu0 0.0
  %634 = vmatpush.xpose.msra.mxu0 0.0
  %635 = vmatpush.xpose.msra.mxu0 0.0
  %636 = vmatpush.xpose.msra.mxu0 0.0
  %637 = vmatpush.xpose.msra.mxu0 0.0
  %638 = vmatpush.xpose.msra.mxu0 0.0
  %639 = vmatpush.xpose.msra.mxu0 0.0
  %640 = vmatpush.xpose.msra.mxu0 0.0
  %641 = vmatpush.xpose.msra.mxu0 0.0
  %642 = vmatpush.xpose.msra.mxu0 0.0
  %643 = vmatpush.xpose.msra.mxu0 0.0
  %644 = vmatpush.xpose.msra.mxu0 %v627
  %645 = vmatmul.f32.gmra.mxu0 %v625
  %v646 = vpop.f32.mrf.mxu0
  %v647 = vadd.f32 0.0, %v646
  %648 = vdwg.mxu0
  %v649 = vmul.f32 %v647, 0.35355338
  %v650 = vsel %vm136, %v649, -inf
  %651 = vmax.xlane.f32.xlu0 %v650
  %v652 = vpop.xlane.xlu0 %651
  %v653 = vsub.f32 %v649, %v652
  %v654 = vmul.f32 %v653, 1.442695
  %v655 = vpow.pop %v654
  %v656 = vsel %vm136, %v655, 0.0
  %657 = vadd.xlane.f32.xlu0 %v656
  %v658 = vpop.xlane.xlu0 %657
  %v659 = vrcp.pop %v658
  %v660 = vmul.f32 %v658, %v659
  %v661 = vsub.f32 1.0, %v660
  %v662 = vmul.f32 %v659, %v661
  %v663 = vadd.f32 %v659, %v662
  %vm664 = vweird.f32 %v658
  %vm665 = vweird.f32 %v659
  %vm666 = vmor %vm664, %vm665
  %v667 = vsel %vm666, %v659, %v663
  %v668 = vand.u32 2147483647, %v658
  %vm669 = vcmp.eq.f32.partialorder %v668, 8.507059e+37
  %v670 = vand.u32 %v658, 2147483648
  %v671 = vor.u32 1.1754944e-38, %v670
  %v672 = vsel %vm669, %v671, %v667
  %v673 = vmul.f32 %v655, %v672
  %674 = vrot.lane.b32.xlu0 %v121, 56
  %v675 = vpop.permute.xlu0 %674
  %v678 = vsel %vm136, %v673, 0
  %680 = vmatpush.msra.mxu0 0.0
  %681 = vmatpush.msra.mxu0 0.0
  %682 = vmatpush.msra.mxu0 0.0
  %683 = vmatpush.msra.mxu0 0.0
  %684 = vmatpush.msra.mxu0 0.0
  %685 = vmatpush.msra.mxu0 0.0
  %686 = vmatpush.msra.mxu0 0.0
  %687 = vmatpush.msra.mxu0 0.0
  %688 = vmatpush.msra.mxu0 0.0
  %689 = vmatpush.msra.mxu0 0.0
  %690 = vmatpush.msra.mxu0 0.0
  %691 = vmatpush.msra.mxu0 0.0
  %692 = vmatpush.msra.mxu0 0.0
  %693 = vmatpush.msra.mxu0 0.0
  %694 = vmatpush.msra.mxu0 0.0
  %695 = vmatpush.msra.mxu0 %v675
  %696 = vmatmul.f32.gmra.mxu0 %v678
  %v697 = vpop.f32.mrf.mxu0
  %v698 = vadd.f32 0.0, %v697
  %699 = vdwg.mxu0
  %v701 = vsel %vm136, %v698, 0
  %703 = vmatpush.msra.mxu0 0.0
  %704 = vmatpush.msra.mxu0 0.0
  %705 = vmatpush.msra.mxu0 0.0
  %706 = vmatpush.msra.mxu0 0.0
  %707 = vmatpush.msra.mxu0 0.0
  %708 = vmatpush.msra.mxu0 0.0
  %709 = vmatpush.msra.mxu0 0.0
  %710 = vmatpush.msra.mxu0 0.0
  %711 = vmatpush.msra.mxu0 0.0
  %712 = vmatpush.msra.mxu0 0.0
  %713 = vmatpush.msra.mxu0 0.0
  %714 = vmatpush.msra.mxu0 0.0
  %715 = vmatpush.msra.mxu0 0.0
  %716 = vmatpush.msra.mxu0 0.0
  %717 = vmatpush.msra.mxu0 0.0
  %718 = vmatpush.msra.mxu0 %v130
  %719 = vmatmul.f32.gmra.mxu0 %v701
  %v720 = vpop.f32.mrf.mxu0
  %v721 = vadd.f32 0.0, %v720
  %722 = vdwg.mxu0
  %v724 = vsel %vm136, %v619, 0
  %726 = vmatpush.msra.mxu0 0.0
  %727 = vmatpush.msra.mxu0 0.0
  %728 = vmatpush.msra.mxu0 0.0
  %729 = vmatpush.msra.mxu0 0.0
  %730 = vmatpush.msra.mxu0 0.0
  %731 = vmatpush.msra.mxu0 0.0
  %732 = vmatpush.msra.mxu0 0.0
  %733 = vmatpush.msra.mxu0 0.0
  %734 = vmatpush.msra.mxu0 0.0
  %735 = vmatpush.msra.mxu0 0.0
  %736 = vmatpush.msra.mxu0 0.0
  %737 = vmatpush.msra.mxu0 0.0
  %738 = vmatpush.msra.mxu0 0.0
  %739 = vmatpush.msra.mxu0 0.0
  %740 = vmatpush.msra.mxu0 0.0
  %741 = vmatpush.msra.mxu0 %v129
  %742 = vmatmul.f32.gmra.mxu0 %v724
  %v743 = vpop.f32.mrf.mxu0
  %v744 = vadd.f32 %v721, %v743
  %745 = vdwg.mxu0
  %746 = vrot.lane.b32.xlu0 %v121, 112
  %v747 = vpop.permute.xlu0 %746
  %748 = vrot.lane.b32.xlu0 %v121, 80
  %v749 = vpop.permute.xlu0 %748
  %v750 = vsel %vm136, %v747, 0
  %v752 = vsel %vm136, %v749, 0
  %754 = vmatpush.xpose.msra.mxu0 0.0
  %755 = vmatpush.xpose.msra.mxu0 0.0
  %756 = vmatpush.xpose.msra.mxu0 0.0
  %757 = vmatpush.xpose.msra.mxu0 0.0
  %758 = vmatpush.xpose.msra.mxu0 0.0
  %759 = vmatpush.xpose.msra.mxu0 0.0
  %760 = vmatpush.xpose.msra.mxu0 0.0
  %761 = vmatpush.xpose.msra.mxu0 0.0
  %762 = vmatpush.xpose.msra.mxu0 0.0
  %763 = vmatpush.xpose.msra.mxu0 0.0
  %764 = vmatpush.xpose.msra.mxu0 0.0
  %765 = vmatpush.xpose.msra.mxu0 0.0
  %766 = vmatpush.xpose.msra.mxu0 0.0
  %767 = vmatpush.xpose.msra.mxu0 0.0
  %768 = vmatpush.xpose.msra.mxu0 0.0
  %769 = vmatpush.xpose.msra.mxu0 %v752
  %770 = vmatmul.f32.gmra.mxu0 %v750
  %v771 = vpop.f32.mrf.mxu0
  %v772 = vadd.f32 0.0, %v771
  %773 = vdwg.mxu0
  %v774 = vmul.f32 %v772, 0.35355338
  %v775 = vsel %vm136, %v774, -inf
  %776 = vmax.xlane.f32.xlu0 %v775
  %v777 = vpop.xlane.xlu0 %776
  %v778 = vsub.f32 %v774, %v777
  %v779 = vmul.f32 %v778, 1.442695
  %v780 = vpow.pop %v779
  %v781 = vsel %vm136, %v780, 0.0
  %782 = vadd.xlane.f32.xlu0 %v781
  %v783 = vpop.xlane.xlu0 %782
  %v784 = vrcp.pop %v783
  %v785 = vmul.f32 %v783, %v784
  %v786 = vsub.f32 1.0, %v785
  %v787 = vmul.f32 %v784, %v786
  %v788 = vadd.f32 %v784, %v787
  %vm789 = vweird.f32 %v783
  %vm790 = vweird.f32 %v784
  %vm791 = vmor %vm789, %vm790
  %v792 = vsel %vm791, %v784, %v788
  %v793 = vand.u32 2147483647, %v783
  %vm794 = vcmp.eq.f32.partialorder %v793, 8.507059e+37
  %v795 = vand.u32 %v783, 2147483648
  %v796 = vor.u32 1.1754944e-38, %v795
  %v797 = vsel %vm794, %v796, %v792
  %v798 = vmul.f32 %v780, %v797
  %799 = vrot.lane.b32.xlu0 %v121, 48
  %v800 = vpop.permute.xlu0 %799
  %v803 = vsel %vm136, %v798, 0
  %805 = vmatpush.msra.mxu0 0.0
  %806 = vmatpush.msra.mxu0 0.0
  %807 = vmatpush.msra.mxu0 0.0
  %808 = vmatpush.msra.mxu0 0.0
  %809 = vmatpush.msra.mxu0 0.0
  %810 = vmatpush.msra.mxu0 0.0
  %811 = vmatpush.msra.mxu0 0.0
  %812 = vmatpush.msra.mxu0 0.0
  %813 = vmatpush.msra.mxu0 0.0
  %814 = vmatpush.msra.mxu0 0.0
  %815 = vmatpush.msra.mxu0 0.0
  %816 = vmatpush.msra.mxu0 0.0
  %817 = vmatpush.msra.mxu0 0.0
  %818 = vmatpush.msra.mxu0 0.0
  %819 = vmatpush.msra.mxu0 0.0
  %820 = vmatpush.msra.mxu0 %v800
  %821 = vmatmul.f32.gmra.mxu0 %v803
  %v822 = vpop.f32.mrf.mxu0
  %v823 = vadd.f32 0.0, %v822
  %824 = vdwg.mxu0
  %v826 = vsel %vm136, %v823, 0
  %828 = vmatpush.msra.mxu0 0.0
  %829 = vmatpush.msra.mxu0 0.0
  %830 = vmatpush.msra.mxu0 0.0
  %831 = vmatpush.msra.mxu0 0.0
  %832 = vmatpush.msra.mxu0 0.0
  %833 = vmatpush.msra.mxu0 0.0
  %834 = vmatpush.msra.mxu0 0.0
  %835 = vmatpush.msra.mxu0 0.0
  %836 = vmatpush.msra.mxu0 0.0
  %837 = vmatpush.msra.mxu0 0.0
  %838 = vmatpush.msra.mxu0 0.0
  %839 = vmatpush.msra.mxu0 0.0
  %840 = vmatpush.msra.mxu0 0.0
  %841 = vmatpush.msra.mxu0 0.0
  %842 = vmatpush.msra.mxu0 0.0
  %843 = vmatpush.msra.mxu0 %v131
  %844 = vmatmul.f32.gmra.mxu0 %v826
  %v845 = vpop.f32.mrf.mxu0
  %v846 = vadd.f32 0.0, %v845
  %847 = vdwg.mxu0
  %v848 = vadd.f32 %v744, %v846
  %849 = vrot.lane.b32.xlu0 %v121, 104
  %v850 = vpop.permute.xlu0 %849
  %851 = vrot.lane.b32.xlu0 %v121, 72
  %v852 = vpop.permute.xlu0 %851
  %v853 = vsel %vm136, %v850, 0
  %v855 = vsel %vm136, %v852, 0
  %857 = vmatpush.xpose.msra.mxu0 0.0
  %858 = vmatpush.xpose.msra.mxu0 0.0
  %859 = vmatpush.xpose.msra.mxu0 0.0
  %860 = vmatpush.xpose.msra.mxu0 0.0
  %861 = vmatpush.xpose.msra.mxu0 0.0
  %862 = vmatpush.xpose.msra.mxu0 0.0
  %863 = vmatpush.xpose.msra.mxu0 0.0
  %864 = vmatpush.xpose.msra.mxu0 0.0
  %865 = vmatpush.xpose.msra.mxu0 0.0
  %866 = vmatpush.xpose.msra.mxu0 0.0
  %867 = vmatpush.xpose.msra.mxu0 0.0
  %868 = vmatpush.xpose.msra.mxu0 0.0
  %869 = vmatpush.xpose.msra.mxu0 0.0
  %870 = vmatpush.xpose.msra.mxu0 0.0
  %871 = vmatpush.xpose.msra.mxu0 0.0
  %872 = vmatpush.xpose.msra.mxu0 %v855
  %873 = vmatmul.f32.gmra.mxu0 %v853
  %v874 = vpop.f32.mrf.mxu0
  %v875 = vadd.f32 0.0, %v874
  %876 = vdwg.mxu0
  %v877 = vmul.f32 %v875, 0.35355338
  %v878 = vsel %vm136, %v877, -inf
  %879 = vmax.xlane.f32.xlu0 %v878
  %v880 = vpop.xlane.xlu0 %879
  %v881 = vsub.f32 %v877, %v880
  %v882 = vmul.f32 %v881, 1.442695
  %v883 = vpow.pop %v882
  %v884 = vsel %vm136, %v883, 0.0
  %885 = vadd.xlane.f32.xlu0 %v884
  %v886 = vpop.xlane.xlu0 %885
  %v887 = vrcp.pop %v886
  %v888 = vmul.f32 %v886, %v887
  %v889 = vsub.f32 1.0, %v888
  %v890 = vmul.f32 %v887, %v889
  %v891 = vadd.f32 %v887, %v890
  %vm892 = vweird.f32 %v886
  %vm893 = vweird.f32 %v887
  %vm894 = vmor %vm892, %vm893
  %v895 = vsel %vm894, %v887, %v891
  %v896 = vand.u32 2147483647, %v886
  %vm897 = vcmp.eq.f32.partialorder %v896, 8.507059e+37
  %v898 = vand.u32 %v886, 2147483648
  %v899 = vor.u32 1.1754944e-38, %v898
  %v900 = vsel %vm897, %v899, %v895
  %v901 = vmul.f32 %v883, %v900
  %902 = vrot.lane.b32.xlu0 %v121, 40
  %v903 = vpop.permute.xlu0 %902
  %v906 = vsel %vm136, %v901, 0
  %908 = vmatpush.msra.mxu0 0.0
  %909 = vmatpush.msra.mxu0 0.0
  %910 = vmatpush.msra.mxu0 0.0
  %911 = vmatpush.msra.mxu0 0.0
  %912 = vmatpush.msra.mxu0 0.0
  %913 = vmatpush.msra.mxu0 0.0
  %914 = vmatpush.msra.mxu0 0.0
  %915 = vmatpush.msra.mxu0 0.0
  %916 = vmatpush.msra.mxu0 0.0
  %917 = vmatpush.msra.mxu0 0.0
  %918 = vmatpush.msra.mxu0 0.0
  %919 = vmatpush.msra.mxu0 0.0
  %920 = vmatpush.msra.mxu0 0.0
  %921 = vmatpush.msra.mxu0 0.0
  %922 = vmatpush.msra.mxu0 0.0
  %923 = vmatpush.msra.mxu0 %v903
  %924 = vmatmul.f32.gmra.mxu0 %v906
  %v925 = vpop.f32.mrf.mxu0
  %v926 = vadd.f32 0.0, %v925
  %927 = vdwg.mxu0
  %v929 = vsel %vm136, %v926, 0
  %931 = vmatpush.msra.mxu0 0.0
  %932 = vmatpush.msra.mxu0 0.0
  %933 = vmatpush.msra.mxu0 0.0
  %934 = vmatpush.msra.mxu0 0.0
  %935 = vmatpush.msra.mxu0 0.0
  %936 = vmatpush.msra.mxu0 0.0
  %937 = vmatpush.msra.mxu0 0.0
  %938 = vmatpush.msra.mxu0 0.0
  %939 = vmatpush.msra.mxu0 0.0
  %940 = vmatpush.msra.mxu0 0.0
  %941 = vmatpush.msra.mxu0 0.0
  %942 = vmatpush.msra.mxu0 0.0
  %943 = vmatpush.msra.mxu0 0.0
  %944 = vmatpush.msra.mxu0 0.0
  %945 = vmatpush.msra.mxu0 0.0
  %946 = vmatpush.msra.mxu0 %v132
  %947 = vmatmul.f32.gmra.mxu0 %v929
  %v948 = vpop.f32.mrf.mxu0
  %v949 = vadd.f32 0.0, %v948
  %950 = vdwg.mxu0
  %v951 = vadd.f32 %v848, %v949
  %953 = vrot.lane.b32.xlu0 %v124, 96
  %v954 = vpop.permute.xlu0 %953
  %v955 = vsel %vm136, %v124, 0
  %v957 = vsel %vm136, %v954, 0
  %959 = vmatpush.xpose.msra.mxu0 0.0
  %960 = vmatpush.xpose.msra.mxu0 0.0
  %961 = vmatpush.xpose.msra.mxu0 0.0
  %962 = vmatpush.xpose.msra.mxu0 0.0
  %963 = vmatpush.xpose.msra.mxu0 0.0
  %964 = vmatpush.xpose.msra.mxu0 0.0
  %965 = vmatpush.xpose.msra.mxu0 0.0
  %966 = vmatpush.xpose.msra.mxu0 0.0
  %967 = vmatpush.xpose.msra.mxu0 0.0
  %968 = vmatpush.xpose.msra.mxu0 0.0
  %969 = vmatpush.xpose.msra.mxu0 0.0
  %970 = vmatpush.xpose.msra.mxu0 0.0
  %971 = vmatpush.xpose.msra.mxu0 0.0
  %972 = vmatpush.xpose.msra.mxu0 0.0
  %973 = vmatpush.xpose.msra.mxu0 0.0
  %974 = vmatpush.xpose.msra.mxu0 %v957
  %975 = vmatmul.f32.gmra.mxu0 %v955
  %v976 = vpop.f32.mrf.mxu0
  %v977 = vadd.f32 0.0, %v976
  %978 = vdwg.mxu0
  %v979 = vmul.f32 %v977, 0.35355338
  %v980 = vsel %vm136, %v979, -inf
  %981 = vmax.xlane.f32.xlu0 %v980
  %v982 = vpop.xlane.xlu0 %981
  %v983 = vsub.f32 %v979, %v982
  %v984 = vmul.f32 %v983, 1.442695
  %v985 = vpow.pop %v984
  %v986 = vsel %vm136, %v985, 0.0
  %987 = vadd.xlane.f32.xlu0 %v986
  %v988 = vpop.xlane.xlu0 %987
  %v989 = vrcp.pop %v988
  %v990 = vmul.f32 %v988, %v989
  %v991 = vsub.f32 1.0, %v990
  %v992 = vmul.f32 %v989, %v991
  %v993 = vadd.f32 %v989, %v992
  %vm994 = vweird.f32 %v988
  %vm995 = vweird.f32 %v989
  %vm996 = vmor %vm994, %vm995
  %v997 = vsel %vm996, %v989, %v993
  %v998 = vand.u32 2147483647, %v988
  %vm999 = vcmp.eq.f32.partialorder %v998, 8.507059e+37
  %v1000 = vand.u32 %v988, 2147483648
  %v1001 = vor.u32 1.1754944e-38, %v1000
  %v1002 = vsel %vm999, %v1001, %v997
  %v1003 = vmul.f32 %v985, %v1002
  %1004 = vrot.lane.b32.xlu0 %v124, 64
  %v1005 = vpop.permute.xlu0 %1004
  %v1008 = vsel %vm136, %v1003, 0
  %1010 = vmatpush.msra.mxu0 0.0
  %1011 = vmatpush.msra.mxu0 0.0
  %1012 = vmatpush.msra.mxu0 0.0
  %1013 = vmatpush.msra.mxu0 0.0
  %1014 = vmatpush.msra.mxu0 0.0
  %1015 = vmatpush.msra.mxu0 0.0
  %1016 = vmatpush.msra.mxu0 0.0
  %1017 = vmatpush.msra.mxu0 0.0
  %1018 = vmatpush.msra.mxu0 0.0
  %1019 = vmatpush.msra.mxu0 0.0
  %1020 = vmatpush.msra.mxu0 0.0
  %1021 = vmatpush.msra.mxu0 0.0
  %1022 = vmatpush.msra.mxu0 0.0
  %1023 = vmatpush.msra.mxu0 0.0
  %1024 = vmatpush.msra.mxu0 0.0
  %1025 = vmatpush.msra.mxu0 %v1005
  %1026 = vmatmul.f32.gmra.mxu0 %v1008
  %v1027 = vpop.f32.mrf.mxu0
  %v1028 = vadd.f32 0.0, %v1027
  %1029 = vdwg.mxu0
  %1030 = vrot.lane.b32.xlu0 %v124, 120
  %v1031 = vpop.permute.xlu0 %1030
  %1032 = vrot.lane.b32.xlu0 %v124, 88
  %v1033 = vpop.permute.xlu0 %1032
  %v1034 = vsel %vm136, %v1031, 0
  %v1036 = vsel %vm136, %v1033, 0
  %1038 = vmatpush.xpose.msra.mxu0 0.0
  %1039 = vmatpush.xpose.msra.mxu0 0.0
  %1040 = vmatpush.xpose.msra.mxu0 0.0
  %1041 = vmatpush.xpose.msra.mxu0 0.0
  %1042 = vmatpush.xpose.msra.mxu0 0.0
  %1043 = vmatpush.xpose.msra.mxu0 0.0
  %1044 = vmatpush.xpose.msra.mxu0 0.0
  %1045 = vmatpush.xpose.msra.mxu0 0.0
  %1046 = vmatpush.xpose.msra.mxu0 0.0
  %1047 = vmatpush.xpose.msra.mxu0 0.0
  %1048 = vmatpush.xpose.msra.mxu0 0.0
  %1049 = vmatpush.xpose.msra.mxu0 0.0
  %1050 = vmatpush.xpose.msra.mxu0 0.0
  %1051 = vmatpush.xpose.msra.mxu0 0.0
  %1052 = vmatpush.xpose.msra.mxu0 0.0
  %1053 = vmatpush.xpose.msra.mxu0 %v1036
  %1054 = vmatmul.f32.gmra.mxu0 %v1034
  %v1055 = vpop.f32.mrf.mxu0
  %v1056 = vadd.f32 0.0, %v1055
  %1057 = vdwg.mxu0
  %v1058 = vmul.f32 %v1056, 0.35355338
  %v1059 = vsel %vm136, %v1058, -inf
  %1060 = vmax.xlane.f32.xlu0 %v1059
  %v1061 = vpop.xlane.xlu0 %1060
  %v1062 = vsub.f32 %v1058, %v1061
  %v1063 = vmul.f32 %v1062, 1.442695
  %v1064 = vpow.pop %v1063
  %v1065 = vsel %vm136, %v1064, 0.0
  %1066 = vadd.xlane.f32.xlu0 %v1065
  %v1067 = vpop.xlane.xlu0 %1066
  %v1068 = vrcp.pop %v1067
  %v1069 = vmul.f32 %v1067, %v1068
  %v1070 = vsub.f32 1.0, %v1069
  %v1071 = vmul.f32 %v1068, %v1070
  %v1072 = vadd.f32 %v1068, %v1071
  %vm1073 = vweird.f32 %v1067
  %vm1074 = vweird.f32 %v1068
  %vm1075 = vmor %vm1073, %vm1074
  %v1076 = vsel %vm1075, %v1068, %v1072
  %v1077 = vand.u32 2147483647, %v1067
  %vm1078 = vcmp.eq.f32.partialorder %v1077, 8.507059e+37
  %v1079 = vand.u32 %v1067, 2147483648
  %v1080 = vor.u32 1.1754944e-38, %v1079
  %v1081 = vsel %vm1078, %v1080, %v1076
  %v1082 = vmul.f32 %v1064, %v1081
  %1083 = vrot.lane.b32.xlu0 %v124, 56
  %v1084 = vpop.permute.xlu0 %1083
  %v1087 = vsel %vm136, %v1082, 0
  %1089 = vmatpush.msra.mxu0 0.0
  %1090 = vmatpush.msra.mxu0 0.0
  %1091 = vmatpush.msra.mxu0 0.0
  %1092 = vmatpush.msra.mxu0 0.0
  %1093 = vmatpush.msra.mxu0 0.0
  %1094 = vmatpush.msra.mxu0 0.0
  %1095 = vmatpush.msra.mxu0 0.0
  %1096 = vmatpush.msra.mxu0 0.0
  %1097 = vmatpush.msra.mxu0 0.0
  %1098 = vmatpush.msra.mxu0 0.0
  %1099 = vmatpush.msra.mxu0 0.0
  %1100 = vmatpush.msra.mxu0 0.0
  %1101 = vmatpush.msra.mxu0 0.0
  %1102 = vmatpush.msra.mxu0 0.0
  %1103 = vmatpush.msra.mxu0 0.0
  %1104 = vmatpush.msra.mxu0 %v1084
  %1105 = vmatmul.f32.gmra.mxu0 %v1087
  %v1106 = vpop.f32.mrf.mxu0
  %v1107 = vadd.f32 0.0, %v1106
  %1108 = vdwg.mxu0
  %v1110 = vsel %vm136, %v1107, 0
  %1112 = vmatpush.msra.mxu0 0.0
  %1113 = vmatpush.msra.mxu0 0.0
  %1114 = vmatpush.msra.mxu0 0.0
  %1115 = vmatpush.msra.mxu0 0.0
  %1116 = vmatpush.msra.mxu0 0.0
  %1117 = vmatpush.msra.mxu0 0.0
  %1118 = vmatpush.msra.mxu0 0.0
  %1119 = vmatpush.msra.mxu0 0.0
  %1120 = vmatpush.msra.mxu0 0.0
  %1121 = vmatpush.msra.mxu0 0.0
  %1122 = vmatpush.msra.mxu0 0.0
  %1123 = vmatpush.msra.mxu0 0.0
  %1124 = vmatpush.msra.mxu0 0.0
  %1125 = vmatpush.msra.mxu0 0.0
  %1126 = vmatpush.msra.mxu0 0.0
  %1127 = vmatpush.msra.mxu0 %v130
  %1128 = vmatmul.f32.gmra.mxu0 %v1110
  %v1129 = vpop.f32.mrf.mxu0
  %v1130 = vadd.f32 0.0, %v1129
  %1131 = vdwg.mxu0
  %v1133 = vsel %vm136, %v1028, 0
  %1135 = vmatpush.msra.mxu0 0.0
  %1136 = vmatpush.msra.mxu0 0.0
  %1137 = vmatpush.msra.mxu0 0.0
  %1138 = vmatpush.msra.mxu0 0.0
  %1139 = vmatpush.msra.mxu0 0.0
  %1140 = vmatpush.msra.mxu0 0.0
  %1141 = vmatpush.msra.mxu0 0.0
  %1142 = vmatpush.msra.mxu0 0.0
  %1143 = vmatpush.msra.mxu0 0.0
  %1144 = vmatpush.msra.mxu0 0.0
  %1145 = vmatpush.msra.mxu0 0.0
  %1146 = vmatpush.msra.mxu0 0.0
  %1147 = vmatpush.msra.mxu0 0.0
  %1148 = vmatpush.msra.mxu0 0.0
  %1149 = vmatpush.msra.mxu0 0.0
  %1150 = vmatpush.msra.mxu0 %v129
  %1151 = vmatmul.f32.gmra.mxu0 %v1133
  %v1152 = vpop.f32.mrf.mxu0
  %v1153 = vadd.f32 %v1130, %v1152
  %1154 = vdwg.mxu0
  %1155 = vrot.lane.b32.xlu0 %v124, 112
  %v1156 = vpop.permute.xlu0 %1155
  %1157 = vrot.lane.b32.xlu0 %v124, 80
  %v1158 = vpop.permute.xlu0 %1157
  %v1159 = vsel %vm136, %v1156, 0
  %v1161 = vsel %vm136, %v1158, 0
  %1163 = vmatpush.xpose.msra.mxu0 0.0
  %1164 = vmatpush.xpose.msra.mxu0 0.0
  %1165 = vmatpush.xpose.msra.mxu0 0.0
  %1166 = vmatpush.xpose.msra.mxu0 0.0
  %1167 = vmatpush.xpose.msra.mxu0 0.0
  %1168 = vmatpush.xpose.msra.mxu0 0.0
  %1169 = vmatpush.xpose.msra.mxu0 0.0
  %1170 = vmatpush.xpose.msra.mxu0 0.0
  %1171 = vmatpush.xpose.msra.mxu0 0.0
  %1172 = vmatpush.xpose.msra.mxu0 0.0
  %1173 = vmatpush.xpose.msra.mxu0 0.0
  %1174 = vmatpush.xpose.msra.mxu0 0.0
  %1175 = vmatpush.xpose.msra.mxu0 0.0
  %1176 = vmatpush.xpose.msra.mxu0 0.0
  %1177 = vmatpush.xpose.msra.mxu0 0.0
  %1178 = vmatpush.xpose.msra.mxu0 %v1161
  %1179 = vmatmul.f32.gmra.mxu0 %v1159
  %v1180 = vpop.f32.mrf.mxu0
  %v1181 = vadd.f32 0.0, %v1180
  %1182 = vdwg.mxu0
  %v1183 = vmul.f32 %v1181, 0.35355338
  %v1184 = vsel %vm136, %v1183, -inf
  %1185 = vmax.xlane.f32.xlu0 %v1184
  %v1186 = vpop.xlane.xlu0 %1185
  %v1187 = vsub.f32 %v1183, %v1186
  %v1188 = vmul.f32 %v1187, 1.442695
  %v1189 = vpow.pop %v1188
  %v1190 = vsel %vm136, %v1189, 0.0
  %1191 = vadd.xlane.f32.xlu0 %v1190
  %v1192 = vpop.xlane.xlu0 %1191
  %v1193 = vrcp.pop %v1192
  %v1194 = vmul.f32 %v1192, %v1193
  %v1195 = vsub.f32 1.0, %v1194
  %v1196 = vmul.f32 %v1193, %v1195
  %v1197 = vadd.f32 %v1193, %v1196
  %vm1198 = vweird.f32 %v1192
  %vm1199 = vweird.f32 %v1193
  %vm1200 = vmor %vm1198, %vm1199
  %v1201 = vsel %vm1200, %v1193, %v1197
  %v1202 = vand.u32 2147483647, %v1192
  %vm1203 = vcmp.eq.f32.partialorder %v1202, 8.507059e+37
  %v1204 = vand.u32 %v1192, 2147483648
  %v1205 = vor.u32 1.1754944e-38, %v1204
  %v1206 = vsel %vm1203, %v1205, %v1201
  %v1207 = vmul.f32 %v1189, %v1206
  %1208 = vrot.lane.b32.xlu0 %v124, 48
  %v1209 = vpop.permute.xlu0 %1208
  %v1212 = vsel %vm136, %v1207, 0
  %1214 = vmatpush.msra.mxu0 0.0
  %1215 = vmatpush.msra.mxu0 0.0
  %1216 = vmatpush.msra.mxu0 0.0
  %1217 = vmatpush.msra.mxu0 0.0
  %1218 = vmatpush.msra.mxu0 0.0
  %1219 = vmatpush.msra.mxu0 0.0
  %1220 = vmatpush.msra.mxu0 0.0
  %1221 = vmatpush.msra.mxu0 0.0
  %1222 = vmatpush.msra.mxu0 0.0
  %1223 = vmatpush.msra.mxu0 0.0
  %1224 = vmatpush.msra.mxu0 0.0
  %1225 = vmatpush.msra.mxu0 0.0
  %1226 = vmatpush.msra.mxu0 0.0
  %1227 = vmatpush.msra.mxu0 0.0
  %1228 = vmatpush.msra.mxu0 0.0
  %1229 = vmatpush.msra.mxu0 %v1209
  %1230 = vmatmul.f32.gmra.mxu0 %v1212
  %v1231 = vpop.f32.mrf.mxu0
  %v1232 = vadd.f32 0.0, %v1231
  %1233 = vdwg.mxu0
  %v1235 = vsel %vm136, %v1232, 0
  %1237 = vmatpush.msra.mxu0 0.0
  %1238 = vmatpush.msra.mxu0 0.0
  %1239 = vmatpush.msra.mxu0 0.0
  %1240 = vmatpush.msra.mxu0 0.0
  %1241 = vmatpush.msra.mxu0 0.0
  %1242 = vmatpush.msra.mxu0 0.0
  %1243 = vmatpush.msra.mxu0 0.0
  %1244 = vmatpush.msra.mxu0 0.0
  %1245 = vmatpush.msra.mxu0 0.0
  %1246 = vmatpush.msra.mxu0 0.0
  %1247 = vmatpush.msra.mxu0 0.0
  %1248 = vmatpush.msra.mxu0 0.0
  %1249 = vmatpush.msra.mxu0 0.0
  %1250 = vmatpush.msra.mxu0 0.0
  %1251 = vmatpush.msra.mxu0 0.0
  %1252 = vmatpush.msra.mxu0 %v131
  %1253 = vmatmul.f32.gmra.mxu0 %v1235
  %v1254 = vpop.f32.mrf.mxu0
  %v1255 = vadd.f32 0.0, %v1254
  %1256 = vdwg.mxu0
  %v1257 = vadd.f32 %v1153, %v1255
  %1258 = vrot.lane.b32.xlu0 %v124, 104
  %v1259 = vpop.permute.xlu0 %1258
  %1260 = vrot.lane.b32.xlu0 %v124, 72
  %v1261 = vpop.permute.xlu0 %1260
  %v1262 = vsel %vm136, %v1259, 0
  %v1264 = vsel %vm136, %v1261, 0
  %1266 = vmatpush.xpose.msra.mxu0 0.0
  %1267 = vmatpush.xpose.msra.mxu0 0.0
  %1268 = vmatpush.xpose.msra.mxu0 0.0
  %1269 = vmatpush.xpose.msra.mxu0 0.0
  %1270 = vmatpush.xpose.msra.mxu0 0.0
  %1271 = vmatpush.xpose.msra.mxu0 0.0
  %1272 = vmatpush.xpose.msra.mxu0 0.0
  %1273 = vmatpush.xpose.msra.mxu0 0.0
  %1274 = vmatpush.xpose.msra.mxu0 0.0
  %1275 = vmatpush.xpose.msra.mxu0 0.0
  %1276 = vmatpush.xpose.msra.mxu0 0.0
  %1277 = vmatpush.xpose.msra.mxu0 0.0
  %1278 = vmatpush.xpose.msra.mxu0 0.0
  %1279 = vmatpush.xpose.msra.mxu0 0.0
  %1280 = vmatpush.xpose.msra.mxu0 0.0
  %1281 = vmatpush.xpose.msra.mxu0 %v1264
  %1282 = vmatmul.f32.gmra.mxu0 %v1262
  %v1283 = vpop.f32.mrf.mxu0
  %v1284 = vadd.f32 0.0, %v1283
  %1285 = vdwg.mxu0
  %v1286 = vmul.f32 %v1284, 0.35355338
  %v1287 = vsel %vm136, %v1286, -inf
  %1288 = vmax.xlane.f32.xlu0 %v1287
  %v1289 = vpop.xlane.xlu0 %1288
  %v1290 = vsub.f32 %v1286, %v1289
  %v1291 = vmul.f32 %v1290, 1.442695
  %v1292 = vpow.pop %v1291
  %v1293 = vsel %vm136, %v1292, 0.0
  %1294 = vadd.xlane.f32.xlu0 %v1293
  %v1295 = vpop.xlane.xlu0 %1294
  %v1296 = vrcp.pop %v1295
  %v1297 = vmul.f32 %v1295, %v1296
  %v1298 = vsub.f32 1.0, %v1297
  %v1299 = vmul.f32 %v1296, %v1298
  %v1300 = vadd.f32 %v1296, %v1299
  %vm1301 = vweird.f32 %v1295
  %vm1302 = vweird.f32 %v1296
  %vm1303 = vmor %vm1301, %vm1302
  %v1304 = vsel %vm1303, %v1296, %v1300
  %v1305 = vand.u32 2147483647, %v1295
  %vm1306 = vcmp.eq.f32.partialorder %v1305, 8.507059e+37
  %v1307 = vand.u32 %v1295, 2147483648
  %v1308 = vor.u32 1.1754944e-38, %v1307
  %v1309 = vsel %vm1306, %v1308, %v1304
  %v1310 = vmul.f32 %v1292, %v1309
  %1311 = vrot.lane.b32.xlu0 %v124, 40
  %v1312 = vpop.permute.xlu0 %1311
  %v1315 = vsel %vm136, %v1310, 0
  %1317 = vmatpush.msra.mxu0 0.0
  %1318 = vmatpush.msra.mxu0 0.0
  %1319 = vmatpush.msra.mxu0 0.0
  %1320 = vmatpush.msra.mxu0 0.0
  %1321 = vmatpush.msra.mxu0 0.0
  %1322 = vmatpush.msra.mxu0 0.0
  %1323 = vmatpush.msra.mxu0 0.0
  %1324 = vmatpush.msra.mxu0 0.0
  %1325 = vmatpush.msra.mxu0 0.0
  %1326 = vmatpush.msra.mxu0 0.0
  %1327 = vmatpush.msra.mxu0 0.0
  %1328 = vmatpush.msra.mxu0 0.0
  %1329 = vmatpush.msra.mxu0 0.0
  %1330 = vmatpush.msra.mxu0 0.0
  %1331 = vmatpush.msra.mxu0 0.0
  %1332 = vmatpush.msra.mxu0 %v1312
  %1333 = vmatmul.f32.gmra.mxu0 %v1315
  %v1334 = vpop.f32.mrf.mxu0
  %v1335 = vadd.f32 0.0, %v1334
  %1336 = vdwg.mxu0
  %v1338 = vsel %vm136, %v1335, 0
  %1340 = vmatpush.msra.mxu0 0.0
  %1341 = vmatpush.msra.mxu0 0.0
  %1342 = vmatpush.msra.mxu0 0.0
  %1343 = vmatpush.msra.mxu0 0.0
  %1344 = vmatpush.msra.mxu0 0.0
  %1345 = vmatpush.msra.mxu0 0.0
  %1346 = vmatpush.msra.mxu0 0.0
  %1347 = vmatpush.msra.mxu0 0.0
  %1348 = vmatpush.msra.mxu0 0.0
  %1349 = vmatpush.msra.mxu0 0.0
  %1350 = vmatpush.msra.mxu0 0.0
  %1351 = vmatpush.msra.mxu0 0.0
  %1352 = vmatpush.msra.mxu0 0.0
  %1353 = vmatpush.msra.mxu0 0.0
  %1354 = vmatpush.msra.mxu0 0.0
  %1355 = vmatpush.msra.mxu0 %v132
  %1356 = vmatmul.f32.gmra.mxu0 %v1338
  %v1357 = vpop.f32.mrf.mxu0
  %v1358 = vadd.f32 0.0, %v1357
  %1359 = vdwg.mxu0
  %v1360 = vadd.f32 %v1257, %v1358
  %1362 = vrot.lane.b32.xlu0 %v127, 96
  %v1363 = vpop.permute.xlu0 %1362
  %v1364 = vsel %vm136, %v127, 0
  %v1366 = vsel %vm136, %v1363, 0
  %1368 = vmatpush.xpose.msra.mxu0 0.0
  %1369 = vmatpush.xpose.msra.mxu0 0.0
  %1370 = vmatpush.xpose.msra.mxu0 0.0
  %1371 = vmatpush.xpose.msra.mxu0 0.0
  %1372 = vmatpush.xpose.msra.mxu0 0.0
  %1373 = vmatpush.xpose.msra.mxu0 0.0
  %1374 = vmatpush.xpose.msra.mxu0 0.0
  %1375 = vmatpush.xpose.msra.mxu0 0.0
  %1376 = vmatpush.xpose.msra.mxu0 0.0
  %1377 = vmatpush.xpose.msra.mxu0 0.0
  %1378 = vmatpush.xpose.msra.mxu0 0.0
  %1379 = vmatpush.xpose.msra.mxu0 0.0
  %1380 = vmatpush.xpose.msra.mxu0 0.0
  %1381 = vmatpush.xpose.msra.mxu0 0.0
  %1382 = vmatpush.xpose.msra.mxu0 0.0
  %1383 = vmatpush.xpose.msra.mxu0 %v1366
  %1384 = vmatmul.f32.gmra.mxu0 %v1364
  %v1385 = vpop.f32.mrf.mxu0
  %v1386 = vadd.f32 0.0, %v1385
  %1387 = vdwg.mxu0
  %v1388 = vmul.f32 %v1386, 0.35355338
  %v1389 = vsel %vm136, %v1388, -inf
  %1390 = vmax.xlane.f32.xlu0 %v1389
  %v1391 = vpop.xlane.xlu0 %1390
  %v1392 = vsub.f32 %v1388, %v1391
  %v1393 = vmul.f32 %v1392, 1.442695
  %v1394 = vpow.pop %v1393
  %v1395 = vsel %vm136, %v1394, 0.0
  %1396 = vadd.xlane.f32.xlu0 %v1395
  %v1397 = vpop.xlane.xlu0 %1396
  %v1398 = vrcp.pop %v1397
  %v1399 = vmul.f32 %v1397, %v1398
  %v1400 = vsub.f32 1.0, %v1399
  %v1401 = vmul.f32 %v1398, %v1400
  %v1402 = vadd.f32 %v1398, %v1401
  %vm1403 = vweird.f32 %v1397
  %vm1404 = vweird.f32 %v1398
  %vm1405 = vmor %vm1403, %vm1404
  %v1406 = vsel %vm1405, %v1398, %v1402
  %v1407 = vand.u32 2147483647, %v1397
  %vm1408 = vcmp.eq.f32.partialorder %v1407, 8.507059e+37
  %v1409 = vand.u32 %v1397, 2147483648
  %v1410 = vor.u32 1.1754944e-38, %v1409
  %v1411 = vsel %vm1408, %v1410, %v1406
  %v1412 = vmul.f32 %v1394, %v1411
  %1413 = vrot.lane.b32.xlu0 %v127, 64
  %v1414 = vpop.permute.xlu0 %1413
  %v1417 = vsel %vm136, %v1412, 0
  %1419 = vmatpush.msra.mxu0 0.0
  %1420 = vmatpush.msra.mxu0 0.0
  %1421 = vmatpush.msra.mxu0 0.0
  %1422 = vmatpush.msra.mxu0 0.0
  %1423 = vmatpush.msra.mxu0 0.0
  %1424 = vmatpush.msra.mxu0 0.0
  %1425 = vmatpush.msra.mxu0 0.0
  %1426 = vmatpush.msra.mxu0 0.0
  %1427 = vmatpush.msra.mxu0 0.0
  %1428 = vmatpush.msra.mxu0 0.0
  %1429 = vmatpush.msra.mxu0 0.0
  %1430 = vmatpush.msra.mxu0 0.0
  %1431 = vmatpush.msra.mxu0 0.0
  %1432 = vmatpush.msra.mxu0 0.0
  %1433 = vmatpush.msra.mxu0 0.0
  %1434 = vmatpush.msra.mxu0 %v1414
  %1435 = vmatmul.f32.gmra.mxu0 %v1417
  %v1436 = vpop.f32.mrf.mxu0
  %v1437 = vadd.f32 0.0, %v1436
  %1438 = vdwg.mxu0
  %1439 = vrot.lane.b32.xlu0 %v127, 120
  %v1440 = vpop.permute.xlu0 %1439
  %1441 = vrot.lane.b32.xlu0 %v127, 88
  %v1442 = vpop.permute.xlu0 %1441
  %v1443 = vsel %vm136, %v1440, 0
  %v1445 = vsel %vm136, %v1442, 0
  %1447 = vmatpush.xpose.msra.mxu0 0.0
  %1448 = vmatpush.xpose.msra.mxu0 0.0
  %1449 = vmatpush.xpose.msra.mxu0 0.0
  %1450 = vmatpush.xpose.msra.mxu0 0.0
  %1451 = vmatpush.xpose.msra.mxu0 0.0
  %1452 = vmatpush.xpose.msra.mxu0 0.0
  %1453 = vmatpush.xpose.msra.mxu0 0.0
  %1454 = vmatpush.xpose.msra.mxu0 0.0
  %1455 = vmatpush.xpose.msra.mxu0 0.0
  %1456 = vmatpush.xpose.msra.mxu0 0.0
  %1457 = vmatpush.xpose.msra.mxu0 0.0
  %1458 = vmatpush.xpose.msra.mxu0 0.0
  %1459 = vmatpush.xpose.msra.mxu0 0.0
  %1460 = vmatpush.xpose.msra.mxu0 0.0
  %1461 = vmatpush.xpose.msra.mxu0 0.0
  %1462 = vmatpush.xpose.msra.mxu0 %v1445
  %1463 = vmatmul.f32.gmra.mxu0 %v1443
  %v1464 = vpop.f32.mrf.mxu0
  %v1465 = vadd.f32 0.0, %v1464
  %1466 = vdwg.mxu0
  %v1467 = vmul.f32 %v1465, 0.35355338
  %v1468 = vsel %vm136, %v1467, -inf
  %1469 = vmax.xlane.f32.xlu0 %v1468
  %v1470 = vpop.xlane.xlu0 %1469
  %v1471 = vsub.f32 %v1467, %v1470
  %v1472 = vmul.f32 %v1471, 1.442695
  %v1473 = vpow.pop %v1472
  %v1474 = vsel %vm136, %v1473, 0.0
  %1475 = vadd.xlane.f32.xlu0 %v1474
  %v1476 = vpop.xlane.xlu0 %1475
  %v1477 = vrcp.pop %v1476
  %v1478 = vmul.f32 %v1476, %v1477
  %v1479 = vsub.f32 1.0, %v1478
  %v1480 = vmul.f32 %v1477, %v1479
  %v1481 = vadd.f32 %v1477, %v1480
  %vm1482 = vweird.f32 %v1476
  %vm1483 = vweird.f32 %v1477
  %vm1484 = vmor %vm1482, %vm1483
  %v1485 = vsel %vm1484, %v1477, %v1481
  %v1486 = vand.u32 2147483647, %v1476
  %vm1487 = vcmp.eq.f32.partialorder %v1486, 8.507059e+37
  %v1488 = vand.u32 %v1476, 2147483648
  %v1489 = vor.u32 1.1754944e-38, %v1488
  %v1490 = vsel %vm1487, %v1489, %v1485
  %v1491 = vmul.f32 %v1473, %v1490
  %1492 = vrot.lane.b32.xlu0 %v127, 56
  %v1493 = vpop.permute.xlu0 %1492
  %v1496 = vsel %vm136, %v1491, 0
  %1498 = vmatpush.msra.mxu0 0.0
  %1499 = vmatpush.msra.mxu0 0.0
  %1500 = vmatpush.msra.mxu0 0.0
  %1501 = vmatpush.msra.mxu0 0.0
  %1502 = vmatpush.msra.mxu0 0.0
  %1503 = vmatpush.msra.mxu0 0.0
  %1504 = vmatpush.msra.mxu0 0.0
  %1505 = vmatpush.msra.mxu0 0.0
  %1506 = vmatpush.msra.mxu0 0.0
  %1507 = vmatpush.msra.mxu0 0.0
  %1508 = vmatpush.msra.mxu0 0.0
  %1509 = vmatpush.msra.mxu0 0.0
  %1510 = vmatpush.msra.mxu0 0.0
  %1511 = vmatpush.msra.mxu0 0.0
  %1512 = vmatpush.msra.mxu0 0.0
  %1513 = vmatpush.msra.mxu0 %v1493
  %1514 = vmatmul.f32.gmra.mxu0 %v1496
  %v1515 = vpop.f32.mrf.mxu0
  %v1516 = vadd.f32 0.0, %v1515
  %1517 = vdwg.mxu0
  %v1519 = vsel %vm136, %v1516, 0
  %1521 = vmatpush.msra.mxu0 0.0
  %1522 = vmatpush.msra.mxu0 0.0
  %1523 = vmatpush.msra.mxu0 0.0
  %1524 = vmatpush.msra.mxu0 0.0
  %1525 = vmatpush.msra.mxu0 0.0
  %1526 = vmatpush.msra.mxu0 0.0
  %1527 = vmatpush.msra.mxu0 0.0
  %1528 = vmatpush.msra.mxu0 0.0
  %1529 = vmatpush.msra.mxu0 0.0
  %1530 = vmatpush.msra.mxu0 0.0
  %1531 = vmatpush.msra.mxu0 0.0
  %1532 = vmatpush.msra.mxu0 0.0
  %1533 = vmatpush.msra.mxu0 0.0
  %1534 = vmatpush.msra.mxu0 0.0
  %1535 = vmatpush.msra.mxu0 0.0
  %1536 = vmatpush.msra.mxu0 %v130
  %1537 = vmatmul.f32.gmra.mxu0 %v1519
  %v1538 = vpop.f32.mrf.mxu0
  %v1539 = vadd.f32 0.0, %v1538
  %1540 = vdwg.mxu0
  %v1542 = vsel %vm136, %v1437, 0
  %1544 = vmatpush.msra.mxu0 0.0
  %1545 = vmatpush.msra.mxu0 0.0
  %1546 = vmatpush.msra.mxu0 0.0
  %1547 = vmatpush.msra.mxu0 0.0
  %1548 = vmatpush.msra.mxu0 0.0
  %1549 = vmatpush.msra.mxu0 0.0
  %1550 = vmatpush.msra.mxu0 0.0
  %1551 = vmatpush.msra.mxu0 0.0
  %1552 = vmatpush.msra.mxu0 0.0
  %1553 = vmatpush.msra.mxu0 0.0
  %1554 = vmatpush.msra.mxu0 0.0
  %1555 = vmatpush.msra.mxu0 0.0
  %1556 = vmatpush.msra.mxu0 0.0
  %1557 = vmatpush.msra.mxu0 0.0
  %1558 = vmatpush.msra.mxu0 0.0
  %1559 = vmatpush.msra.mxu0 %v129
  %1560 = vmatmul.f32.gmra.mxu0 %v1542
  %v1561 = vpop.f32.mrf.mxu0
  %v1562 = vadd.f32 %v1539, %v1561
  %1563 = vdwg.mxu0
  %1564 = vrot.lane.b32.xlu0 %v127, 112
  %v1565 = vpop.permute.xlu0 %1564
  %1566 = vrot.lane.b32.xlu0 %v127, 80
  %v1567 = vpop.permute.xlu0 %1566
  %v1568 = vsel %vm136, %v1565, 0
  %v1570 = vsel %vm136, %v1567, 0
  %1572 = vmatpush.xpose.msra.mxu0 0.0
  %1573 = vmatpush.xpose.msra.mxu0 0.0
  %1574 = vmatpush.xpose.msra.mxu0 0.0
  %1575 = vmatpush.xpose.msra.mxu0 0.0
  %1576 = vmatpush.xpose.msra.mxu0 0.0
  %1577 = vmatpush.xpose.msra.mxu0 0.0
  %1578 = vmatpush.xpose.msra.mxu0 0.0
  %1579 = vmatpush.xpose.msra.mxu0 0.0
  %1580 = vmatpush.xpose.msra.mxu0 0.0
  %1581 = vmatpush.xpose.msra.mxu0 0.0
  %1582 = vmatpush.xpose.msra.mxu0 0.0
  %1583 = vmatpush.xpose.msra.mxu0 0.0
  %1584 = vmatpush.xpose.msra.mxu0 0.0
  %1585 = vmatpush.xpose.msra.mxu0 0.0
  %1586 = vmatpush.xpose.msra.mxu0 0.0
  %1587 = vmatpush.xpose.msra.mxu0 %v1570
  %1588 = vmatmul.f32.gmra.mxu0 %v1568
  %v1589 = vpop.f32.mrf.mxu0
  %v1590 = vadd.f32 0.0, %v1589
  %1591 = vdwg.mxu0
  %v1592 = vmul.f32 %v1590, 0.35355338
  %v1593 = vsel %vm136, %v1592, -inf
  %1594 = vmax.xlane.f32.xlu0 %v1593
  %v1595 = vpop.xlane.xlu0 %1594
  %v1596 = vsub.f32 %v1592, %v1595
  %v1597 = vmul.f32 %v1596, 1.442695
  %v1598 = vpow.pop %v1597
  %v1599 = vsel %vm136, %v1598, 0.0
  %1600 = vadd.xlane.f32.xlu0 %v1599
  %v1601 = vpop.xlane.xlu0 %1600
  %v1602 = vrcp.pop %v1601
  %v1603 = vmul.f32 %v1601, %v1602
  %v1604 = vsub.f32 1.0, %v1603
  %v1605 = vmul.f32 %v1602, %v1604
  %v1606 = vadd.f32 %v1602, %v1605
  %vm1607 = vweird.f32 %v1601
  %vm1608 = vweird.f32 %v1602
  %vm1609 = vmor %vm1607, %vm1608
  %v1610 = vsel %vm1609, %v1602, %v1606
  %v1611 = vand.u32 2147483647, %v1601
  %vm1612 = vcmp.eq.f32.partialorder %v1611, 8.507059e+37
  %v1613 = vand.u32 %v1601, 2147483648
  %v1614 = vor.u32 1.1754944e-38, %v1613
  %v1615 = vsel %vm1612, %v1614, %v1610
  %v1616 = vmul.f32 %v1598, %v1615
  %1617 = vrot.lane.b32.xlu0 %v127, 48
  %v1618 = vpop.permute.xlu0 %1617
  %v1621 = vsel %vm136, %v1616, 0
  %1623 = vmatpush.msra.mxu0 0.0
  %1624 = vmatpush.msra.mxu0 0.0
  %1625 = vmatpush.msra.mxu0 0.0
  %1626 = vmatpush.msra.mxu0 0.0
  %1627 = vmatpush.msra.mxu0 0.0
  %1628 = vmatpush.msra.mxu0 0.0
  %1629 = vmatpush.msra.mxu0 0.0
  %1630 = vmatpush.msra.mxu0 0.0
  %1631 = vmatpush.msra.mxu0 0.0
  %1632 = vmatpush.msra.mxu0 0.0
  %1633 = vmatpush.msra.mxu0 0.0
  %1634 = vmatpush.msra.mxu0 0.0
  %1635 = vmatpush.msra.mxu0 0.0
  %1636 = vmatpush.msra.mxu0 0.0
  %1637 = vmatpush.msra.mxu0 0.0
  %1638 = vmatpush.msra.mxu0 %v1618
  %1639 = vmatmul.f32.gmra.mxu0 %v1621
  %v1640 = vpop.f32.mrf.mxu0
  %v1641 = vadd.f32 0.0, %v1640
  %1642 = vdwg.mxu0
  %v1644 = vsel %vm136, %v1641, 0
  %1646 = vmatpush.msra.mxu0 0.0
  %1647 = vmatpush.msra.mxu0 0.0
  %1648 = vmatpush.msra.mxu0 0.0
  %1649 = vmatpush.msra.mxu0 0.0
  %1650 = vmatpush.msra.mxu0 0.0
  %1651 = vmatpush.msra.mxu0 0.0
  %1652 = vmatpush.msra.mxu0 0.0
  %1653 = vmatpush.msra.mxu0 0.0
  %1654 = vmatpush.msra.mxu0 0.0
  %1655 = vmatpush.msra.mxu0 0.0
  %1656 = vmatpush.msra.mxu0 0.0
  %1657 = vmatpush.msra.mxu0 0.0
  %1658 = vmatpush.msra.mxu0 0.0
  %1659 = vmatpush.msra.mxu0 0.0
  %1660 = vmatpush.msra.mxu0 0.0
  %1661 = vmatpush.msra.mxu0 %v131
  %1662 = vmatmul.f32.gmra.mxu0 %v1644
  %v1663 = vpop.f32.mrf.mxu0
  %v1664 = vadd.f32 0.0, %v1663
  %1665 = vdwg.mxu0
  %v1666 = vadd.f32 %v1562, %v1664
  %1667 = vrot.lane.b32.xlu0 %v127, 104
  %v1668 = vpop.permute.xlu0 %1667
  %1669 = vrot.lane.b32.xlu0 %v127, 72
  %v1670 = vpop.permute.xlu0 %1669
  %v1671 = vsel %vm136, %v1668, 0
  %v1673 = vsel %vm136, %v1670, 0
  %1675 = vmatpush.xpose.msra.mxu0 0.0
  %1676 = vmatpush.xpose.msra.mxu0 0.0
  %1677 = vmatpush.xpose.msra.mxu0 0.0
  %1678 = vmatpush.xpose.msra.mxu0 0.0
  %1679 = vmatpush.xpose.msra.mxu0 0.0
  %1680 = vmatpush.xpose.msra.mxu0 0.0
  %1681 = vmatpush.xpose.msra.mxu0 0.0
  %1682 = vmatpush.xpose.msra.mxu0 0.0
  %1683 = vmatpush.xpose.msra.mxu0 0.0
  %1684 = vmatpush.xpose.msra.mxu0 0.0
  %1685 = vmatpush.xpose.msra.mxu0 0.0
  %1686 = vmatpush.xpose.msra.mxu0 0.0
  %1687 = vmatpush.xpose.msra.mxu0 0.0
  %1688 = vmatpush.xpose.msra.mxu0 0.0
  %1689 = vmatpush.xpose.msra.mxu0 0.0
  %1690 = vmatpush.xpose.msra.mxu0 %v1673
  %1691 = vmatmul.f32.gmra.mxu0 %v1671
  %v1692 = vpop.f32.mrf.mxu0
  %v1693 = vadd.f32 0.0, %v1692
  %1694 = vdwg.mxu0
  %v1695 = vmul.f32 %v1693, 0.35355338
  %v1696 = vsel %vm136, %v1695, -inf
  %1697 = vmax.xlane.f32.xlu0 %v1696
  %v1698 = vpop.xlane.xlu0 %1697
  %v1699 = vsub.f32 %v1695, %v1698
  %v1700 = vmul.f32 %v1699, 1.442695
  %v1701 = vpow.pop %v1700
  %v1702 = vsel %vm136, %v1701, 0.0
  %1703 = vadd.xlane.f32.xlu0 %v1702
  %v1704 = vpop.xlane.xlu0 %1703
  %v1705 = vrcp.pop %v1704
  %v1706 = vmul.f32 %v1704, %v1705
  %v1707 = vsub.f32 1.0, %v1706
  %v1708 = vmul.f32 %v1705, %v1707
  %v1709 = vadd.f32 %v1705, %v1708
  %vm1710 = vweird.f32 %v1704
  %vm1711 = vweird.f32 %v1705
  %vm1712 = vmor %vm1710, %vm1711
  %v1713 = vsel %vm1712, %v1705, %v1709
  %v1714 = vand.u32 2147483647, %v1704
  %vm1715 = vcmp.eq.f32.partialorder %v1714, 8.507059e+37
  %v1716 = vand.u32 %v1704, 2147483648
  %v1717 = vor.u32 1.1754944e-38, %v1716
  %v1718 = vsel %vm1715, %v1717, %v1713
  %v1719 = vmul.f32 %v1701, %v1718
  %1720 = vrot.lane.b32.xlu0 %v127, 40
  %v1721 = vpop.permute.xlu0 %1720
  %v1724 = vsel %vm136, %v1719, 0
  %1726 = vmatpush.msra.mxu0 0.0
  %1727 = vmatpush.msra.mxu0 0.0
  %1728 = vmatpush.msra.mxu0 0.0
  %1729 = vmatpush.msra.mxu0 0.0
  %1730 = vmatpush.msra.mxu0 0.0
  %1731 = vmatpush.msra.mxu0 0.0
  %1732 = vmatpush.msra.mxu0 0.0
  %1733 = vmatpush.msra.mxu0 0.0
  %1734 = vmatpush.msra.mxu0 0.0
  %1735 = vmatpush.msra.mxu0 0.0
  %1736 = vmatpush.msra.mxu0 0.0
  %1737 = vmatpush.msra.mxu0 0.0
  %1738 = vmatpush.msra.mxu0 0.0
  %1739 = vmatpush.msra.mxu0 0.0
  %1740 = vmatpush.msra.mxu0 0.0
  %1741 = vmatpush.msra.mxu0 %v1721
  %1742 = vmatmul.f32.gmra.mxu0 %v1724
  %v1743 = vpop.f32.mrf.mxu0
  %v1744 = vadd.f32 0.0, %v1743
  %1745 = vdwg.mxu0
  %v1747 = vsel %vm136, %v1744, 0
  %1749 = vmatpush.msra.mxu0 0.0
  %1750 = vmatpush.msra.mxu0 0.0
  %1751 = vmatpush.msra.mxu0 0.0
  %1752 = vmatpush.msra.mxu0 0.0
  %1753 = vmatpush.msra.mxu0 0.0
  %1754 = vmatpush.msra.mxu0 0.0
  %1755 = vmatpush.msra.mxu0 0.0
  %1756 = vmatpush.msra.mxu0 0.0
  %1757 = vmatpush.msra.mxu0 0.0
  %1758 = vmatpush.msra.mxu0 0.0
  %1759 = vmatpush.msra.mxu0 0.0
  %1760 = vmatpush.msra.mxu0 0.0
  %1761 = vmatpush.msra.mxu0 0.0
  %1762 = vmatpush.msra.mxu0 0.0
  %1763 = vmatpush.msra.mxu0 0.0
  %1764 = vmatpush.msra.mxu0 %v132
  %1765 = vmatmul.f32.gmra.mxu0 %v1747
  %v1766 = vpop.f32.mrf.mxu0
  %v1767 = vadd.f32 0.0, %v1766
  %1768 = vdwg.mxu0
  %v1769 = vadd.f32 %v1666, %v1767
  %v1770 = vld [vmem:[%s5] sm:$0x1]
  %v1772 = vperm.slane %v1770, 0
  %v1774 = vadd.f32 %v542, %v1772
  %v1775 = vadd.f32 %v951, %v1772
  %v1776 = vadd.f32 %v1360, %v1772
  %v1777 = vadd.f32 %v1769, %v1772
  %v1778 = vld [vmem:[%s6] sm:$0x3]
  %v1779 = vadd.f32 %v75, %v1774
  %v1780 = vadd.f32 %v76, %v1775
  %v1781 = vadd.f32 %v77, %v1776
  %v1782 = vadd.f32 %v78, %v1777
  %v1783 = vsel %vm87, %v1779, 0.0
  %1784 = vadd.xlane.f32.xlu0 %v1783
  %v1785 = vpop.xlane.xlu0 %1784
  %v1786 = vsel %vm87, %v1780, 0.0
  %1787 = vadd.xlane.f32.xlu0 %v1786
  %v1788 = vpop.xlane.xlu0 %1787
  %v1789 = vsel %vm87, %v1781, 0.0
  %1790 = vadd.xlane.f32.xlu0 %v1789
  %v1791 = vpop.xlane.xlu0 %1790
  %v1792 = vsel %vm87, %v1782, 0.0
  %1793 = vadd.xlane.f32.xlu0 %v1792
  %v1794 = vpop.xlane.xlu0 %1793
  %v1795 = vrcp.pop 32.0
  %v1796 = vmul.f32 32.0, %v1795
  %v1797 = vsub.f32 1.0, %v1796
  %v1798 = vmul.f32 %v1795, %v1797
  %v1799 = vadd.f32 %v1795, %v1798
  %vm1800 = vweird.f32 %v1795
  %v1801 = vsel %vm1800, %v1795, %v1799
  %v1802 = vmul.f32 %v1785, %v1801
  %v1803 = vmul.f32 %v1788, %v1801
  %v1804 = vmul.f32 %v1791, %v1801
  %v1805 = vmul.f32 %v1794, %v1801
  %v1806 = vsub.f32 %v1779, %v1802
  %v1807 = vsub.f32 %v1780, %v1803
  %v1808 = vsub.f32 %v1781, %v1804
  %v1809 = vsub.f32 %v1782, %v1805
  %v1810 = vmul.f32 %v1806, %v1806
  %v1811 = vmul.f32 %v1807, %v1807
  %v1812 = vmul.f32 %v1808, %v1808
  %v1813 = vmul.f32 %v1809, %v1809
  %v1814 = vsel %vm87, %v1810, 0.0
  %1815 = vadd.xlane.f32.xlu0 %v1814
  %v1816 = vpop.xlane.xlu0 %1815
  %v1817 = vsel %vm87, %v1811, 0.0
  %1818 = vadd.xlane.f32.xlu0 %v1817
  %v1819 = vpop.xlane.xlu0 %1818
  %v1820 = vsel %vm87, %v1812, 0.0
  %1821 = vadd.xlane.f32.xlu0 %v1820
  %v1822 = vpop.xlane.xlu0 %1821
  %v1823 = vsel %vm87, %v1813, 0.0
  %1824 = vadd.xlane.f32.xlu0 %v1823
  %v1825 = vpop.xlane.xlu0 %1824
  %v1826 = vmul.f32 %v1816, %v1801
  %v1827 = vmul.f32 %v1819, %v1801
  %v1828 = vmul.f32 %v1822, %v1801
  %v1829 = vmul.f32 %v1825, %v1801
  %v1830 = vadd.f32 %v1826, 1e-05
  %v1831 = vadd.f32 %v1827, 1e-05
  %v1832 = vadd.f32 %v1828, 1e-05
  %v1833 = vadd.f32 %v1829, 1e-05
  %v1834 = vrsqrt.pop %v1830
  %v1835 = vmul.f32 %v1834, %v1830
  %v1836 = vmul.f32 %v1835, %v1834
  %v1837 = vmul.f32 0.5, %v1836
  %v1838 = vsub.f32 1.5, %v1837
  %v1839 = vmul.f32 %v1834, %v1838
  %vm1840 = vweird.f32 %v1830
  %vm1841 = vweird.f32 %v1834
  %vm1842 = vmor %vm1840, %vm1841
  %v1843 = vsel %vm1842, %v1834, %v1839
  %v1844 = vrsqrt.pop %v1831
  %v1845 = vmul.f32 %v1844, %v1831
  %v1846 = vmul.f32 %v1845, %v1844
  %v1847 = vmul.f32 0.5, %v1846
  %v1848 = vsub.f32 1.5, %v1847
  %v1849 = vmul.f32 %v1844, %v1848
  %vm1850 = vweird.f32 %v1831
  %vm1851 = vweird.f32 %v1844
  %vm1852 = vmor %vm1850, %vm1851
  %v1853 = vsel %vm1852, %v1844, %v1849
  %v1854 = vrsqrt.pop %v1832
  %v1855 = vmul.f32 %v1854, %v1832
  %v1856 = vmul.f32 %v1855, %v1854
  %v1857 = vmul.f32 0.5, %v1856
  %v1858 = vsub.f32 1.5, %v1857
  %v1859 = vmul.f32 %v1854, %v1858
  %vm1860 = vweird.f32 %v1832
  %vm1861 = vweird.f32 %v1854
  %vm1862 = vmor %vm1860, %vm1861
  %v1863 = vsel %vm1862, %v1854, %v1859
  %v1864 = vrsqrt.pop %v1833
  %v1865 = vmul.f32 %v1864, %v1833
  %v1866 = vmul.f32 %v1865, %v1864
  %v1867 = vmul.f32 0.5, %v1866
  %v1868 = vsub.f32 1.5, %v1867
  %v1869 = vmul.f32 %v1864, %v1868
  %vm1870 = vweird.f32 %v1833
  %vm1871 = vweird.f32 %v1864
  %vm1872 = vmor %vm1870, %vm1871
  %v1873 = vsel %vm1872, %v1864, %v1869
  %v1874 = vmul.f32 %v1806, %v1843
  %v1875 = vmul.f32 %v1807, %v1853
  %v1876 = vmul.f32 %v1808, %v1863
  %v1877 = vmul.f32 %v1809, %v1873
  %v1878 = vperm.slane %v1778, 0
  %v1879 = vmul.f32 %v1874, %v1878
  %v1880 = vmul.f32 %v1875, %v1878
  %v1881 = vmul.f32 %v1876, %v1878
  %v1882 = vmul.f32 %v1877, %v1878
  %v1883 = vperm.slane %v1778, 1
  %v1884 = vadd.f32 %v1879, %v1883
  %v1885 = vadd.f32 %v1880, %v1883
  %v1886 = vadd.f32 %v1881, %v1883
  %v1887 = vadd.f32 %v1882, %v1883
  %v1888 = vld [vmem:[%s7] sm:$0xff]
  %v1889 = vld [vmem:[%s7 + $0x8] sm:$0xff]
  %v1890 = vld [vmem:[%s7 + $0x10] sm:$0xff]
  %v1891 = vld [vmem:[%s7 + $0x18] sm:$0xff]
  %v1892 = vld [vmem:[%s8] sm:$0x1]
  %v1894 = vperm.slane %v1892, 0
  %v1897 = vsel %vm87, %v1884, 0
  %v1900 = vsel %vm87, %v1885, 0
  %v1903 = vsel %vm87, %v1886, 0
  %v1906 = vsel %vm87, %v1887, 0
  %1908 = vmatpush.msra.mxu0 0.0
  %1909 = vmatpush.msra.mxu0 0.0
  %1910 = vmatpush.msra.mxu0 0.0
  %1911 = vmatpush.msra.mxu0 0.0
  %1912 = vmatpush.msra.mxu0 0.0
  %1913 = vmatpush.msra.mxu0 0.0
  %1914 = vmatpush.msra.mxu0 0.0
  %1915 = vmatpush.msra.mxu0 0.0
  %1916 = vmatpush.msra.mxu0 0.0
  %1917 = vmatpush.msra.mxu0 0.0
  %1918 = vmatpush.msra.mxu0 0.0
  %1919 = vmatpush.msra.mxu0 0.0
  %1920 = vmatpush.msra.mxu0 %v1891
  %1921 = vmatpush.msra.mxu0 %v1890
  %1922 = vmatpush.msra.mxu0 %v1889
  %1923 = vmatpush.msra.mxu0 %v1888
  %1924 = vmatmul.f32.gmra.mxu0 %v1897
  %v1925 = vpop.f32.mrf.mxu0
  %v1926 = vadd.f32 %v1894, %v1925
  %1927 = vmatmul.f32.gmra.mxu0 %v1900
  %v1928 = vpop.f32.mrf.mxu0
  %v1929 = vadd.f32 %v1894, %v1928
  %1930 = vmatmul.f32.gmra.mxu0 %v1903
  %v1931 = vpop.f32.mrf.mxu0
  %v1932 = vadd.f32 %v1894, %v1931
  %1933 = vmatmul.f32.gmra.mxu0 %v1906
  %v1934 = vpop.f32.mrf.mxu0
  %v1935 = vadd.f32 %v1894, %v1934
  %1936 = vdwg.mxu0
  %v1937 = vmax.f32 %v1926, 0.0
  %v1938 = vmax.f32 %v1929, 0.0
  %v1939 = vmax.f32 %v1932, 0.0
  %v1940 = vmax.f32 %v1935, 0.0
  %v1941 = vld [vmem:[%s9] sm:$0xff]
  %v1942 = vld [vmem:[%s9 + $0x8] sm:$0xff]
  %v1943 = vld [vmem:[%s9 + $0x10] sm:$0xff]
  %v1944 = vld [vmem:[%s9 + $0x18] sm:$0xff]
  %v1945 = vld [vmem:[%s9 + $0x20] sm:$0xff]
  %v1946 = vld [vmem:[%s9 + $0x28] sm:$0xff]
  %v1947 = vld [vmem:[%s9 + $0x30] sm:$0xff]
  %v1948 = vld [vmem:[%s9 + $0x38] sm:$0xff]
  %v1949 = vld [vmem:[%s10] sm:$0x1]
  %v1951 = vperm.slane %v1949, 0
  %vm1953 = vcmask 523264
  %v1955 = vsel %vm1953, %v1937, 0
  %v1958 = vsel %vm1953, %v1938, 0
  %v1961 = vsel %vm1953, %v1939, 0
  %v1964 = vsel %vm1953, %v1940, 0
  %1966 = vmatpush.msra.mxu0 0.0
  %1967 = vmatpush.msra.mxu0 0.0
  %1968 = vmatpush.msra.mxu0 0.0
  %1969 = vmatpush.msra.mxu0 0.0
  %1970 = vmatpush.msra.mxu0 0.0
  %1971 = vmatpush.msra.mxu0 0.0
  %1972 = vmatpush.msra.mxu0 0.0
  %1973 = vmatpush.msra.mxu0 0.0
  %1974 = vmatpush.msra.mxu0 %v1948
  %1975 = vmatpush.msra.mxu0 %v1947
  %1976 = vmatpush.msra.mxu0 %v1946
  %1977 = vmatpush.msra.mxu0 %v1945
  %1978 = vmatpush.msra.mxu0 %v1944
  %1979 = vmatpush.msra.mxu0 %v1943
  %1980 = vmatpush.msra.mxu0 %v1942
  %1981 = vmatpush.msra.mxu0 %v1941
  %1982 = vmatmul.f32.gmra.mxu0 %v1955
  %v1983 = vpop.f32.mrf.mxu0
  %v1984 = vadd.f32 %v1951, %v1983
  %1985 = vmatmul.f32.gmra.mxu0 %v1958
  %v1986 = vpop.f32.mrf.mxu0
  %v1987 = vadd.f32 %v1951, %v1986
  %1988 = vmatmul.f32.gmra.mxu0 %v1961
  %v1989 = vpop.f32.mrf.mxu0
  %v1990 = vadd.f32 %v1951, %v1989
  %1991 = vmatmul.f32.gmra.mxu0 %v1964
  %v1992 = vpop.f32.mrf.mxu0
  %v1993 = vadd.f32 %v1951, %v1992
  %1994 = vdwg.mxu0
  %v1995 = vld [vmem:[%s11] sm:$0x3]
  %v1996 = vadd.f32 %v1884, %v1984
  %v1997 = vadd.f32 %v1885, %v1987
  %v1998 = vadd.f32 %v1886, %v1990
  %v1999 = vadd.f32 %v1887, %v1993
  %v2000 = vsel %vm87, %v1996, 0.0
  %2001 = vadd.xlane.f32.xlu0 %v2000
  %v2002 = vpop.xlane.xlu0 %2001
  %v2003 = vsel %vm87, %v1997, 0.0
  %2004 = vadd.xlane.f32.xlu0 %v2003
  %v2005 = vpop.xlane.xlu0 %2004
  %v2006 = vsel %vm87, %v1998, 0.0
  %2007 = vadd.xlane.f32.xlu0 %v2006
  %v2008 = vpop.xlane.xlu0 %2007
  %v2009 = vsel %vm87, %v1999, 0.0
  %2010 = vadd.xlane.f32.xlu0 %v2009
  %v2011 = vpop.xlane.xlu0 %2010
  %v2012 = vmul.f32 %v2002, %v1801
  %v2013 = vmul.f32 %v2005, %v1801
  %v2014 = vmul.f32 %v2008, %v1801
  %v2015 = vmul.f32 %v2011, %v1801
  %v2016 = vsub.f32 %v1996, %v2012
  %v2017 = vsub.f32 %v1997, %v2013
  %v2018 = vsub.f32 %v1998, %v2014
  %v2019 = vsub.f32 %v1999, %v2015
  %v2020 = vmul.f32 %v2016, %v2016
  %v2021 = vmul.f32 %v2017, %v2017
  %v2022 = vmul.f32 %v2018, %v2018
  %v2023 = vmul.f32 %v2019, %v2019
  %v2024 = vsel %vm87, %v2020, 0.0
  %2025 = vadd.xlane.f32.xlu0 %v2024
  %v2026 = vpop.xlane.xlu0 %2025
  %v2027 = vsel %vm87, %v2021, 0.0
  %2028 = vadd.xlane.f32.xlu0 %v2027
  %v2029 = vpop.xlane.xlu0 %2028
  %v2030 = vsel %vm87, %v2022, 0.0
  %2031 = vadd.xlane.f32.xlu0 %v2030
  %v2032 = vpop.xlane.xlu0 %2031
  %v2033 = vsel %vm87, %v2023, 0.0
  %2034 = vadd.xlane.f32.xlu0 %v2033
  %v2035 = vpop.xlane.xlu0 %2034
  %v2036 = vmul.f32 %v2026, %v1801
  %v2037 = vmul.f32 %v2029, %v1801
  %v2038 = vmul.f32 %v2032, %v1801
  %v2039 = vmul.f32 %v2035, %v1801
  %v2040 = vadd.f32 %v2036, 1e-05
  %v2041 = vadd.f32 %v2037, 1e-05
  %v2042 = vadd.f32 %v2038, 1e-05
  %v2043 = vadd.f32 %v2039, 1e-05
  %v2044 = vrsqrt.pop %v2040
  %v2045 = vmul.f32 %v2044, %v2040
  %v2046 = vmul.f32 %v2045, %v2044
  %v2047 = vmul.f32 0.5, %v2046
  %v2048 = vsub.f32 1.5, %v2047
  %v2049 = vmul.f32 %v2044, %v2048
  %vm2050 = vweird.f32 %v2040
  %vm2051 = vweird.f32 %v2044
  %vm2052 = vmor %vm2050, %vm2051
  %v2053 = vsel %vm2052, %v2044, %v2049
  %v2054 = vrsqrt.pop %v2041
  %v2055 = vmul.f32 %v2054, %v2041
  %v2056 = vmul.f32 %v2055, %v2054
  %v2057 = vmul.f32 0.5, %v2056
  %v2058 = vsub.f32 1.5, %v2057
  %v2059 = vmul.f32 %v2054, %v2058
  %vm2060 = vweird.f32 %v2041
  %vm2061 = vweird.f32 %v2054
  %vm2062 = vmor %vm2060, %vm2061
  %v2063 = vsel %vm2062, %v2054, %v2059
  %v2064 = vrsqrt.pop %v2042
  %v2065 = vmul.f32 %v2064, %v2042
  %v2066 = vmul.f32 %v2065, %v2064
  %v2067 = vmul.f32 0.5, %v2066
  %v2068 = vsub.f32 1.5, %v2067
  %v2069 = vmul.f32 %v2064, %v2068
  %vm2070 = vweird.f32 %v2042
  %vm2071 = vweird.f32 %v2064
  %vm2072 = vmor %vm2070, %vm2071
  %v2073 = vsel %vm2072, %v2064, %v2069
  %v2074 = vrsqrt.pop %v2043
  %v2075 = vmul.f32 %v2074, %v2043
  %v2076 = vmul.f32 %v2075, %v2074
  %v2077 = vmul.f32 0.5, %v2076
  %v2078 = vsub.f32 1.5, %v2077
  %v2079 = vmul.f32 %v2074, %v2078
  %vm2080 = vweird.f32 %v2043
  %vm2081 = vweird.f32 %v2074
  %vm2082 = vmor %vm2080, %vm2081
  %v2083 = vsel %vm2082, %v2074, %v2079
  %v2084 = vmul.f32 %v2016, %v2053
  %v2085 = vmul.f32 %v2017, %v2063
  %v2086 = vmul.f32 %v2018, %v2073
  %v2087 = vmul.f32 %v2019, %v2083
  %v2088 = vperm.slane %v1995, 0
  %v2089 = vmul.f32 %v2084, %v2088
  %v2090 = vmul.f32 %v2085, %v2088
  %v2091 = vmul.f32 %v2086, %v2088
  %v2092 = vmul.f32 %v2087, %v2088
  %v2093 = vperm.slane %v1995, 1
  %v2094 = vadd.f32 %v2089, %v2093
  %v2095 = vadd.f32 %v2090, %v2093
  %v2096 = vadd.f32 %v2091, %v2093
  %v2097 = vadd.f32 %v2092, %v2093
  %s2098 = scalar_lea.vmem %s2, 32
  %v2099 = vld [vmem:[%s2098] sm:$0xff]
  %v2100 = vld [vmem:[%s2098 + $0x8] sm:$0xff]
  %v2101 = vld [vmem:[%s2098 + $0x10] sm:$0xff]
  %v2102 = vld [vmem:[%s2098 + $0x18] sm:$0xff]
  %s2103 = scalar_lea.vmem %s3, 1
  %v2104 = vld [vmem:[%s2103] sm:$0x1]
  %v2106 = vperm.slane %v2104, 0
  %v2109 = vsel %vm87, %v2094, 0
  %v2112 = vsel %vm87, %v2095, 0
  %v2115 = vsel %vm87, %v2096, 0
  %v2118 = vsel %vm87, %v2097, 0
  %2120 = vmatpush.msra.mxu0 0.0
  %2121 = vmatpush.msra.mxu0 0.0
  %2122 = vmatpush.msra.mxu0 0.0
  %2123 = vmatpush.msra.mxu0 0.0
  %2124 = vmatpush.msra.mxu0 0.0
  %2125 = vmatpush.msra.mxu0 0.0
  %2126 = vmatpush.msra.mxu0 0.0
  %2127 = vmatpush.msra.mxu0 0.0
  %2128 = vmatpush.msra.mxu0 0.0
  %2129 = vmatpush.msra.mxu0 0.0
  %2130 = vmatpush.msra.mxu0 0.0
  %2131 = vmatpush.msra.mxu0 0.0
  %2132 = vmatpush.msra.mxu0 %v2102
  %2133 = vmatpush.msra.mxu0 %v2101
  %2134 = vmatpush.msra.mxu0 %v2100
  %2135 = vmatpush.msra.mxu0 %v2099
  %2136 = vmatmul.f32.gmra.mxu0 %v2109
  %v2137 = vpop.f32.mrf.mxu0
  %v2138 = vadd.f32 %v2106, %v2137
  %2139 = vmatmul.f32.gmra.mxu0 %v2112
  %v2140 = vpop.f32.mrf.mxu0
  %v2141 = vadd.f32 %v2106, %v2140
  %2142 = vmatmul.f32.gmra.mxu0 %v2115
  %v2143 = vpop.f32.mrf.mxu0
  %v2144 = vadd.f32 %v2106, %v2143
  %2145 = vmatmul.f32.gmra.mxu0 %v2118
  %v2146 = vpop.f32.mrf.mxu0
  %v2147 = vadd.f32 %v2106, %v2146
  %2148 = vdwg.mxu0
  %s2149 = scalar_lea.vmem %s4, 32
  %v2150 = vld [vmem:[%s2149] sm:$0xff]
  %v2151 = vld [vmem:[%s2149 + $0x8] sm:$0xff]
  %v2152 = vld [vmem:[%s2149 + $0x10] sm:$0xff]
  %v2153 = vld [vmem:[%s2149 + $0x18] sm:$0xff]
  %2155 = vrot.lane.b32.xlu0 %v2138, 96
  %v2156 = vpop.permute.xlu0 %2155
  %v2157 = vsel %vm136, %v2138, 0
  %v2159 = vsel %vm136, %v2156, 0
  %2161 = vmatpush.xpose.msra.mxu0 0.0
  %2162 = vmatpush.xpose.msra.mxu0 0.0
  %2163 = vmatpush.xpose.msra.mxu0 0.0
  %2164 = vmatpush.xpose.msra.mxu0 0.0
  %2165 = vmatpush.xpose.msra.mxu0 0.0
  %2166 = vmatpush.xpose.msra.mxu0 0.0
  %2167 = vmatpush.xpose.msra.mxu0 0.0
  %2168 = vmatpush.xpose.msra.mxu0 0.0
  %2169 = vmatpush.xpose.msra.mxu0 0.0
  %2170 = vmatpush.xpose.msra.mxu0 0.0
  %2171 = vmatpush.xpose.msra.mxu0 0.0
  %2172 = vmatpush.xpose.msra.mxu0 0.0
  %2173 = vmatpush.xpose.msra.mxu0 0.0
  %2174 = vmatpush.xpose.msra.mxu0 0.0
  %2175 = vmatpush.xpose.msra.mxu0 0.0
  %2176 = vmatpush.xpose.msra.mxu0 %v2159
  %2177 = vmatmul.f32.gmra.mxu0 %v2157
  %v2178 = vpop.f32.mrf.mxu0
  %v2179 = vadd.f32 0.0, %v2178
  %2180 = vdwg.mxu0
  %v2181 = vmul.f32 %v2179, 0.35355338
  %v2182 = vsel %vm136, %v2181, -inf
  %2183 = vmax.xlane.f32.xlu0 %v2182
  %v2184 = vpop.xlane.xlu0 %2183
  %v2185 = vsub.f32 %v2181, %v2184
  %v2186 = vmul.f32 %v2185, 1.442695
  %v2187 = vpow.pop %v2186
  %v2188 = vsel %vm136, %v2187, 0.0
  %2189 = vadd.xlane.f32.xlu0 %v2188
  %v2190 = vpop.xlane.xlu0 %2189
  %v2191 = vrcp.pop %v2190
  %v2192 = vmul.f32 %v2190, %v2191
  %v2193 = vsub.f32 1.0, %v2192
  %v2194 = vmul.f32 %v2191, %v2193
  %v2195 = vadd.f32 %v2191, %v2194
  %vm2196 = vweird.f32 %v2190
  %vm2197 = vweird.f32 %v2191
  %vm2198 = vmor %vm2196, %vm2197
  %v2199 = vsel %vm2198, %v2191, %v2195
  %v2200 = vand.u32 2147483647, %v2190
  %vm2201 = vcmp.eq.f32.partialorder %v2200, 8.507059e+37
  %v2202 = vand.u32 %v2190, 2147483648
  %v2203 = vor.u32 1.1754944e-38, %v2202
  %v2204 = vsel %vm2201, %v2203, %v2199
  %v2205 = vmul.f32 %v2187, %v2204
  %2206 = vrot.lane.b32.xlu0 %v2138, 64
  %v2207 = vpop.permute.xlu0 %2206
  %v2210 = vsel %vm136, %v2205, 0
  %2212 = vmatpush.msra.mxu0 0.0
  %2213 = vmatpush.msra.mxu0 0.0
  %2214 = vmatpush.msra.mxu0 0.0
  %2215 = vmatpush.msra.mxu0 0.0
  %2216 = vmatpush.msra.mxu0 0.0
  %2217 = vmatpush.msra.mxu0 0.0
  %2218 = vmatpush.msra.mxu0 0.0
  %2219 = vmatpush.msra.mxu0 0.0
  %2220 = vmatpush.msra.mxu0 0.0
  %2221 = vmatpush.msra.mxu0 0.0
  %2222 = vmatpush.msra.mxu0 0.0
  %2223 = vmatpush.msra.mxu0 0.0
  %2224 = vmatpush.msra.mxu0 0.0
  %2225 = vmatpush.msra.mxu0 0.0
  %2226 = vmatpush.msra.mxu0 0.0
  %2227 = vmatpush.msra.mxu0 %v2207
  %2228 = vmatmul.f32.gmra.mxu0 %v2210
  %v2229 = vpop.f32.mrf.mxu0
  %v2230 = vadd.f32 0.0, %v2229
  %2231 = vdwg.mxu0
  %2232 = vrot.lane.b32.xlu0 %v2138, 120
  %v2233 = vpop.permute.xlu0 %2232
  %2234 = vrot.lane.b32.xlu0 %v2138, 88
  %v2235 = vpop.permute.xlu0 %2234
  %v2236 = vsel %vm136, %v2233, 0
  %v2238 = vsel %vm136, %v2235, 0
  %2240 = vmatpush.xpose.msra.mxu0 0.0
  %2241 = vmatpush.xpose.msra.mxu0 0.0
  %2242 = vmatpush.xpose.msra.mxu0 0.0
  %2243 = vmatpush.xpose.msra.mxu0 0.0
  %2244 = vmatpush.xpose.msra.mxu0 0.0
  %2245 = vmatpush.xpose.msra.mxu0 0.0
  %2246 = vmatpush.xpose.msra.mxu0 0.0
  %2247 = vmatpush.xpose.msra.mxu0 0.0
  %2248 = vmatpush.xpose.msra.mxu0 0.0
  %2249 = vmatpush.xpose.msra.mxu0 0.0
  %2250 = vmatpush.xpose.msra.mxu0 0.0
  %2251 = vmatpush.xpose.msra.mxu0 0.0
  %2252 = vmatpush.xpose.msra.mxu0 0.0
  %2253 = vmatpush.xpose.msra.mxu0 0.0
  %2254 = vmatpush.xpose.msra.mxu0 0.0
  %2255 = vmatpush.xpose.msra.mxu0 %v2238
  %2256 = vmatmul.f32.gmra.mxu0 %v2236
  %v2257 = vpop.f32.mrf.mxu0
  %v2258 = vadd.f32 0.0, %v2257
  %2259 = vdwg.mxu0
  %v2260 = vmul.f32 %v2258, 0.35355338
  %v2261 = vsel %vm136, %v2260, -inf
  %2262 = vmax.xlane.f32.xlu0 %v2261
  %v2263 = vpop.xlane.xlu0 %2262
  %v2264 = vsub.f32 %v2260, %v2263
  %v2265 = vmul.f32 %v2264, 1.442695
  %v2266 = vpow.pop %v2265
  %v2267 = vsel %vm136, %v2266, 0.0
  %2268 = vadd.xlane.f32.xlu0 %v2267
  %v2269 = vpop.xlane.xlu0 %2268
  %v2270 = vrcp.pop %v2269
  %v2271 = vmul.f32 %v2269, %v2270
  %v2272 = vsub.f32 1.0, %v2271
  %v2273 = vmul.f32 %v2270, %v2272
  %v2274 = vadd.f32 %v2270, %v2273
  %vm2275 = vweird.f32 %v2269
  %vm2276 = vweird.f32 %v2270
  %vm2277 = vmor %vm2275, %vm2276
  %v2278 = vsel %vm2277, %v2270, %v2274
  %v2279 = vand.u32 2147483647, %v2269
  %vm2280 = vcmp.eq.f32.partialorder %v2279, 8.507059e+37
  %v2281 = vand.u32 %v2269, 2147483648
  %v2282 = vor.u32 1.1754944e-38, %v2281
  %v2283 = vsel %vm2280, %v2282, %v2278
  %v2284 = vmul.f32 %v2266, %v2283
  %2285 = vrot.lane.b32.xlu0 %v2138, 56
  %v2286 = vpop.permute.xlu0 %2285
  %v2289 = vsel %vm136, %v2284, 0
  %2291 = vmatpush.msra.mxu0 0.0
  %2292 = vmatpush.msra.mxu0 0.0
  %2293 = vmatpush.msra.mxu0 0.0
  %2294 = vmatpush.msra.mxu0 0.0
  %2295 = vmatpush.msra.mxu0 0.0
  %2296 = vmatpush.msra.mxu0 0.0
  %2297 = vmatpush.msra.mxu0 0.0
  %2298 = vmatpush.msra.mxu0 0.0
  %2299 = vmatpush.msra.mxu0 0.0
  %2300 = vmatpush.msra.mxu0 0.0
  %2301 = vmatpush.msra.mxu0 0.0
  %2302 = vmatpush.msra.mxu0 0.0
  %2303 = vmatpush.msra.mxu0 0.0
  %2304 = vmatpush.msra.mxu0 0.0
  %2305 = vmatpush.msra.mxu0 0.0
  %2306 = vmatpush.msra.mxu0 %v2286
  %2307 = vmatmul.f32.gmra.mxu0 %v2289
  %v2308 = vpop.f32.mrf.mxu0
  %v2309 = vadd.f32 0.0, %v2308
  %2310 = vdwg.mxu0
  %v2312 = vsel %vm136, %v2309, 0
  %2314 = vmatpush.msra.mxu0 0.0
  %2315 = vmatpush.msra.mxu0 0.0
  %2316 = vmatpush.msra.mxu0 0.0
  %2317 = vmatpush.msra.mxu0 0.0
  %2318 = vmatpush.msra.mxu0 0.0
  %2319 = vmatpush.msra.mxu0 0.0
  %2320 = vmatpush.msra.mxu0 0.0
  %2321 = vmatpush.msra.mxu0 0.0
  %2322 = vmatpush.msra.mxu0 0.0
  %2323 = vmatpush.msra.mxu0 0.0
  %2324 = vmatpush.msra.mxu0 0.0
  %2325 = vmatpush.msra.mxu0 0.0
  %2326 = vmatpush.msra.mxu0 0.0
  %2327 = vmatpush.msra.mxu0 0.0
  %2328 = vmatpush.msra.mxu0 0.0
  %2329 = vmatpush.msra.mxu0 %v2151
  %2330 = vmatmul.f32.gmra.mxu0 %v2312
  %v2331 = vpop.f32.mrf.mxu0
  %v2332 = vadd.f32 0.0, %v2331
  %2333 = vdwg.mxu0
  %v2335 = vsel %vm136, %v2230, 0
  %2337 = vmatpush.msra.mxu0 0.0
  %2338 = vmatpush.msra.mxu0 0.0
  %2339 = vmatpush.msra.mxu0 0.0
  %2340 = vmatpush.msra.mxu0 0.0
  %2341 = vmatpush.msra.mxu0 0.0
  %2342 = vmatpush.msra.mxu0 0.0
  %2343 = vmatpush.msra.mxu0 0.0
  %2344 = vmatpush.msra.mxu0 0.0
  %2345 = vmatpush.msra.mxu0 0.0
  %2346 = vmatpush.msra.mxu0 0.0
  %2347 = vmatpush.msra.mxu0 0.0
  %2348 = vmatpush.msra.mxu0 0.0
  %2349 = vmatpush.msra.mxu0 0.0
  %2350 = vmatpush.msra.mxu0 0.0
  %2351 = vmatpush.msra.mxu0 0.0
  %2352 = vmatpush.msra.mxu0 %v2150
  %2353 = vmatmul.f32.gmra.mxu0 %v2335
  %v2354 = vpop.f32.mrf.mxu0
  %v2355 = vadd.f32 %v2332, %v2354
  %2356 = vdwg.mxu0
  %2357 = vrot.lane.b32.xlu0 %v2138, 112
  %v2358 = vpop.permute.xlu0 %2357
  %2359 = vrot.lane.b32.xlu0 %v2138, 80
  %v2360 = vpop.permute.xlu0 %2359
  %v2361 = vsel %vm136, %v2358, 0
  %v2363 = vsel %vm136, %v2360, 0
  %2365 = vmatpush.xpose.msra.mxu0 0.0
  %2366 = vmatpush.xpose.msra.mxu0 0.0
  %2367 = vmatpush.xpose.msra.mxu0 0.0
  %2368 = vmatpush.xpose.msra.mxu0 0.0
  %2369 = vmatpush.xpose.msra.mxu0 0.0
  %2370 = vmatpush.xpose.msra.mxu0 0.0
  %2371 = vmatpush.xpose.msra.mxu0 0.0
  %2372 = vmatpush.xpose.msra.mxu0 0.0
  %2373 = vmatpush.xpose.msra.mxu0 0.0
  %2374 = vmatpush.xpose.msra.mxu0 0.0
  %2375 = vmatpush.xpose.msra.mxu0 0.0
  %2376 = vmatpush.xpose.msra.mxu0 0.0
  %2377 = vmatpush.xpose.msra.mxu0 0.0
  %2378 = vmatpush.xpose.msra.mxu0 0.0
  %2379 = vmatpush.xpose.msra.mxu0 0.0
  %2380 = vmatpush.xpose.msra.mxu0 %v2363
  %2381 = vmatmul.f32.gmra.mxu0 %v2361
  %v2382 = vpop.f32.mrf.mxu0
  %v2383 = vadd.f32 0.0, %v2382
  %2384 = vdwg.mxu0
  %v2385 = vmul.f32 %v2383, 0.35355338
  %v2386 = vsel %vm136, %v2385, -inf
  %2387 = vmax.xlane.f32.xlu0 %v2386
  %v2388 = vpop.xlane.xlu0 %2387
  %v2389 = vsub.f32 %v2385, %v2388
  %v2390 = vmul.f32 %v2389, 1.442695
  %v2391 = vpow.pop %v2390
  %v2392 = vsel %vm136, %v2391, 0.0
  %2393 = vadd.xlane.f32.xlu0 %v2392
  %v2394 = vpop.xlane.xlu0 %2393
  %v2395 = vrcp.pop %v2394
  %v2396 = vmul.f32 %v2394, %v2395
  %v2397 = vsub.f32 1.0, %v2396
  %v2398 = vmul.f32 %v2395, %v2397
  %v2399 = vadd.f32 %v2395, %v2398
  %vm2400 = vweird.f32 %v2394
  %vm2401 = vweird.f32 %v2395
  %vm2402 = vmor %vm2400, %vm2401
  %v2403 = vsel %vm2402, %v2395, %v2399
  %v2404 = vand.u32 2147483647, %v2394
  %vm2405 = vcmp.eq.f32.partialorder %v2404, 8.507059e+37
  %v2406 = vand.u32 %v2394, 2147483648
  %v2407 = vor.u32 1.1754944e-38, %v2406
  %v2408 = vsel %vm2405, %v2407, %v2403
  %v2409 = vmul.f32 %v2391, %v2408
  %2410 = vrot.lane.b32.xlu0 %v2138, 48
  %v2411 = vpop.permute.xlu0 %2410
  %v2414 = vsel %vm136, %v2409, 0
  %2416 = vmatpush.msra.mxu0 0.0
  %2417 = vmatpush.msra.mxu0 0.0
  %2418 = vmatpush.msra.mxu0 0.0
  %2419 = vmatpush.msra.mxu0 0.0
  %2420 = vmatpush.msra.mxu0 0.0
  %2421 = vmatpush.msra.mxu0 0.0
  %2422 = vmatpush.msra.mxu0 0.0
  %2423 = vmatpush.msra.mxu0 0.0
  %2424 = vmatpush.msra.mxu0 0.0
  %2425 = vmatpush.msra.mxu0 0.0
  %2426 = vmatpush.msra.mxu0 0.0
  %2427 = vmatpush.msra.mxu0 0.0
  %2428 = vmatpush.msra.mxu0 0.0
  %2429 = vmatpush.msra.mxu0 0.0
  %2430 = vmatpush.msra.mxu0 0.0
  %2431 = vmatpush.msra.mxu0 %v2411
  %2432 = vmatmul.f32.gmra.mxu0 %v2414
  %v2433 = vpop.f32.mrf.mxu0
  %v2434 = vadd.f32 0.0, %v2433
  %2435 = vdwg.mxu0
  %v2437 = vsel %vm136, %v2434, 0
  %2439 = vmatpush.msra.mxu0 0.0
  %2440 = vmatpush.msra.mxu0 0.0
  %2441 = vmatpush.msra.mxu0 0.0
  %2442 = vmatpush.msra.mxu0 0.0
  %2443 = vmatpush.msra.mxu0 0.0
  %2444 = vmatpush.msra.mxu0 0.0
  %2445 = vmatpush.msra.mxu0 0.0
  %2446 = vmatpush.msra.mxu0 0.0
  %2447 = vmatpush.msra.mxu0 0.0
  %2448 = vmatpush.msra.mxu0 0.0
  %2449 = vmatpush.msra.mxu0 0.0
  %2450 = vmatpush.msra.mxu0 0.0
  %2451 = vmatpush.msra.mxu0 0.0
  %2452 = vmatpush.msra.mxu0 0.0
  %2453 = vmatpush.msra.mxu0 0.0
  %2454 = vmatpush.msra.mxu0 %v2152
  %2455 = vmatmul.f32.gmra.mxu0 %v2437
  %v2456 = vpop.f32.mrf.mxu0
  %v2457 = vadd.f32 0.0, %v2456
  %2458 = vdwg.mxu0
  %v2459 = vadd.f32 %v2355, %v2457
  %2460 = vrot.lane.b32.xlu0 %v2138, 104
  %v2461 = vpop.permute.xlu0 %2460
  %2462 = vrot.lane.b32.xlu0 %v2138, 72
  %v2463 = vpop.permute.xlu0 %2462
  %v2464 = vsel %vm136, %v2461, 0
  %v2466 = vsel %vm136, %v2463, 0
  %2468 = vmatpush.xpose.msra.mxu0 0.0
  %2469 = vmatpush.xpose.msra.mxu0 0.0
  %2470 = vmatpush.xpose.msra.mxu0 0.0
  %2471 = vmatpush.xpose.msra.mxu0 0.0
  %2472 = vmatpush.xpose.msra.mxu0 0.0
  %2473 = vmatpush.xpose.msra.mxu0 0.0
  %2474 = vmatpush.xpose.msra.mxu0 0.0
  %2475 = vmatpush.xpose.msra.mxu0 0.0
  %2476 = vmatpush.xpose.msra.mxu0 0.0
  %2477 = vmatpush.xpose.msra.mxu0 0.0
  %2478 = vmatpush.xpose.msra.mxu0 0.0
  %2479 = vmatpush.xpose.msra.mxu0 0.0
  %2480 = vmatpush.xpose.msra.mxu0 0.0
  %2481 = vmatpush.xpose.msra.mxu0 0.0
  %2482 = vmatpush.xpose.msra.mxu0 0.0
  %2483 = vmatpush.xpose.msra.mxu0 %v2466
  %2484 = vmatmul.f32.gmra.mxu0 %v2464
  %v2485 = vpop.f32.mrf.mxu0
  %v2486 = vadd.f32 0.0, %v2485
  %2487 = vdwg.mxu0
  %v2488 = vmul.f32 %v2486, 0.35355338
  %v2489 = vsel %vm136, %v2488, -inf
  %2490 = vmax.xlane.f32.xlu0 %v2489
  %v2491 = vpop.xlane.xlu0 %2490
  %v2492 = vsub.f32 %v2488, %v2491
  %v2493 = vmul.f32 %v2492, 1.442695
  %v2494 = vpow.pop %v2493
  %v2495 = vsel %vm136, %v2494, 0.0
  %2496 = vadd.xlane.f32.xlu0 %v2495
  %v2497 = vpop.xlane.xlu0 %2496
  %v2498 = vrcp.pop %v2497
  %v2499 = vmul.f32 %v2497, %v2498
  %v2500 = vsub.f32 1.0, %v2499
  %v2501 = vmul.f32 %v2498, %v2500
  %v2502 = vadd.f32 %v2498, %v2501
  %vm2503 = vweird.f32 %v2497
  %vm2504 = vweird.f32 %v2498
  %vm2505 = vmor %vm2503, %vm2504
  %v2506 = vsel %vm2505, %v2498, %v2502
  %v2507 = vand.u32 2147483647, %v2497
  %vm2508 = vcmp.eq.f32.partialorder %v2507, 8.507059e+37
  %v2509 = vand.u32 %v2497, 2147483648
  %v2510 = vor.u32 1.1754944e-38, %v2509
  %v2511 = vsel %vm2508, %v2510, %v2506
  %v2512 = vmul.f32 %v2494, %v2511
  %2513 = vrot.lane.b32.xlu0 %v2138, 40
  %v2514 = vpop.permute.xlu0 %2513
  %v2517 = vsel %vm136, %v2512, 0
  %2519 = vmatpush.msra.mxu0 0.0
  %2520 = vmatpush.msra.mxu0 0.0
  %2521 = vmatpush.msra.mxu0 0.0
  %2522 = vmatpush.msra.mxu0 0.0
  %2523 = vmatpush.msra.mxu0 0.0
  %2524 = vmatpush.msra.mxu0 0.0
  %2525 = vmatpush.msra.mxu0 0.0
  %2526 = vmatpush.msra.mxu0 0.0
  %2527 = vmatpush.msra.mxu0 0.0
  %2528 = vmatpush.msra.mxu0 0.0
  %2529 = vmatpush.msra.mxu0 0.0
  %2530 = vmatpush.msra.mxu0 0.0
  %2531 = vmatpush.msra.mxu0 0.0
  %2532 = vmatpush.msra.mxu0 0.0
  %2533 = vmatpush.msra.mxu0 0.0
  %2534 = vmatpush.msra.mxu0 %v2514
  %2535 = vmatmul.f32.gmra.mxu0 %v2517
  %v2536 = vpop.f32.mrf.mxu0
  %v2537 = vadd.f32 0.0, %v2536
  %2538 = vdwg.mxu0
  %v2540 = vsel %vm136, %v2537, 0
  %2542 = vmatpush.msra.mxu0 0.0
  %2543 = vmatpush.msra.mxu0 0.0
  %2544 = vmatpush.msra.mxu0 0.0
  %2545 = vmatpush.msra.mxu0 0.0
  %2546 = vmatpush.msra.mxu0 0.0
  %2547 = vmatpush.msra.mxu0 0.0
  %2548 = vmatpush.msra.mxu0 0.0
  %2549 = vmatpush.msra.mxu0 0.0
  %2550 = vmatpush.msra.mxu0 0.0
  %2551 = vmatpush.msra.mxu0 0.0
  %2552 = vmatpush.msra.mxu0 0.0
  %2553 = vmatpush.msra.mxu0 0.0
  %2554 = vmatpush.msra.mxu0 0.0
  %2555 = vmatpush.msra.mxu0 0.0
  %2556 = vmatpush.msra.mxu0 0.0
  %2557 = vmatpush.msra.mxu0 %v2153
  %2558 = vmatmul.f32.gmra.mxu0 %v2540
  %v2559 = vpop.f32.mrf.mxu0
  %v2560 = vadd.f32 0.0, %v2559
  %2561 = vdwg.mxu0
  %v2562 = vadd.f32 %v2459, %v2560
  %2564 = vrot.lane.b32.xlu0 %v2141, 96
  %v2565 = vpop.permute.xlu0 %2564
  %v2566 = vsel %vm136, %v2141, 0
  %v2568 = vsel %vm136, %v2565, 0
  %2570 = vmatpush.xpose.msra.mxu0 0.0
  %2571 = vmatpush.xpose.msra.mxu0 0.0
  %2572 = vmatpush.xpose.msra.mxu0 0.0
  %2573 = vmatpush.xpose.msra.mxu0 0.0
  %2574 = vmatpush.xpose.msra.mxu0 0.0
  %2575 = vmatpush.xpose.msra.mxu0 0.0
  %2576 = vmatpush.xpose.msra.mxu0 0.0
  %2577 = vmatpush.xpose.msra.mxu0 0.0
  %2578 = vmatpush.xpose.msra.mxu0 0.0
  %2579 = vmatpush.xpose.msra.mxu0 0.0
  %2580 = vmatpush.xpose.msra.mxu0 0.0
  %2581 = vmatpush.xpose.msra.mxu0 0.0
  %2582 = vmatpush.xpose.msra.mxu0 0.0
  %2583 = vmatpush.xpose.msra.mxu0 0.0
  %2584 = vmatpush.xpose.msra.mxu0 0.0
  %2585 = vmatpush.xpose.msra.mxu0 %v2568
  %2586 = vmatmul.f32.gmra.mxu0 %v2566
  %v2587 = vpop.f32.mrf.mxu0
  %v2588 = vadd.f32 0.0, %v2587
  %2589 = vdwg.mxu0
  %v2590 = vmul.f32 %v2588, 0.35355338
  %v2591 = vsel %vm136, %v2590, -inf
  %2592 = vmax.xlane.f32.xlu0 %v2591
  %v2593 = vpop.xlane.xlu0 %2592
  %v2594 = vsub.f32 %v2590, %v2593
  %v2595 = vmul.f32 %v2594, 1.442695
  %v2596 = vpow.pop %v2595
  %v2597 = vsel %vm136, %v2596, 0.0
  %2598 = vadd.xlane.f32.xlu0 %v2597
  %v2599 = vpop.xlane.xlu0 %2598
  %v2600 = vrcp.pop %v2599
  %v2601 = vmul.f32 %v2599, %v2600
  %v2602 = vsub.f32 1.0, %v2601
  %v2603 = vmul.f32 %v2600, %v2602
  %v2604 = vadd.f32 %v2600, %v2603
  %vm2605 = vweird.f32 %v2599
  %vm2606 = vweird.f32 %v2600
  %vm2607 = vmor %vm2605, %vm2606
  %v2608 = vsel %vm2607, %v2600, %v2604
  %v2609 = vand.u32 2147483647, %v2599
  %vm2610 = vcmp.eq.f32.partialorder %v2609, 8.507059e+37
  %v2611 = vand.u32 %v2599, 2147483648
  %v2612 = vor.u32 1.1754944e-38, %v2611
  %v2613 = vsel %vm2610, %v2612, %v2608
  %v2614 = vmul.f32 %v2596, %v2613
  %2615 = vrot.lane.b32.xlu0 %v2141, 64
  %v2616 = vpop.permute.xlu0 %2615
  %v2619 = vsel %vm136, %v2614, 0
  %2621 = vmatpush.msra.mxu0 0.0
  %2622 = vmatpush.msra.mxu0 0.0
  %2623 = vmatpush.msra.mxu0 0.0
  %2624 = vmatpush.msra.mxu0 0.0
  %2625 = vmatpush.msra.mxu0 0.0
  %2626 = vmatpush.msra.mxu0 0.0
  %2627 = vmatpush.msra.mxu0 0.0
  %2628 = vmatpush.msra.mxu0 0.0
  %2629 = vmatpush.msra.mxu0 0.0
  %2630 = vmatpush.msra.mxu0 0.0
  %2631 = vmatpush.msra.mxu0 0.0
  %2632 = vmatpush.msra.mxu0 0.0
  %2633 = vmatpush.msra.mxu0 0.0
  %2634 = vmatpush.msra.mxu0 0.0
  %2635 = vmatpush.msra.mxu0 0.0
  %2636 = vmatpush.msra.mxu0 %v2616
  %2637 = vmatmul.f32.gmra.mxu0 %v2619
  %v2638 = vpop.f32.mrf.mxu0
  %v2639 = vadd.f32 0.0, %v2638
  %2640 = vdwg.mxu0
  %2641 = vrot.lane.b32.xlu0 %v2141, 120
  %v2642 = vpop.permute.xlu0 %2641
  %2643 = vrot.lane.b32.xlu0 %v2141, 88
  %v2644 = vpop.permute.xlu0 %2643
  %v2645 = vsel %vm136, %v2642, 0
  %v2647 = vsel %vm136, %v2644, 0
  %2649 = vmatpush.xpose.msra.mxu0 0.0
  %2650 = vmatpush.xpose.msra.mxu0 0.0
  %2651 = vmatpush.xpose.msra.mxu0 0.0
  %2652 = vmatpush.xpose.msra.mxu0 0.0
  %2653 = vmatpush.xpose.msra.mxu0 0.0
  %2654 = vmatpush.xpose.msra.mxu0 0.0
  %2655 = vmatpush.xpose.msra.mxu0 0.0
  %2656 = vmatpush.xpose.msra.mxu0 0.0
  %2657 = vmatpush.xpose.msra.mxu0 0.0
  %2658 = vmatpush.xpose.msra.mxu0 0.0
  %2659 = vmatpush.xpose.msra.mxu0 0.0
  %2660 = vmatpush.xpose.msra.mxu0 0.0
  %2661 = vmatpush.xpose.msra.mxu0 0.0
  %2662 = vmatpush.xpose.msra.mxu0 0.0
  %2663 = vmatpush.xpose.msra.mxu0 0.0
  %2664 = vmatpush.xpose.msra.mxu0 %v2647
  %2665 = vmatmul.f32.gmra.mxu0 %v2645
  %v2666 = vpop.f32.mrf.mxu0
  %v2667 = vadd.f32 0.0, %v2666
  %2668 = vdwg.mxu0
  %v2669 = vmul.f32 %v2667, 0.35355338
  %v2670 = vsel %vm136, %v2669, -inf
  %2671 = vmax.xlane.f32.xlu0 %v2670
  %v2672 = vpop.xlane.xlu0 %2671
  %v2673 = vsub.f32 %v2669, %v2672
  %v2674 = vmul.f32 %v2673, 1.442695
  %v2675 = vpow.pop %v2674
  %v2676 = vsel %vm136, %v2675, 0.0
  %2677 = vadd.xlane.f32.xlu0 %v2676
  %v2678 = vpop.xlane.xlu0 %2677
  %v2679 = vrcp.pop %v2678
  %v2680 = vmul.f32 %v2678, %v2679
  %v2681 = vsub.f32 1.0, %v2680
  %v2682 = vmul.f32 %v2679, %v2681
  %v2683 = vadd.f32 %v2679, %v2682
  %vm2684 = vweird.f32 %v2678
  %vm2685 = vweird.f32 %v2679
  %vm2686 = vmor %vm2684, %vm2685
  %v2687 = vsel %vm2686, %v2679, %v2683
  %v2688 = vand.u32 2147483647, %v2678
  %vm2689 = vcmp.eq.f32.partialorder %v2688, 8.507059e+37
  %v2690 = vand.u32 %v2678, 2147483648
  %v2691 = vor.u32 1.1754944e-38, %v2690
  %v2692 = vsel %vm2689, %v2691, %v2687
  %v2693 = vmul.f32 %v2675, %v2692
  %2694 = vrot.lane.b32.xlu0 %v2141, 56
  %v2695 = vpop.permute.xlu0 %2694
  %v2698 = vsel %vm136, %v2693, 0
  %2700 = vmatpush.msra.mxu0 0.0
  %2701 = vmatpush.msra.mxu0 0.0
  %2702 = vmatpush.msra.mxu0 0.0
  %2703 = vmatpush.msra.mxu0 0.0
  %2704 = vmatpush.msra.mxu0 0.0
  %2705 = vmatpush.msra.mxu0 0.0
  %2706 = vmatpush.msra.mxu0 0.0
  %2707 = vmatpush.msra.mxu0 0.0
  %2708 = vmatpush.msra.mxu0 0.0
  %2709 = vmatpush.msra.mxu0 0.0
  %2710 = vmatpush.msra.mxu0 0.0
  %2711 = vmatpush.msra.mxu0 0.0
  %2712 = vmatpush.msra.mxu0 0.0
  %2713 = vmatpush.msra.mxu0 0.0
  %2714 = vmatpush.msra.mxu0 0.0
  %2715 = vmatpush.msra.mxu0 %v2695
  %2716 = vmatmul.f32.gmra.mxu0 %v2698
  %v2717 = vpop.f32.mrf.mxu0
  %v2718 = vadd.f32 0.0, %v2717
  %2719 = vdwg.mxu0
  %v2721 = vsel %vm136, %v2718, 0
  %2723 = vmatpush.msra.mxu0 0.0
  %2724 = vmatpush.msra.mxu0 0.0
  %2725 = vmatpush.msra.mxu0 0.0
  %2726 = vmatpush.msra.mxu0 0.0
  %2727 = vmatpush.msra.mxu0 0.0
  %2728 = vmatpush.msra.mxu0 0.0
  %2729 = vmatpush.msra.mxu0 0.0
  %2730 = vmatpush.msra.mxu0 0.0
  %2731 = vmatpush.msra.mxu0 0.0
  %2732 = vmatpush.msra.mxu0 0.0
  %2733 = vmatpush.msra.mxu0 0.0
  %2734 = vmatpush.msra.mxu0 0.0
  %2735 = vmatpush.msra.mxu0 0.0
  %2736 = vmatpush.msra.mxu0 0.0
  %2737 = vmatpush.msra.mxu0 0.0
  %2738 = vmatpush.msra.mxu0 %v2151
  %2739 = vmatmul.f32.gmra.mxu0 %v2721
  %v2740 = vpop.f32.mrf.mxu0
  %v2741 = vadd.f32 0.0, %v2740
  %2742 = vdwg.mxu0
  %v2744 = vsel %vm136, %v2639, 0
  %2746 = vmatpush.msra.mxu0 0.0
  %2747 = vmatpush.msra.mxu0 0.0
  %2748 = vmatpush.msra.mxu0 0.0
  %2749 = vmatpush.msra.mxu0 0.0
  %2750 = vmatpush.msra.mxu0 0.0
  %2751 = vmatpush.msra.mxu0 0.0
  %2752 = vmatpush.msra.mxu0 0.0
  %2753 = vmatpush.msra.mxu0 0.0
  %2754 = vmatpush.msra.mxu0 0.0
  %2755 = vmatpush.msra.mxu0 0.0
  %2756 = vmatpush.msra.mxu0 0.0
  %2757 = vmatpush.msra.mxu0 0.0
  %2758 = vmatpush.msra.mxu0 0.0
  %2759 = vmatpush.msra.mxu0 0.0
  %2760 = vmatpush.msra.mxu0 0.0
  %2761 = vmatpush.msra.mxu0 %v2150
  %2762 = vmatmul.f32.gmra.mxu0 %v2744
  %v2763 = vpop.f32.mrf.mxu0
  %v2764 = vadd.f32 %v2741, %v2763
  %2765 = vdwg.mxu0
  %2766 = vrot.lane.b32.xlu0 %v2141, 112
  %v2767 = vpop.permute.xlu0 %2766
  %2768 = vrot.lane.b32.xlu0 %v2141, 80
  %v2769 = vpop.permute.xlu0 %2768
  %v2770 = vsel %vm136, %v2767, 0
  %v2772 = vsel %vm136, %v2769, 0
  %2774 = vmatpush.xpose.msra.mxu0 0.0
  %2775 = vmatpush.xpose.msra.mxu0 0.0
  %2776 = vmatpush.xpose.msra.mxu0 0.0
  %2777 = vmatpush.xpose.msra.mxu0 0.0
  %2778 = vmatpush.xpose.msra.mxu0 0.0
  %2779 = vmatpush.xpose.msra.mxu0 0.0
  %2780 = vmatpush.xpose.msra.mxu0 0.0
  %2781 = vmatpush.xpose.msra.mxu0 0.0
  %2782 = vmatpush.xpose.msra.mxu0 0.0
  %2783 = vmatpush.xpose.msra.mxu0 0.0
  %2784 = vmatpush.xpose.msra.mxu0 0.0
  %2785 = vmatpush.xpose.msra.mxu0 0.0
  %2786 = vmatpush.xpose.msra.mxu0 0.0
  %2787 = vmatpush.xpose.msra.mxu0 0.0
  %2788 = vmatpush.xpose.msra.mxu0 0.0
  %2789 = vmatpush.xpose.msra.mxu0 %v2772
  %2790 = vmatmul.f32.gmra.mxu0 %v2770
  %v2791 = vpop.f32.mrf.mxu0
  %v2792 = vadd.f32 0.0, %v2791
  %2793 = vdwg.mxu0
  %v2794 = vmul.f32 %v2792, 0.35355338
  %v2795 = vsel %vm136, %v2794, -inf
  %2796 = vmax.xlane.f32.xlu0 %v2795
  %v2797 = vpop.xlane.xlu0 %2796
  %v2798 = vsub.f32 %v2794, %v2797
  %v2799 = vmul.f32 %v2798, 1.442695
  %v2800 = vpow.pop %v2799
  %v2801 = vsel %vm136, %v2800, 0.0
  %2802 = vadd.xlane.f32.xlu0 %v2801
  %v2803 = vpop.xlane.xlu0 %2802
  %v2804 = vrcp.pop %v2803
  %v2805 = vmul.f32 %v2803, %v2804
  %v2806 = vsub.f32 1.0, %v2805
  %v2807 = vmul.f32 %v2804, %v2806
  %v2808 = vadd.f32 %v2804, %v2807
  %vm2809 = vweird.f32 %v2803
  %vm2810 = vweird.f32 %v2804
  %vm2811 = vmor %vm2809, %vm2810
  %v2812 = vsel %vm2811, %v2804, %v2808
  %v2813 = vand.u32 2147483647, %v2803
  %vm2814 = vcmp.eq.f32.partialorder %v2813, 8.507059e+37
  %v2815 = vand.u32 %v2803, 2147483648
  %v2816 = vor.u32 1.1754944e-38, %v2815
  %v2817 = vsel %vm2814, %v2816, %v2812
  %v2818 = vmul.f32 %v2800, %v2817
  %2819 = vrot.lane.b32.xlu0 %v2141, 48
  %v2820 = vpop.permute.xlu0 %2819
  %v2823 = vsel %vm136, %v2818, 0
  %2825 = vmatpush.msra.mxu0 0.0
  %2826 = vmatpush.msra.mxu0 0.0
  %2827 = vmatpush.msra.mxu0 0.0
  %2828 = vmatpush.msra.mxu0 0.0
  %2829 = vmatpush.msra.mxu0 0.0
  %2830 = vmatpush.msra.mxu0 0.0
  %2831 = vmatpush.msra.mxu0 0.0
  %2832 = vmatpush.msra.mxu0 0.0
  %2833 = vmatpush.msra.mxu0 0.0
  %2834 = vmatpush.msra.mxu0 0.0
  %2835 = vmatpush.msra.mxu0 0.0
  %2836 = vmatpush.msra.mxu0 0.0
  %2837 = vmatpush.msra.mxu0 0.0
  %2838 = vmatpush.msra.mxu0 0.0
  %2839 = vmatpush.msra.mxu0 0.0
  %2840 = vmatpush.msra.mxu0 %v2820
  %2841 = vmatmul.f32.gmra.mxu0 %v2823
  %v2842 = vpop.f32.mrf.mxu0
  %v2843 = vadd.f32 0.0, %v2842
  %2844 = vdwg.mxu0
  %v2846 = vsel %vm136, %v2843, 0
  %2848 = vmatpush.msra.mxu0 0.0
  %2849 = vmatpush.msra.mxu0 0.0
  %2850 = vmatpush.msra.mxu0 0.0
  %2851 = vmatpush.msra.mxu0 0.0
  %2852 = vmatpush.msra.mxu0 0.0
  %2853 = vmatpush.msra.mxu0 0.0
  %2854 = vmatpush.msra.mxu0 0.0
  %2855 = vmatpush.msra.mxu0 0.0
  %2856 = vmatpush.msra.mxu0 0.0
  %2857 = vmatpush.msra.mxu0 0.0
  %2858 = vmatpush.msra.mxu0 0.0
  %2859 = vmatpush.msra.mxu0 0.0
  %2860 = vmatpush.msra.mxu0 0.0
  %2861 = vmatpush.msra.mxu0 0.0
  %2862 = vmatpush.msra.mxu0 0.0
  %2863 = vmatpush.msra.mxu0 %v2152
  %2864 = vmatmul.f32.gmra.mxu0 %v2846
  %v2865 = vpop.f32.mrf.mxu0
  %v2866 = vadd.f32 0.0, %v2865
  %2867 = vdwg.mxu0
  %v2868 = vadd.f32 %v2764, %v2866
  %2869 = vrot.lane.b32.xlu0 %v2141, 104
  %v2870 = vpop.permute.xlu0 %2869
  %2871 = vrot.lane.b32.xlu0 %v2141, 72
  %v2872 = vpop.permute.xlu0 %2871
  %v2873 = vsel %vm136, %v2870, 0
  %v2875 = vsel %vm136, %v2872, 0
  %2877 = vmatpush.xpose.msra.mxu0 0.0
  %2878 = vmatpush.xpose.msra.mxu0 0.0
  %2879 = vmatpush.xpose.msra.mxu0 0.0
  %2880 = vmatpush.xpose.msra.mxu0 0.0
  %2881 = vmatpush.xpose.msra.mxu0 0.0
  %2882 = vmatpush.xpose.msra.mxu0 0.0
  %2883 = vmatpush.xpose.msra.mxu0 0.0
  %2884 = vmatpush.xpose.msra.mxu0 0.0
  %2885 = vmatpush.xpose.msra.mxu0 0.0
  %2886 = vmatpush.xpose.msra.mxu0 0.0
  %2887 = vmatpush.xpose.msra.mxu0 0.0
  %2888 = vmatpush.xpose.msra.mxu0 0.0
  %2889 = vmatpush.xpose.msra.mxu0 0.0
  %2890 = vmatpush.xpose.msra.mxu0 0.0
  %2891 = vmatpush.xpose.msra.mxu0 0.0
  %2892 = vmatpush.xpose.msra.mxu0 %v2875
  %2893 = vmatmul.f32.gmra.mxu0 %v2873
  %v2894 = vpop.f32.mrf.mxu0
  %v2895 = vadd.f32 0.0, %v2894
  %2896 = vdwg.mxu0
  %v2897 = vmul.f32 %v2895, 0.35355338
  %v2898 = vsel %vm136, %v2897, -inf
  %2899 = vmax.xlane.f32.xlu0 %v2898
  %v2900 = vpop.xlane.xlu0 %2899
  %v2901 = vsub.f32 %v2897, %v2900
  %v2902 = vmul.f32 %v2901, 1.442695
  %v2903 = vpow.pop %v2902
  %v2904 = vsel %vm136, %v2903, 0.0
  %2905 = vadd.xlane.f32.xlu0 %v2904
  %v2906 = vpop.xlane.xlu0 %2905
  %v2907 = vrcp.pop %v2906
  %v2908 = vmul.f32 %v2906, %v2907
  %v2909 = vsub.f32 1.0, %v2908
  %v2910 = vmul.f32 %v2907, %v2909
  %v2911 = vadd.f32 %v2907, %v2910
  %vm2912 = vweird.f32 %v2906
  %vm2913 = vweird.f32 %v2907
  %vm2914 = vmor %vm2912, %vm2913
  %v2915 = vsel %vm2914, %v2907, %v2911
  %v2916 = vand.u32 2147483647, %v2906
  %vm2917 = vcmp.eq.f32.partialorder %v2916, 8.507059e+37
  %v2918 = vand.u32 %v2906, 2147483648
  %v2919 = vor.u32 1.1754944e-38, %v2918
  %v2920 = vsel %vm2917, %v2919, %v2915
  %v2921 = vmul.f32 %v2903, %v2920
  %2922 = vrot.lane.b32.xlu0 %v2141, 40
  %v2923 = vpop.permute.xlu0 %2922
  %v2926 = vsel %vm136, %v2921, 0
  %2928 = vmatpush.msra.mxu0 0.0
  %2929 = vmatpush.msra.mxu0 0.0
  %2930 = vmatpush.msra.mxu0 0.0
  %2931 = vmatpush.msra.mxu0 0.0
  %2932 = vmatpush.msra.mxu0 0.0
  %2933 = vmatpush.msra.mxu0 0.0
  %2934 = vmatpush.msra.mxu0 0.0
  %2935 = vmatpush.msra.mxu0 0.0
  %2936 = vmatpush.msra.mxu0 0.0
  %2937 = vmatpush.msra.mxu0 0.0
  %2938 = vmatpush.msra.mxu0 0.0
  %2939 = vmatpush.msra.mxu0 0.0
  %2940 = vmatpush.msra.mxu0 0.0
  %2941 = vmatpush.msra.mxu0 0.0
  %2942 = vmatpush.msra.mxu0 0.0
  %2943 = vmatpush.msra.mxu0 %v2923
  %2944 = vmatmul.f32.gmra.mxu0 %v2926
  %v2945 = vpop.f32.mrf.mxu0
  %v2946 = vadd.f32 0.0, %v2945
  %2947 = vdwg.mxu0
  %v2949 = vsel %vm136, %v2946, 0
  %2951 = vmatpush.msra.mxu0 0.0
  %2952 = vmatpush.msra.mxu0 0.0
  %2953 = vmatpush.msra.mxu0 0.0
  %2954 = vmatpush.msra.mxu0 0.0
  %2955 = vmatpush.msra.mxu0 0.0
  %2956 = vmatpush.msra.mxu0 0.0
  %2957 = vmatpush.msra.mxu0 0.0
  %2958 = vmatpush.msra.mxu0 0.0
  %2959 = vmatpush.msra.mxu0 0.0
  %2960 = vmatpush.msra.mxu0 0.0
  %2961 = vmatpush.msra.mxu0 0.0
  %2962 = vmatpush.msra.mxu0 0.0
  %2963 = vmatpush.msra.mxu0 0.0
  %2964 = vmatpush.msra.mxu0 0.0
  %2965 = vmatpush.msra.mxu0 0.0
  %2966 = vmatpush.msra.mxu0 %v2153
  %2967 = vmatmul.f32.gmra.mxu0 %v2949
  %v2968 = vpop.f32.mrf.mxu0
  %v2969 = vadd.f32 0.0, %v2968
  %2970 = vdwg.mxu0
  %v2971 = vadd.f32 %v2868, %v2969
  %2973 = vrot.lane.b32.xlu0 %v2144, 96
  %v2974 = vpop.permute.xlu0 %2973
  %v2975 = vsel %vm136, %v2144, 0
  %v2977 = vsel %vm136, %v2974, 0
  %2979 = vmatpush.xpose.msra.mxu0 0.0
  %2980 = vmatpush.xpose.msra.mxu0 0.0
  %2981 = vmatpush.xpose.msra.mxu0 0.0
  %2982 = vmatpush.xpose.msra.mxu0 0.0
  %2983 = vmatpush.xpose.msra.mxu0 0.0
  %2984 = vmatpush.xpose.msra.mxu0 0.0
  %2985 = vmatpush.xpose.msra.mxu0 0.0
  %2986 = vmatpush.xpose.msra.mxu0 0.0
  %2987 = vmatpush.xpose.msra.mxu0 0.0
  %2988 = vmatpush.xpose.msra.mxu0 0.0
  %2989 = vmatpush.xpose.msra.mxu0 0.0
  %2990 = vmatpush.xpose.msra.mxu0 0.0
  %2991 = vmatpush.xpose.msra.mxu0 0.0
  %2992 = vmatpush.xpose.msra.mxu0 0.0
  %2993 = vmatpush.xpose.msra.mxu0 0.0
  %2994 = vmatpush.xpose.msra.mxu0 %v2977
  %2995 = vmatmul.f32.gmra.mxu0 %v2975
  %v2996 = vpop.f32.mrf.mxu0
  %v2997 = vadd.f32 0.0, %v2996
  %2998 = vdwg.mxu0
  %v2999 = vmul.f32 %v2997, 0.35355338
  %v3000 = vsel %vm136, %v2999, -inf
  %3001 = vmax.xlane.f32.xlu0 %v3000
  %v3002 = vpop.xlane.xlu0 %3001
  %v3003 = vsub.f32 %v2999, %v3002
  %v3004 = vmul.f32 %v3003, 1.442695
  %v3005 = vpow.pop %v3004
  %v3006 = vsel %vm136, %v3005, 0.0
  %3007 = vadd.xlane.f32.xlu0 %v3006
  %v3008 = vpop.xlane.xlu0 %3007
  %v3009 = vrcp.pop %v3008
  %v3010 = vmul.f32 %v3008, %v3009
  %v3011 = vsub.f32 1.0, %v3010
  %v3012 = vmul.f32 %v3009, %v3011
  %v3013 = vadd.f32 %v3009, %v3012
  %vm3014 = vweird.f32 %v3008
  %vm3015 = vweird.f32 %v3009
  %vm3016 = vmor %vm3014, %vm3015
  %v3017 = vsel %vm3016, %v3009, %v3013
  %v3018 = vand.u32 2147483647, %v3008
  %vm3019 = vcmp.eq.f32.partialorder %v3018, 8.507059e+37
  %v3020 = vand.u32 %v3008, 2147483648
  %v3021 = vor.u32 1.1754944e-38, %v3020
  %v3022 = vsel %vm3019, %v3021, %v3017
  %v3023 = vmul.f32 %v3005, %v3022
  %3024 = vrot.lane.b32.xlu0 %v2144, 64
  %v3025 = vpop.permute.xlu0 %3024
  %v3028 = vsel %vm136, %v3023, 0
  %3030 = vmatpush.msra.mxu0 0.0
  %3031 = vmatpush.msra.mxu0 0.0
  %3032 = vmatpush.msra.mxu0 0.0
  %3033 = vmatpush.msra.mxu0 0.0
  %3034 = vmatpush.msra.mxu0 0.0
  %3035 = vmatpush.msra.mxu0 0.0
  %3036 = vmatpush.msra.mxu0 0.0
  %3037 = vmatpush.msra.mxu0 0.0
  %3038 = vmatpush.msra.mxu0 0.0
  %3039 = vmatpush.msra.mxu0 0.0
  %3040 = vmatpush.msra.mxu0 0.0
  %3041 = vmatpush.msra.mxu0 0.0
  %3042 = vmatpush.msra.mxu0 0.0
  %3043 = vmatpush.msra.mxu0 0.0
  %3044 = vmatpush.msra.mxu0 0.0
  %3045 = vmatpush.msra.mxu0 %v3025
  %3046 = vmatmul.f32.gmra.mxu0 %v3028
  %v3047 = vpop.f32.mrf.mxu0
  %v3048 = vadd.f32 0.0, %v3047
  %3049 = vdwg.mxu0
  %3050 = vrot.lane.b32.xlu0 %v2144, 120
  %v3051 = vpop.permute.xlu0 %3050
  %3052 = vrot.lane.b32.xlu0 %v2144, 88
  %v3053 = vpop.permute.xlu0 %3052
  %v3054 = vsel %vm136, %v3051, 0
  %v3056 = vsel %vm136, %v3053, 0
  %3058 = vmatpush.xpose.msra.mxu0 0.0
  %3059 = vmatpush.xpose.msra.mxu0 0.0
  %3060 = vmatpush.xpose.msra.mxu0 0.0
  %3061 = vmatpush.xpose.msra.mxu0 0.0
  %3062 = vmatpush.xpose.msra.mxu0 0.0
  %3063 = vmatpush.xpose.msra.mxu0 0.0
  %3064 = vmatpush.xpose.msra.mxu0 0.0
  %3065 = vmatpush.xpose.msra.mxu0 0.0
  %3066 = vmatpush.xpose.msra.mxu0 0.0
  %3067 = vmatpush.xpose.msra.mxu0 0.0
  %3068 = vmatpush.xpose.msra.mxu0 0.0
  %3069 = vmatpush.xpose.msra.mxu0 0.0
  %3070 = vmatpush.xpose.msra.mxu0 0.0
  %3071 = vmatpush.xpose.msra.mxu0 0.0
  %3072 = vmatpush.xpose.msra.mxu0 0.0
  %3073 = vmatpush.xpose.msra.mxu0 %v3056
  %3074 = vmatmul.f32.gmra.mxu0 %v3054
  %v3075 = vpop.f32.mrf.mxu0
  %v3076 = vadd.f32 0.0, %v3075
  %3077 = vdwg.mxu0
  %v3078 = vmul.f32 %v3076, 0.35355338
  %v3079 = vsel %vm136, %v3078, -inf
  %3080 = vmax.xlane.f32.xlu0 %v3079
  %v3081 = vpop.xlane.xlu0 %3080
  %v3082 = vsub.f32 %v3078, %v3081
  %v3083 = vmul.f32 %v3082, 1.442695
  %v3084 = vpow.pop %v3083
  %v3085 = vsel %vm136, %v3084, 0.0
  %3086 = vadd.xlane.f32.xlu0 %v3085
  %v3087 = vpop.xlane.xlu0 %3086
  %v3088 = vrcp.pop %v3087
  %v3089 = vmul.f32 %v3087, %v3088
  %v3090 = vsub.f32 1.0, %v3089
  %v3091 = vmul.f32 %v3088, %v3090
  %v3092 = vadd.f32 %v3088, %v3091
  %vm3093 = vweird.f32 %v3087
  %vm3094 = vweird.f32 %v3088
  %vm3095 = vmor %vm3093, %vm3094
  %v3096 = vsel %vm3095, %v3088, %v3092
  %v3097 = vand.u32 2147483647, %v3087
  %vm3098 = vcmp.eq.f32.partialorder %v3097, 8.507059e+37
  %v3099 = vand.u32 %v3087, 2147483648
  %v3100 = vor.u32 1.1754944e-38, %v3099
  %v3101 = vsel %vm3098, %v3100, %v3096
  %v3102 = vmul.f32 %v3084, %v3101
  %3103 = vrot.lane.b32.xlu0 %v2144, 56
  %v3104 = vpop.permute.xlu0 %3103
  %v3107 = vsel %vm136, %v3102, 0
  %3109 = vmatpush.msra.mxu0 0.0
  %3110 = vmatpush.msra.mxu0 0.0
  %3111 = vmatpush.msra.mxu0 0.0
  %3112 = vmatpush.msra.mxu0 0.0
  %3113 = vmatpush.msra.mxu0 0.0
  %3114 = vmatpush.msra.mxu0 0.0
  %3115 = vmatpush.msra.mxu0 0.0
  %3116 = vmatpush.msra.mxu0 0.0
  %3117 = vmatpush.msra.mxu0 0.0
  %3118 = vmatpush.msra.mxu0 0.0
  %3119 = vmatpush.msra.mxu0 0.0
  %3120 = vmatpush.msra.mxu0 0.0
  %3121 = vmatpush.msra.mxu0 0.0
  %3122 = vmatpush.msra.mxu0 0.0
  %3123 = vmatpush.msra.mxu0 0.0
  %3124 = vmatpush.msra.mxu0 %v3104
  %3125 = vmatmul.f32.gmra.mxu0 %v3107
  %v3126 = vpop.f32.mrf.mxu0
  %v3127 = vadd.f32 0.0, %v3126
  %3128 = vdwg.mxu0
  %v3130 = vsel %vm136, %v3127, 0
  %3132 = vmatpush.msra.mxu0 0.0
  %3133 = vmatpush.msra.mxu0 0.0
  %3134 = vmatpush.msra.mxu0 0.0
  %3135 = vmatpush.msra.mxu0 0.0
  %3136 = vmatpush.msra.mxu0 0.0
  %3137 = vmatpush.msra.mxu0 0.0
  %3138 = vmatpush.msra.mxu0 0.0
  %3139 = vmatpush.msra.mxu0 0.0
  %3140 = vmatpush.msra.mxu0 0.0
  %3141 = vmatpush.msra.mxu0 0.0
  %3142 = vmatpush.msra.mxu0 0.0
  %3143 = vmatpush.msra.mxu0 0.0
  %3144 = vmatpush.msra.mxu0 0.0
  %3145 = vmatpush.msra.mxu0 0.0
  %3146 = vmatpush.msra.mxu0 0.0
  %3147 = vmatpush.msra.mxu0 %v2151
  %3148 = vmatmul.f32.gmra.mxu0 %v3130
  %v3149 = vpop.f32.mrf.mxu0
  %v3150 = vadd.f32 0.0, %v3149
  %3151 = vdwg.mxu0
  %v3153 = vsel %vm136, %v3048, 0
  %3155 = vmatpush.msra.mxu0 0.0
  %3156 = vmatpush.msra.mxu0 0.0
  %3157 = vmatpush.msra.mxu0 0.0
  %3158 = vmatpush.msra.mxu0 0.0
  %3159 = vmatpush.msra.mxu0 0.0
  %3160 = vmatpush.msra.mxu0 0.0
  %3161 = vmatpush.msra.mxu0 0.0
  %3162 = vmatpush.msra.mxu0 0.0
  %3163 = vmatpush.msra.mxu0 0.0
  %3164 = vmatpush.msra.mxu0 0.0
  %3165 = vmatpush.msra.mxu0 0.0
  %3166 = vmatpush.msra.mxu0 0.0
  %3167 = vmatpush.msra.mxu0 0.0
  %3168 = vmatpush.msra.mxu0 0.0
  %3169 = vmatpush.msra.mxu0 0.0
  %3170 = vmatpush.msra.mxu0 %v2150
  %3171 = vmatmul.f32.gmra.mxu0 %v3153
  %v3172 = vpop.f32.mrf.mxu0
  %v3173 = vadd.f32 %v3150, %v3172
  %3174 = vdwg.mxu0
  %3175 = vrot.lane.b32.xlu0 %v2144, 112
  %v3176 = vpop.permute.xlu0 %3175
  %3177 = vrot.lane.b32.xlu0 %v2144, 80
  %v3178 = vpop.permute.xlu0 %3177
  %v3179 = vsel %vm136, %v3176, 0
  %v3181 = vsel %vm136, %v3178, 0
  %3183 = vmatpush.xpose.msra.mxu0 0.0
  %3184 = vmatpush.xpose.msra.mxu0 0.0
  %3185 = vmatpush.xpose.msra.mxu0 0.0
  %3186 = vmatpush.xpose.msra.mxu0 0.0
  %3187 = vmatpush.xpose.msra.mxu0 0.0
  %3188 = vmatpush.xpose.msra.mxu0 0.0
  %3189 = vmatpush.xpose.msra.mxu0 0.0
  %3190 = vmatpush.xpose.msra.mxu0 0.0
  %3191 = vmatpush.xpose.msra.mxu0 0.0
  %3192 = vmatpush.xpose.msra.mxu0 0.0
  %3193 = vmatpush.xpose.msra.mxu0 0.0
  %3194 = vmatpush.xpose.msra.mxu0 0.0
  %3195 = vmatpush.xpose.msra.mxu0 0.0
  %3196 = vmatpush.xpose.msra.mxu0 0.0
  %3197 = vmatpush.xpose.msra.mxu0 0.0
  %3198 = vmatpush.xpose.msra.mxu0 %v3181
  %3199 = vmatmul.f32.gmra.mxu0 %v3179
  %v3200 = vpop.f32.mrf.mxu0
  %v3201 = vadd.f32 0.0, %v3200
  %3202 = vdwg.mxu0
  %v3203 = vmul.f32 %v3201, 0.35355338
  %v3204 = vsel %vm136, %v3203, -inf
  %3205 = vmax.xlane.f32.xlu0 %v3204
  %v3206 = vpop.xlane.xlu0 %3205
  %v3207 = vsub.f32 %v3203, %v3206
  %v3208 = vmul.f32 %v3207, 1.442695
  %v3209 = vpow.pop %v3208
  %v3210 = vsel %vm136, %v3209, 0.0
  %3211 = vadd.xlane.f32.xlu0 %v3210
  %v3212 = vpop.xlane.xlu0 %3211
  %v3213 = vrcp.pop %v3212
  %v3214 = vmul.f32 %v3212, %v3213
  %v3215 = vsub.f32 1.0, %v3214
  %v3216 = vmul.f32 %v3213, %v3215
  %v3217 = vadd.f32 %v3213, %v3216
  %vm3218 = vweird.f32 %v3212
  %vm3219 = vweird.f32 %v3213
  %vm3220 = vmor %vm3218, %vm3219
  %v3221 = vsel %vm3220, %v3213, %v3217
  %v3222 = vand.u32 2147483647, %v3212
  %vm3223 = vcmp.eq.f32.partialorder %v3222, 8.507059e+37
  %v3224 = vand.u32 %v3212, 2147483648
  %v3225 = vor.u32 1.1754944e-38, %v3224
  %v3226 = vsel %vm3223, %v3225, %v3221
  %v3227 = vmul.f32 %v3209, %v3226
  %3228 = vrot.lane.b32.xlu0 %v2144, 48
  %v3229 = vpop.permute.xlu0 %3228
  %v3232 = vsel %vm136, %v3227, 0
  %3234 = vmatpush.msra.mxu0 0.0
  %3235 = vmatpush.msra.mxu0 0.0
  %3236 = vmatpush.msra.mxu0 0.0
  %3237 = vmatpush.msra.mxu0 0.0
  %3238 = vmatpush.msra.mxu0 0.0
  %3239 = vmatpush.msra.mxu0 0.0
  %3240 = vmatpush.msra.mxu0 0.0
  %3241 = vmatpush.msra.mxu0 0.0
  %3242 = vmatpush.msra.mxu0 0.0
  %3243 = vmatpush.msra.mxu0 0.0
  %3244 = vmatpush.msra.mxu0 0.0
  %3245 = vmatpush.msra.mxu0 0.0
  %3246 = vmatpush.msra.mxu0 0.0
  %3247 = vmatpush.msra.mxu0 0.0
  %3248 = vmatpush.msra.mxu0 0.0
  %3249 = vmatpush.msra.mxu0 %v3229
  %3250 = vmatmul.f32.gmra.mxu0 %v3232
  %v3251 = vpop.f32.mrf.mxu0
  %v3252 = vadd.f32 0.0, %v3251
  %3253 = vdwg.mxu0
  %v3255 = vsel %vm136, %v3252, 0
  %3257 = vmatpush.msra.mxu0 0.0
  %3258 = vmatpush.msra.mxu0 0.0
  %3259 = vmatpush.msra.mxu0 0.0
  %3260 = vmatpush.msra.mxu0 0.0
  %3261 = vmatpush.msra.mxu0 0.0
  %3262 = vmatpush.msra.mxu0 0.0
  %3263 = vmatpush.msra.mxu0 0.0
  %3264 = vmatpush.msra.mxu0 0.0
  %3265 = vmatpush.msra.mxu0 0.0
  %3266 = vmatpush.msra.mxu0 0.0
  %3267 = vmatpush.msra.mxu0 0.0
  %3268 = vmatpush.msra.mxu0 0.0
  %3269 = vmatpush.msra.mxu0 0.0
  %3270 = vmatpush.msra.mxu0 0.0
  %3271 = vmatpush.msra.mxu0 0.0
  %3272 = vmatpush.msra.mxu0 %v2152
  %3273 = vmatmul.f32.gmra.mxu0 %v3255
  %v3274 = vpop.f32.mrf.mxu0
  %v3275 = vadd.f32 0.0, %v3274
  %3276 = vdwg.mxu0
  %v3277 = vadd.f32 %v3173, %v3275
  %3278 = vrot.lane.b32.xlu0 %v2144, 104
  %v3279 = vpop.permute.xlu0 %3278
  %3280 = vrot.lane.b32.xlu0 %v2144, 72
  %v3281 = vpop.permute.xlu0 %3280
  %v3282 = vsel %vm136, %v3279, 0
  %v3284 = vsel %vm136, %v3281, 0
  %3286 = vmatpush.xpose.msra.mxu0 0.0
  %3287 = vmatpush.xpose.msra.mxu0 0.0
  %3288 = vmatpush.xpose.msra.mxu0 0.0
  %3289 = vmatpush.xpose.msra.mxu0 0.0
  %3290 = vmatpush.xpose.msra.mxu0 0.0
  %3291 = vmatpush.xpose.msra.mxu0 0.0
  %3292 = vmatpush.xpose.msra.mxu0 0.0
  %3293 = vmatpush.xpose.msra.mxu0 0.0
  %3294 = vmatpush.xpose.msra.mxu0 0.0
  %3295 = vmatpush.xpose.msra.mxu0 0.0
  %3296 = vmatpush.xpose.msra.mxu0 0.0
  %3297 = vmatpush.xpose.msra.mxu0 0.0
  %3298 = vmatpush.xpose.msra.mxu0 0.0
  %3299 = vmatpush.xpose.msra.mxu0 0.0
  %3300 = vmatpush.xpose.msra.mxu0 0.0
  %3301 = vmatpush.xpose.msra.mxu0 %v3284
  %3302 = vmatmul.f32.gmra.mxu0 %v3282
  %v3303 = vpop.f32.mrf.mxu0
  %v3304 = vadd.f32 0.0, %v3303
  %3305 = vdwg.mxu0
  %v3306 = vmul.f32 %v3304, 0.35355338
  %v3307 = vsel %vm136, %v3306, -inf
  %3308 = vmax.xlane.f32.xlu0 %v3307
  %v3309 = vpop.xlane.xlu0 %3308
  %v3310 = vsub.f32 %v3306, %v3309
  %v3311 = vmul.f32 %v3310, 1.442695
  %v3312 = vpow.pop %v3311
  %v3313 = vsel %vm136, %v3312, 0.0
  %3314 = vadd.xlane.f32.xlu0 %v3313
  %v3315 = vpop.xlane.xlu0 %3314
  %v3316 = vrcp.pop %v3315
  %v3317 = vmul.f32 %v3315, %v3316
  %v3318 = vsub.f32 1.0, %v3317
  %v3319 = vmul.f32 %v3316, %v3318
  %v3320 = vadd.f32 %v3316, %v3319
  %vm3321 = vweird.f32 %v3315
  %vm3322 = vweird.f32 %v3316
  %vm3323 = vmor %vm3321, %vm3322
  %v3324 = vsel %vm3323, %v3316, %v3320
  %v3325 = vand.u32 2147483647, %v3315
  %vm3326 = vcmp.eq.f32.partialorder %v3325, 8.507059e+37
  %v3327 = vand.u32 %v3315, 2147483648
  %v3328 = vor.u32 1.1754944e-38, %v3327
  %v3329 = vsel %vm3326, %v3328, %v3324
  %v3330 = vmul.f32 %v3312, %v3329
  %3331 = vrot.lane.b32.xlu0 %v2144, 40
  %v3332 = vpop.permute.xlu0 %3331
  %v3335 = vsel %vm136, %v3330, 0
  %3337 = vmatpush.msra.mxu0 0.0
  %3338 = vmatpush.msra.mxu0 0.0
  %3339 = vmatpush.msra.mxu0 0.0
  %3340 = vmatpush.msra.mxu0 0.0
  %3341 = vmatpush.msra.mxu0 0.0
  %3342 = vmatpush.msra.mxu0 0.0
  %3343 = vmatpush.msra.mxu0 0.0
  %3344 = vmatpush.msra.mxu0 0.0
  %3345 = vmatpush.msra.mxu0 0.0
  %3346 = vmatpush.msra.mxu0 0.0
  %3347 = vmatpush.msra.mxu0 0.0
  %3348 = vmatpush.msra.mxu0 0.0
  %3349 = vmatpush.msra.mxu0 0.0
  %3350 = vmatpush.msra.mxu0 0.0
  %3351 = vmatpush.msra.mxu0 0.0
  %3352 = vmatpush.msra.mxu0 %v3332
  %3353 = vmatmul.f32.gmra.mxu0 %v3335
  %v3354 = vpop.f32.mrf.mxu0
  %v3355 = vadd.f32 0.0, %v3354
  %3356 = vdwg.mxu0
  %v3358 = vsel %vm136, %v3355, 0
  %3360 = vmatpush.msra.mxu0 0.0
  %3361 = vmatpush.msra.mxu0 0.0
  %3362 = vmatpush.msra.mxu0 0.0
  %3363 = vmatpush.msra.mxu0 0.0
  %3364 = vmatpush.msra.mxu0 0.0
  %3365 = vmatpush.msra.mxu0 0.0
  %3366 = vmatpush.msra.mxu0 0.0
  %3367 = vmatpush.msra.mxu0 0.0
  %3368 = vmatpush.msra.mxu0 0.0
  %3369 = vmatpush.msra.mxu0 0.0
  %3370 = vmatpush.msra.mxu0 0.0
  %3371 = vmatpush.msra.mxu0 0.0
  %3372 = vmatpush.msra.mxu0 0.0
  %3373 = vmatpush.msra.mxu0 0.0
  %3374 = vmatpush.msra.mxu0 0.0
  %3375 = vmatpush.msra.mxu0 %v2153
  %3376 = vmatmul.f32.gmra.mxu0 %v3358
  %v3377 = vpop.f32.mrf.mxu0
  %v3378 = vadd.f32 0.0, %v3377
  %3379 = vdwg.mxu0
  %v3380 = vadd.f32 %v3277, %v3378
  %3382 = vrot.lane.b32.xlu0 %v2147, 96
  %v3383 = vpop.permute.xlu0 %3382
  %v3384 = vsel %vm136, %v2147, 0
  %v3386 = vsel %vm136, %v3383, 0
  %3388 = vmatpush.xpose.msra.mxu0 0.0
  %3389 = vmatpush.xpose.msra.mxu0 0.0
  %3390 = vmatpush.xpose.msra.mxu0 0.0
  %3391 = vmatpush.xpose.msra.mxu0 0.0
  %3392 = vmatpush.xpose.msra.mxu0 0.0
  %3393 = vmatpush.xpose.msra.mxu0 0.0
  %3394 = vmatpush.xpose.msra.mxu0 0.0
  %3395 = vmatpush.xpose.msra.mxu0 0.0
  %3396 = vmatpush.xpose.msra.mxu0 0.0
  %3397 = vmatpush.xpose.msra.mxu0 0.0
  %3398 = vmatpush.xpose.msra.mxu0 0.0
  %3399 = vmatpush.xpose.msra.mxu0 0.0
  %3400 = vmatpush.xpose.msra.mxu0 0.0
  %3401 = vmatpush.xpose.msra.mxu0 0.0
  %3402 = vmatpush.xpose.msra.mxu0 0.0
  %3403 = vmatpush.xpose.msra.mxu0 %v3386
  %3404 = vmatmul.f32.gmra.mxu0 %v3384
  %v3405 = vpop.f32.mrf.mxu0
  %v3406 = vadd.f32 0.0, %v3405
  %3407 = vdwg.mxu0
  %v3408 = vmul.f32 %v3406, 0.35355338
  %v3409 = vsel %vm136, %v3408, -inf
  %3410 = vmax.xlane.f32.xlu0 %v3409
  %v3411 = vpop.xlane.xlu0 %3410
  %v3412 = vsub.f32 %v3408, %v3411
  %v3413 = vmul.f32 %v3412, 1.442695
  %v3414 = vpow.pop %v3413
  %v3415 = vsel %vm136, %v3414, 0.0
  %3416 = vadd.xlane.f32.xlu0 %v3415
  %v3417 = vpop.xlane.xlu0 %3416
  %v3418 = vrcp.pop %v3417
  %v3419 = vmul.f32 %v3417, %v3418
  %v3420 = vsub.f32 1.0, %v3419
  %v3421 = vmul.f32 %v3418, %v3420
  %v3422 = vadd.f32 %v3418, %v3421
  %vm3423 = vweird.f32 %v3417
  %vm3424 = vweird.f32 %v3418
  %vm3425 = vmor %vm3423, %vm3424
  %v3426 = vsel %vm3425, %v3418, %v3422
  %v3427 = vand.u32 2147483647, %v3417
  %vm3428 = vcmp.eq.f32.partialorder %v3427, 8.507059e+37
  %v3429 = vand.u32 %v3417, 2147483648
  %v3430 = vor.u32 1.1754944e-38, %v3429
  %v3431 = vsel %vm3428, %v3430, %v3426
  %v3432 = vmul.f32 %v3414, %v3431
  %3433 = vrot.lane.b32.xlu0 %v2147, 64
  %v3434 = vpop.permute.xlu0 %3433
  %v3437 = vsel %vm136, %v3432, 0
  %3439 = vmatpush.msra.mxu0 0.0
  %3440 = vmatpush.msra.mxu0 0.0
  %3441 = vmatpush.msra.mxu0 0.0
  %3442 = vmatpush.msra.mxu0 0.0
  %3443 = vmatpush.msra.mxu0 0.0
  %3444 = vmatpush.msra.mxu0 0.0
  %3445 = vmatpush.msra.mxu0 0.0
  %3446 = vmatpush.msra.mxu0 0.0
  %3447 = vmatpush.msra.mxu0 0.0
  %3448 = vmatpush.msra.mxu0 0.0
  %3449 = vmatpush.msra.mxu0 0.0
  %3450 = vmatpush.msra.mxu0 0.0
  %3451 = vmatpush.msra.mxu0 0.0
  %3452 = vmatpush.msra.mxu0 0.0
  %3453 = vmatpush.msra.mxu0 0.0
  %3454 = vmatpush.msra.mxu0 %v3434
  %3455 = vmatmul.f32.gmra.mxu0 %v3437
  %v3456 = vpop.f32.mrf.mxu0
  %v3457 = vadd.f32 0.0, %v3456
  %3458 = vdwg.mxu0
  %3459 = vrot.lane.b32.xlu0 %v2147, 120
  %v3460 = vpop.permute.xlu0 %3459
  %3461 = vrot.lane.b32.xlu0 %v2147, 88
  %v3462 = vpop.permute.xlu0 %3461
  %v3463 = vsel %vm136, %v3460, 0
  %v3465 = vsel %vm136, %v3462, 0
  %3467 = vmatpush.xpose.msra.mxu0 0.0
  %3468 = vmatpush.xpose.msra.mxu0 0.0
  %3469 = vmatpush.xpose.msra.mxu0 0.0
  %3470 = vmatpush.xpose.msra.mxu0 0.0
  %3471 = vmatpush.xpose.msra.mxu0 0.0
  %3472 = vmatpush.xpose.msra.mxu0 0.0
  %3473 = vmatpush.xpose.msra.mxu0 0.0
  %3474 = vmatpush.xpose.msra.mxu0 0.0
  %3475 = vmatpush.xpose.msra.mxu0 0.0
  %3476 = vmatpush.xpose.msra.mxu0 0.0
  %3477 = vmatpush.xpose.msra.mxu0 0.0
  %3478 = vmatpush.xpose.msra.mxu0 0.0
  %3479 = vmatpush.xpose.msra.mxu0 0.0
  %3480 = vmatpush.xpose.msra.mxu0 0.0
  %3481 = vmatpush.xpose.msra.mxu0 0.0
  %3482 = vmatpush.xpose.msra.mxu0 %v3465
  %3483 = vmatmul.f32.gmra.mxu0 %v3463
  %v3484 = vpop.f32.mrf.mxu0
  %v3485 = vadd.f32 0.0, %v3484
  %3486 = vdwg.mxu0
  %v3487 = vmul.f32 %v3485, 0.35355338
  %v3488 = vsel %vm136, %v3487, -inf
  %3489 = vmax.xlane.f32.xlu0 %v3488
  %v3490 = vpop.xlane.xlu0 %3489
  %v3491 = vsub.f32 %v3487, %v3490
  %v3492 = vmul.f32 %v3491, 1.442695
  %v3493 = vpow.pop %v3492
  %v3494 = vsel %vm136, %v3493, 0.0
  %3495 = vadd.xlane.f32.xlu0 %v3494
  %v3496 = vpop.xlane.xlu0 %3495
  %v3497 = vrcp.pop %v3496
  %v3498 = vmul.f32 %v3496, %v3497
  %v3499 = vsub.f32 1.0, %v3498
  %v3500 = vmul.f32 %v3497, %v3499
  %v3501 = vadd.f32 %v3497, %v3500
  %vm3502 = vweird.f32 %v3496
  %vm3503 = vweird.f32 %v3497
  %vm3504 = vmor %vm3502, %vm3503
  %v3505 = vsel %vm3504, %v3497, %v3501
  %v3506 = vand.u32 2147483647, %v3496
  %vm3507 = vcmp.eq.f32.partialorder %v3506, 8.507059e+37
  %v3508 = vand.u32 %v3496, 2147483648
  %v3509 = vor.u32 1.1754944e-38, %v3508
  %v3510 = vsel %vm3507, %v3509, %v3505
  %v3511 = vmul.f32 %v3493, %v3510
  %3512 = vrot.lane.b32.xlu0 %v2147, 56
  %v3513 = vpop.permute.xlu0 %3512
  %v3516 = vsel %vm136, %v3511, 0
  %3518 = vmatpush.msra.mxu0 0.0
  %3519 = vmatpush.msra.mxu0 0.0
  %3520 = vmatpush.msra.mxu0 0.0
  %3521 = vmatpush.msra.mxu0 0.0
  %3522 = vmatpush.msra.mxu0 0.0
  %3523 = vmatpush.msra.mxu0 0.0
  %3524 = vmatpush.msra.mxu0 0.0
  %3525 = vmatpush.msra.mxu0 0.0
  %3526 = vmatpush.msra.mxu0 0.0
  %3527 = vmatpush.msra.mxu0 0.0
  %3528 = vmatpush.msra.mxu0 0.0
  %3529 = vmatpush.msra.mxu0 0.0
  %3530 = vmatpush.msra.mxu0 0.0
  %3531 = vmatpush.msra.mxu0 0.0
  %3532 = vmatpush.msra.mxu0 0.0
  %3533 = vmatpush.msra.mxu0 %v3513
  %3534 = vmatmul.f32.gmra.mxu0 %v3516
  %v3535 = vpop.f32.mrf.mxu0
  %v3536 = vadd.f32 0.0, %v3535
  %3537 = vdwg.mxu0
  %v3539 = vsel %vm136, %v3536, 0
  %3541 = vmatpush.msra.mxu0 0.0
  %3542 = vmatpush.msra.mxu0 0.0
  %3543 = vmatpush.msra.mxu0 0.0
  %3544 = vmatpush.msra.mxu0 0.0
  %3545 = vmatpush.msra.mxu0 0.0
  %3546 = vmatpush.msra.mxu0 0.0
  %3547 = vmatpush.msra.mxu0 0.0
  %3548 = vmatpush.msra.mxu0 0.0
  %3549 = vmatpush.msra.mxu0 0.0
  %3550 = vmatpush.msra.mxu0 0.0
  %3551 = vmatpush.msra.mxu0 0.0
  %3552 = vmatpush.msra.mxu0 0.0
  %3553 = vmatpush.msra.mxu0 0.0
  %3554 = vmatpush.msra.mxu0 0.0
  %3555 = vmatpush.msra.mxu0 0.0
  %3556 = vmatpush.msra.mxu0 %v2151
  %3557 = vmatmul.f32.gmra.mxu0 %v3539
  %v3558 = vpop.f32.mrf.mxu0
  %v3559 = vadd.f32 0.0, %v3558
  %3560 = vdwg.mxu0
  %v3562 = vsel %vm136, %v3457, 0
  %3564 = vmatpush.msra.mxu0 0.0
  %3565 = vmatpush.msra.mxu0 0.0
  %3566 = vmatpush.msra.mxu0 0.0
  %3567 = vmatpush.msra.mxu0 0.0
  %3568 = vmatpush.msra.mxu0 0.0
  %3569 = vmatpush.msra.mxu0 0.0
  %3570 = vmatpush.msra.mxu0 0.0
  %3571 = vmatpush.msra.mxu0 0.0
  %3572 = vmatpush.msra.mxu0 0.0
  %3573 = vmatpush.msra.mxu0 0.0
  %3574 = vmatpush.msra.mxu0 0.0
  %3575 = vmatpush.msra.mxu0 0.0
  %3576 = vmatpush.msra.mxu0 0.0
  %3577 = vmatpush.msra.mxu0 0.0
  %3578 = vmatpush.msra.mxu0 0.0
  %3579 = vmatpush.msra.mxu0 %v2150
  %3580 = vmatmul.f32.gmra.mxu0 %v3562
  %v3581 = vpop.f32.mrf.mxu0
  %v3582 = vadd.f32 %v3559, %v3581
  %3583 = vdwg.mxu0
  %3584 = vrot.lane.b32.xlu0 %v2147, 112
  %v3585 = vpop.permute.xlu0 %3584
  %3586 = vrot.lane.b32.xlu0 %v2147, 80
  %v3587 = vpop.permute.xlu0 %3586
  %v3588 = vsel %vm136, %v3585, 0
  %v3590 = vsel %vm136, %v3587, 0
  %3592 = vmatpush.xpose.msra.mxu0 0.0
  %3593 = vmatpush.xpose.msra.mxu0 0.0
  %3594 = vmatpush.xpose.msra.mxu0 0.0
  %3595 = vmatpush.xpose.msra.mxu0 0.0
  %3596 = vmatpush.xpose.msra.mxu0 0.0
  %3597 = vmatpush.xpose.msra.mxu0 0.0
  %3598 = vmatpush.xpose.msra.mxu0 0.0
  %3599 = vmatpush.xpose.msra.mxu0 0.0
  %3600 = vmatpush.xpose.msra.mxu0 0.0
  %3601 = vmatpush.xpose.msra.mxu0 0.0
  %3602 = vmatpush.xpose.msra.mxu0 0.0
  %3603 = vmatpush.xpose.msra.mxu0 0.0
  %3604 = vmatpush.xpose.msra.mxu0 0.0
  %3605 = vmatpush.xpose.msra.mxu0 0.0
  %3606 = vmatpush.xpose.msra.mxu0 0.0
  %3607 = vmatpush.xpose.msra.mxu0 %v3590
  %3608 = vmatmul.f32.gmra.mxu0 %v3588
  %v3609 = vpop.f32.mrf.mxu0
  %v3610 = vadd.f32 0.0, %v3609
  %3611 = vdwg.mxu0
  %v3612 = vmul.f32 %v3610, 0.35355338
  %v3613 = vsel %vm136, %v3612, -inf
  %3614 = vmax.xlane.f32.xlu0 %v3613
  %v3615 = vpop.xlane.xlu0 %3614
  %v3616 = vsub.f32 %v3612, %v3615
  %v3617 = vmul.f32 %v3616, 1.442695
  %v3618 = vpow.pop %v3617
  %v3619 = vsel %vm136, %v3618, 0.0
  %3620 = vadd.xlane.f32.xlu0 %v3619
  %v3621 = vpop.xlane.xlu0 %3620
  %v3622 = vrcp.pop %v3621
  %v3623 = vmul.f32 %v3621, %v3622
  %v3624 = vsub.f32 1.0, %v3623
  %v3625 = vmul.f32 %v3622, %v3624
  %v3626 = vadd.f32 %v3622, %v3625
  %vm3627 = vweird.f32 %v3621
  %vm3628 = vweird.f32 %v3622
  %vm3629 = vmor %vm3627, %vm3628
  %v3630 = vsel %vm3629, %v3622, %v3626
  %v3631 = vand.u32 2147483647, %v3621
  %vm3632 = vcmp.eq.f32.partialorder %v3631, 8.507059e+37
  %v3633 = vand.u32 %v3621, 2147483648
  %v3634 = vor.u32 1.1754944e-38, %v3633
  %v3635 = vsel %vm3632, %v3634, %v3630
  %v3636 = vmul.f32 %v3618, %v3635
  %3637 = vrot.lane.b32.xlu0 %v2147, 48
  %v3638 = vpop.permute.xlu0 %3637
  %v3641 = vsel %vm136, %v3636, 0
  %3643 = vmatpush.msra.mxu0 0.0
  %3644 = vmatpush.msra.mxu0 0.0
  %3645 = vmatpush.msra.mxu0 0.0
  %3646 = vmatpush.msra.mxu0 0.0
  %3647 = vmatpush.msra.mxu0 0.0
  %3648 = vmatpush.msra.mxu0 0.0
  %3649 = vmatpush.msra.mxu0 0.0
  %3650 = vmatpush.msra.mxu0 0.0
  %3651 = vmatpush.msra.mxu0 0.0
  %3652 = vmatpush.msra.mxu0 0.0
  %3653 = vmatpush.msra.mxu0 0.0
  %3654 = vmatpush.msra.mxu0 0.0
  %3655 = vmatpush.msra.mxu0 0.0
  %3656 = vmatpush.msra.mxu0 0.0
  %3657 = vmatpush.msra.mxu0 0.0
  %3658 = vmatpush.msra.mxu0 %v3638
  %3659 = vmatmul.f32.gmra.mxu0 %v3641
  %v3660 = vpop.f32.mrf.mxu0
  %v3661 = vadd.f32 0.0, %v3660
  %3662 = vdwg.mxu0
  %v3664 = vsel %vm136, %v3661, 0
  %3666 = vmatpush.msra.mxu0 0.0
  %3667 = vmatpush.msra.mxu0 0.0
  %3668 = vmatpush.msra.mxu0 0.0
  %3669 = vmatpush.msra.mxu0 0.0
  %3670 = vmatpush.msra.mxu0 0.0
  %3671 = vmatpush.msra.mxu0 0.0
  %3672 = vmatpush.msra.mxu0 0.0
  %3673 = vmatpush.msra.mxu0 0.0
  %3674 = vmatpush.msra.mxu0 0.0
  %3675 = vmatpush.msra.mxu0 0.0
  %3676 = vmatpush.msra.mxu0 0.0
  %3677 = vmatpush.msra.mxu0 0.0
  %3678 = vmatpush.msra.mxu0 0.0
  %3679 = vmatpush.msra.mxu0 0.0
  %3680 = vmatpush.msra.mxu0 0.0
  %3681 = vmatpush.msra.mxu0 %v2152
  %3682 = vmatmul.f32.gmra.mxu0 %v3664
  %v3683 = vpop.f32.mrf.mxu0
  %v3684 = vadd.f32 0.0, %v3683
  %3685 = vdwg.mxu0
  %v3686 = vadd.f32 %v3582, %v3684
  %3687 = vrot.lane.b32.xlu0 %v2147, 104
  %v3688 = vpop.permute.xlu0 %3687
  %3689 = vrot.lane.b32.xlu0 %v2147, 72
  %v3690 = vpop.permute.xlu0 %3689
  %v3691 = vsel %vm136, %v3688, 0
  %v3693 = vsel %vm136, %v3690, 0
  %3695 = vmatpush.xpose.msra.mxu0 0.0
  %3696 = vmatpush.xpose.msra.mxu0 0.0
  %3697 = vmatpush.xpose.msra.mxu0 0.0
  %3698 = vmatpush.xpose.msra.mxu0 0.0
  %3699 = vmatpush.xpose.msra.mxu0 0.0
  %3700 = vmatpush.xpose.msra.mxu0 0.0
  %3701 = vmatpush.xpose.msra.mxu0 0.0
  %3702 = vmatpush.xpose.msra.mxu0 0.0
  %3703 = vmatpush.xpose.msra.mxu0 0.0
  %3704 = vmatpush.xpose.msra.mxu0 0.0
  %3705 = vmatpush.xpose.msra.mxu0 0.0
  %3706 = vmatpush.xpose.msra.mxu0 0.0
  %3707 = vmatpush.xpose.msra.mxu0 0.0
  %3708 = vmatpush.xpose.msra.mxu0 0.0
  %3709 = vmatpush.xpose.msra.mxu0 0.0
  %3710 = vmatpush.xpose.msra.mxu0 %v3693
  %3711 = vmatmul.f32.gmra.mxu0 %v3691
  %v3712 = vpop.f32.mrf.mxu0
  %v3713 = vadd.f32 0.0, %v3712
  %3714 = vdwg.mxu0
  %v3715 = vmul.f32 %v3713, 0.35355338
  %v3716 = vsel %vm136, %v3715, -inf
  %3717 = vmax.xlane.f32.xlu0 %v3716
  %v3718 = vpop.xlane.xlu0 %3717
  %v3719 = vsub.f32 %v3715, %v3718
  %v3720 = vmul.f32 %v3719, 1.442695
  %v3721 = vpow.pop %v3720
  %v3722 = vsel %vm136, %v3721, 0.0
  %3723 = vadd.xlane.f32.xlu0 %v3722
  %v3724 = vpop.xlane.xlu0 %3723
  %v3725 = vrcp.pop %v3724
  %v3726 = vmul.f32 %v3724, %v3725
  %v3727 = vsub.f32 1.0, %v3726
  %v3728 = vmul.f32 %v3725, %v3727
  %v3729 = vadd.f32 %v3725, %v3728
  %vm3730 = vweird.f32 %v3724
  %vm3731 = vweird.f32 %v3725
  %vm3732 = vmor %vm3730, %vm3731
  %v3733 = vsel %vm3732, %v3725, %v3729
  %v3734 = vand.u32 2147483647, %v3724
  %vm3735 = vcmp.eq.f32.partialorder %v3734, 8.507059e+37
  %v3736 = vand.u32 %v3724, 2147483648
  %v3737 = vor.u32 1.1754944e-38, %v3736
  %v3738 = vsel %vm3735, %v3737, %v3733
  %v3739 = vmul.f32 %v3721, %v3738
  %3740 = vrot.lane.b32.xlu0 %v2147, 40
  %v3741 = vpop.permute.xlu0 %3740
  %v3744 = vsel %vm136, %v3739, 0
  %3746 = vmatpush.msra.mxu0 0.0
  %3747 = vmatpush.msra.mxu0 0.0
  %3748 = vmatpush.msra.mxu0 0.0
  %3749 = vmatpush.msra.mxu0 0.0
  %3750 = vmatpush.msra.mxu0 0.0
  %3751 = vmatpush.msra.mxu0 0.0
  %3752 = vmatpush.msra.mxu0 0.0
  %3753 = vmatpush.msra.mxu0 0.0
  %3754 = vmatpush.msra.mxu0 0.0
  %3755 = vmatpush.msra.mxu0 0.0
  %3756 = vmatpush.msra.mxu0 0.0
  %3757 = vmatpush.msra.mxu0 0.0
  %3758 = vmatpush.msra.mxu0 0.0
  %3759 = vmatpush.msra.mxu0 0.0
  %3760 = vmatpush.msra.mxu0 0.0
  %3761 = vmatpush.msra.mxu0 %v3741
  %3762 = vmatmul.f32.gmra.mxu0 %v3744
  %v3763 = vpop.f32.mrf.mxu0
  %v3764 = vadd.f32 0.0, %v3763
  %3765 = vdwg.mxu0
  %v3767 = vsel %vm136, %v3764, 0
  %3769 = vmatpush.msra.mxu0 0.0
  %3770 = vmatpush.msra.mxu0 0.0
  %3771 = vmatpush.msra.mxu0 0.0
  %3772 = vmatpush.msra.mxu0 0.0
  %3773 = vmatpush.msra.mxu0 0.0
  %3774 = vmatpush.msra.mxu0 0.0
  %3775 = vmatpush.msra.mxu0 0.0
  %3776 = vmatpush.msra.mxu0 0.0
  %3777 = vmatpush.msra.mxu0 0.0
  %3778 = vmatpush.msra.mxu0 0.0
  %3779 = vmatpush.msra.mxu0 0.0
  %3780 = vmatpush.msra.mxu0 0.0
  %3781 = vmatpush.msra.mxu0 0.0
  %3782 = vmatpush.msra.mxu0 0.0
  %3783 = vmatpush.msra.mxu0 0.0
  %3784 = vmatpush.msra.mxu0 %v2153
  %3785 = vmatmul.f32.gmra.mxu0 %v3767
  %v3786 = vpop.f32.mrf.mxu0
  %v3787 = vadd.f32 0.0, %v3786
  %3788 = vdwg.mxu0
  %v3789 = vadd.f32 %v3686, %v3787
  %s3790 = scalar_lea.vmem %s5, 1
  %v3791 = vld [vmem:[%s3790] sm:$0x1]
  %v3793 = vperm.slane %v3791, 0
  %v3795 = vadd.f32 %v2562, %v3793
  %v3796 = vadd.f32 %v2971, %v3793
  %v3797 = vadd.f32 %v3380, %v3793
  %v3798 = vadd.f32 %v3789, %v3793
  %s3799 = scalar_lea.vmem %s6, 2
  %v3800 = vld [vmem:[%s3799] sm:$0x3]
  %v3801 = vadd.f32 %v2094, %v3795
  %v3802 = vadd.f32 %v2095, %v3796
  %v3803 = vadd.f32 %v2096, %v3797
  %v3804 = vadd.f32 %v2097, %v3798
  %v3805 = vsel %vm87, %v3801, 0.0
  %3806 = vadd.xlane.f32.xlu0 %v3805
  %v3807 = vpop.xlane.xlu0 %3806
  %v3808 = vsel %vm87, %v3802, 0.0
  %3809 = vadd.xlane.f32.xlu0 %v3808
  %v3810 = vpop.xlane.xlu0 %3809
  %v3811 = vsel %vm87, %v3803, 0.0
  %3812 = vadd.xlane.f32.xlu0 %v3811
  %v3813 = vpop.xlane.xlu0 %3812
  %v3814 = vsel %vm87, %v3804, 0.0
  %3815 = vadd.xlane.f32.xlu0 %v3814
  %v3816 = vpop.xlane.xlu0 %3815
  %v3817 = vmul.f32 %v3807, %v1801
  %v3818 = vmul.f32 %v3810, %v1801
  %v3819 = vmul.f32 %v3813, %v1801
  %v3820 = vmul.f32 %v3816, %v1801
  %v3821 = vsub.f32 %v3801, %v3817
  %v3822 = vsub.f32 %v3802, %v3818
  %v3823 = vsub.f32 %v3803, %v3819
  %v3824 = vsub.f32 %v3804, %v3820
  %v3825 = vmul.f32 %v3821, %v3821
  %v3826 = vmul.f32 %v3822, %v3822
  %v3827 = vmul.f32 %v3823, %v3823
  %v3828 = vmul.f32 %v3824, %v3824
  %v3829 = vsel %vm87, %v3825, 0.0
  %3830 = vadd.xlane.f32.xlu0 %v3829
  %v3831 = vpop.xlane.xlu0 %3830
  %v3832 = vsel %vm87, %v3826, 0.0
  %3833 = vadd.xlane.f32.xlu0 %v3832
  %v3834 = vpop.xlane.xlu0 %3833
  %v3835 = vsel %vm87, %v3827, 0.0
  %3836 = vadd.xlane.f32.xlu0 %v3835
  %v3837 = vpop.xlane.xlu0 %3836
  %v3838 = vsel %vm87, %v3828, 0.0
  %3839 = vadd.xlane.f32.xlu0 %v3838
  %v3840 = vpop.xlane.xlu0 %3839
  %v3841 = vmul.f32 %v3831, %v1801
  %v3842 = vmul.f32 %v3834, %v1801
  %v3843 = vmul.f32 %v3837, %v1801
  %v3844 = vmul.f32 %v3840, %v1801
  %v3845 = vadd.f32 %v3841, 1e-05
  %v3846 = vadd.f32 %v3842, 1e-05
  %v3847 = vadd.f32 %v3843, 1e-05
  %v3848 = vadd.f32 %v3844, 1e-05
  %v3849 = vrsqrt.pop %v3845
  %v3850 = vmul.f32 %v3849, %v3845
  %v3851 = vmul.f32 %v3850, %v3849
  %v3852 = vmul.f32 0.5, %v3851
  %v3853 = vsub.f32 1.5, %v3852
  %v3854 = vmul.f32 %v3849, %v3853
  %vm3855 = vweird.f32 %v3845
  %vm3856 = vweird.f32 %v3849
  %vm3857 = vmor %vm3855, %vm3856
  %v3858 = vsel %vm3857, %v3849, %v3854
  %v3859 = vrsqrt.pop %v3846
  %v3860 = vmul.f32 %v3859, %v3846
  %v3861 = vmul.f32 %v3860, %v3859
  %v3862 = vmul.f32 0.5, %v3861
  %v3863 = vsub.f32 1.5, %v3862
  %v3864 = vmul.f32 %v3859, %v3863
  %vm3865 = vweird.f32 %v3846
  %vm3866 = vweird.f32 %v3859
  %vm3867 = vmor %vm3865, %vm3866
  %v3868 = vsel %vm3867, %v3859, %v3864
  %v3869 = vrsqrt.pop %v3847
  %v3870 = vmul.f32 %v3869, %v3847
  %v3871 = vmul.f32 %v3870, %v3869
  %v3872 = vmul.f32 0.5, %v3871
  %v3873 = vsub.f32 1.5, %v3872
  %v3874 = vmul.f32 %v3869, %v3873
  %vm3875 = vweird.f32 %v3847
  %vm3876 = vweird.f32 %v3869
  %vm3877 = vmor %vm3875, %vm3876
  %v3878 = vsel %vm3877, %v3869, %v3874
  %v3879 = vrsqrt.pop %v3848
  %v3880 = vmul.f32 %v3879, %v3848
  %v3881 = vmul.f32 %v3880, %v3879
  %v3882 = vmul.f32 0.5, %v3881
  %v3883 = vsub.f32 1.5, %v3882
  %v3884 = vmul.f32 %v3879, %v3883
  %vm3885 = vweird.f32 %v3848
  %vm3886 = vweird.f32 %v3879
  %vm3887 = vmor %vm3885, %vm3886
  %v3888 = vsel %vm3887, %v3879, %v3884
  %v3889 = vmul.f32 %v3821, %v3858
  %v3890 = vmul.f32 %v3822, %v3868
  %v3891 = vmul.f32 %v3823, %v3878
  %v3892 = vmul.f32 %v3824, %v3888
  %v3893 = vperm.slane %v3800, 0
  %v3894 = vmul.f32 %v3889, %v3893
  %v3895 = vmul.f32 %v3890, %v3893
  %v3896 = vmul.f32 %v3891, %v3893
  %v3897 = vmul.f32 %v3892, %v3893
  %v3898 = vperm.slane %v3800, 1
  %v3899 = vadd.f32 %v3894, %v3898
  %v3900 = vadd.f32 %v3895, %v3898
  %v3901 = vadd.f32 %v3896, %v3898
  %v3902 = vadd.f32 %v3897, %v3898
  %s3903 = scalar_lea.vmem %s7, 32
  %v3904 = vld [vmem:[%s3903] sm:$0xff]
  %v3905 = vld [vmem:[%s3903 + $0x8] sm:$0xff]
  %v3906 = vld [vmem:[%s3903 + $0x10] sm:$0xff]
  %v3907 = vld [vmem:[%s3903 + $0x18] sm:$0xff]
  %s3908 = scalar_lea.vmem %s8, 1
  %v3909 = vld [vmem:[%s3908] sm:$0x1]
  %v3911 = vperm.slane %v3909, 0
  %v3914 = vsel %vm87, %v3899, 0
  %v3917 = vsel %vm87, %v3900, 0
  %v3920 = vsel %vm87, %v3901, 0
  %v3923 = vsel %vm87, %v3902, 0
  %3925 = vmatpush.msra.mxu0 0.0
  %3926 = vmatpush.msra.mxu0 0.0
  %3927 = vmatpush.msra.mxu0 0.0
  %3928 = vmatpush.msra.mxu0 0.0
  %3929 = vmatpush.msra.mxu0 0.0
  %3930 = vmatpush.msra.mxu0 0.0
  %3931 = vmatpush.msra.mxu0 0.0
  %3932 = vmatpush.msra.mxu0 0.0
  %3933 = vmatpush.msra.mxu0 0.0
  %3934 = vmatpush.msra.mxu0 0.0
  %3935 = vmatpush.msra.mxu0 0.0
  %3936 = vmatpush.msra.mxu0 0.0
  %3937 = vmatpush.msra.mxu0 %v3907
  %3938 = vmatpush.msra.mxu0 %v3906
  %3939 = vmatpush.msra.mxu0 %v3905
  %3940 = vmatpush.msra.mxu0 %v3904
  %3941 = vmatmul.f32.gmra.mxu0 %v3914
  %v3942 = vpop.f32.mrf.mxu0
  %v3943 = vadd.f32 %v3911, %v3942
  %3944 = vmatmul.f32.gmra.mxu0 %v3917
  %v3945 = vpop.f32.mrf.mxu0
  %v3946 = vadd.f32 %v3911, %v3945
  %3947 = vmatmul.f32.gmra.mxu0 %v3920
  %v3948 = vpop.f32.mrf.mxu0
  %v3949 = vadd.f32 %v3911, %v3948
  %3950 = vmatmul.f32.gmra.mxu0 %v3923
  %v3951 = vpop.f32.mrf.mxu0
  %v3952 = vadd.f32 %v3911, %v3951
  %3953 = vdwg.mxu0
  %v3954 = vmax.f32 %v3943, 0.0
  %v3955 = vmax.f32 %v3946, 0.0
  %v3956 = vmax.f32 %v3949, 0.0
  %v3957 = vmax.f32 %v3952, 0.0
  %s3958 = scalar_lea.vmem %s9, 64
  %v3959 = vld [vmem:[%s3958] sm:$0xff]
  %v3960 = vld [vmem:[%s3958 + $0x8] sm:$0xff]
  %v3961 = vld [vmem:[%s3958 + $0x10] sm:$0xff]
  %v3962 = vld [vmem:[%s3958 + $0x18] sm:$0xff]
  %v3963 = vld [vmem:[%s3958 + $0x20] sm:$0xff]
  %v3964 = vld [vmem:[%s3958 + $0x28] sm:$0xff]
  %v3965 = vld [vmem:[%s3958 + $0x30] sm:$0xff]
  %v3966 = vld [vmem:[%s3958 + $0x38] sm:$0xff]
  %s3967 = scalar_lea.vmem %s10, 1
  %v3968 = vld [vmem:[%s3967] sm:$0x1]
  %v3970 = vperm.slane %v3968, 0
  %v3973 = vsel %vm1953, %v3954, 0
  %v3976 = vsel %vm1953, %v3955, 0
  %v3979 = vsel %vm1953, %v3956, 0
  %v3982 = vsel %vm1953, %v3957, 0
  %3984 = vmatpush.msra.mxu0 0.0
  %3985 = vmatpush.msra.mxu0 0.0
  %3986 = vmatpush.msra.mxu0 0.0
  %3987 = vmatpush.msra.mxu0 0.0
  %3988 = vmatpush.msra.mxu0 0.0
  %3989 = vmatpush.msra.mxu0 0.0
  %3990 = vmatpush.msra.mxu0 0.0
  %3991 = vmatpush.msra.mxu0 0.0
  %3992 = vmatpush.msra.mxu0 %v3966
  %3993 = vmatpush.msra.mxu0 %v3965
  %3994 = vmatpush.msra.mxu0 %v3964
  %3995 = vmatpush.msra.mxu0 %v3963
  %3996 = vmatpush.msra.mxu0 %v3962
  %3997 = vmatpush.msra.mxu0 %v3961
  %3998 = vmatpush.msra.mxu0 %v3960
  %3999 = vmatpush.msra.mxu0 %v3959
  %4000 = vmatmul.f32.gmra.mxu0 %v3973
  %v4001 = vpop.f32.mrf.mxu0
  %v4002 = vadd.f32 %v3970, %v4001
  %4003 = vmatmul.f32.gmra.mxu0 %v3976
  %v4004 = vpop.f32.mrf.mxu0
  %v4005 = vadd.f32 %v3970, %v4004
  %4006 = vmatmul.f32.gmra.mxu0 %v3979
  %v4007 = vpop.f32.mrf.mxu0
  %v4008 = vadd.f32 %v3970, %v4007
  %4009 = vmatmul.f32.gmra.mxu0 %v3982
  %v4010 = vpop.f32.mrf.mxu0
  %v4011 = vadd.f32 %v3970, %v4010
  %4012 = vdwg.mxu0
  %s4013 = scalar_lea.vmem %s11, 2
  %v4014 = vld [vmem:[%s4013] sm:$0x3]
  %v4015 = vadd.f32 %v3899, %v4002
  %v4016 = vadd.f32 %v3900, %v4005
  %v4017 = vadd.f32 %v3901, %v4008
  %v4018 = vadd.f32 %v3902, %v4011
  %v4019 = vsel %vm87, %v4015, 0.0
  %4020 = vadd.xlane.f32.xlu0 %v4019
  %v4021 = vpop.xlane.xlu0 %4020
  %v4022 = vsel %vm87, %v4016, 0.0
  %4023 = vadd.xlane.f32.xlu0 %v4022
  %v4024 = vpop.xlane.xlu0 %4023
  %v4025 = vsel %vm87, %v4017, 0.0
  %4026 = vadd.xlane.f32.xlu0 %v4025
  %v4027 = vpop.xlane.xlu0 %4026
  %v4028 = vsel %vm87, %v4018, 0.0
  %4029 = vadd.xlane.f32.xlu0 %v4028
  %v4030 = vpop.xlane.xlu0 %4029
  %v4031 = vmul.f32 %v4021, %v1801
  %v4032 = vmul.f32 %v4024, %v1801
  %v4033 = vmul.f32 %v4027, %v1801
  %v4034 = vmul.f32 %v4030, %v1801
  %v4035 = vsub.f32 %v4015, %v4031
  %v4036 = vsub.f32 %v4016, %v4032
  %v4037 = vsub.f32 %v4017, %v4033
  %v4038 = vsub.f32 %v4018, %v4034
  %v4039 = vmul.f32 %v4035, %v4035
  %v4040 = vmul.f32 %v4036, %v4036
  %v4041 = vmul.f32 %v4037, %v4037
  %v4042 = vmul.f32 %v4038, %v4038
  %v4043 = vsel %vm87, %v4039, 0.0
  %4044 = vadd.xlane.f32.xlu0 %v4043
  %v4045 = vpop.xlane.xlu0 %4044
  %v4046 = vsel %vm87, %v4040, 0.0
  %4047 = vadd.xlane.f32.xlu0 %v4046
  %v4048 = vpop.xlane.xlu0 %4047
  %v4049 = vsel %vm87, %v4041, 0.0
  %4050 = vadd.xlane.f32.xlu0 %v4049
  %v4051 = vpop.xlane.xlu0 %4050
  %v4052 = vsel %vm87, %v4042, 0.0
  %4053 = vadd.xlane.f32.xlu0 %v4052
  %v4054 = vpop.xlane.xlu0 %4053
  %v4055 = vmul.f32 %v4045, %v1801
  %v4056 = vmul.f32 %v4048, %v1801
  %v4057 = vmul.f32 %v4051, %v1801
  %v4058 = vmul.f32 %v4054, %v1801
  %v4059 = vadd.f32 %v4055, 1e-05
  %v4060 = vadd.f32 %v4056, 1e-05
  %v4061 = vadd.f32 %v4057, 1e-05
  %v4062 = vadd.f32 %v4058, 1e-05
  %v4063 = vrsqrt.pop %v4059
  %v4064 = vmul.f32 %v4063, %v4059
  %v4065 = vmul.f32 %v4064, %v4063
  %v4066 = vmul.f32 0.5, %v4065
  %v4067 = vsub.f32 1.5, %v4066
  %v4068 = vmul.f32 %v4063, %v4067
  %vm4069 = vweird.f32 %v4059
  %vm4070 = vweird.f32 %v4063
  %vm4071 = vmor %vm4069, %vm4070
  %v4072 = vsel %vm4071, %v4063, %v4068
  %v4073 = vrsqrt.pop %v4060
  %v4074 = vmul.f32 %v4073, %v4060
  %v4075 = vmul.f32 %v4074, %v4073
  %v4076 = vmul.f32 0.5, %v4075
  %v4077 = vsub.f32 1.5, %v4076
  %v4078 = vmul.f32 %v4073, %v4077
  %vm4079 = vweird.f32 %v4060
  %vm4080 = vweird.f32 %v4073
  %vm4081 = vmor %vm4079, %vm4080
  %v4082 = vsel %vm4081, %v4073, %v4078
  %v4083 = vrsqrt.pop %v4061
  %v4084 = vmul.f32 %v4083, %v4061
  %v4085 = vmul.f32 %v4084, %v4083
  %v4086 = vmul.f32 0.5, %v4085
  %v4087 = vsub.f32 1.5, %v4086
  %v4088 = vmul.f32 %v4083, %v4087
  %vm4089 = vweird.f32 %v4061
  %vm4090 = vweird.f32 %v4083
  %vm4091 = vmor %vm4089, %vm4090
  %v4092 = vsel %vm4091, %v4083, %v4088
  %v4093 = vrsqrt.pop %v4062
  %v4094 = vmul.f32 %v4093, %v4062
  %v4095 = vmul.f32 %v4094, %v4093
  %v4096 = vmul.f32 0.5, %v4095
  %v4097 = vsub.f32 1.5, %v4096
  %v4098 = vmul.f32 %v4093, %v4097
  %vm4099 = vweird.f32 %v4062
  %vm4100 = vweird.f32 %v4093
  %vm4101 = vmor %vm4099, %vm4100
  %v4102 = vsel %vm4101, %v4093, %v4098
  %v4103 = vmul.f32 %v4035, %v4072
  %v4104 = vmul.f32 %v4036, %v4082
  %v4105 = vmul.f32 %v4037, %v4092
  %v4106 = vmul.f32 %v4038, %v4102
  %v4107 = vperm.slane %v4014, 0
  %v4108 = vmul.f32 %v4103, %v4107
  %v4109 = vmul.f32 %v4104, %v4107
  %v4110 = vmul.f32 %v4105, %v4107
  %v4111 = vmul.f32 %v4106, %v4107
  %v4112 = vperm.slane %v4014, 1
  %v4113 = vadd.f32 %v4108, %v4112
  %v4114 = vadd.f32 %v4109, %v4112
  %v4115 = vadd.f32 %v4110, %v4112
  %v4116 = vadd.f32 %v4111, %v4112
  %v4117 = vsel %vm87, %v4113, -inf
  %v4118 = vrot.slane %v4117, 4
  %v4119 = vmax.f32 %v4117, %v4118
  %v4120 = vrot.slane %v4119, 2
  %v4121 = vmax.f32 %v4119, %v4120
  %v4122 = vrot.slane %v4121, 1
  %v4123 = vmax.f32 %v4121, %v4122
  %v4124 = vsel %vm87, %v4114, -inf
  %v4125 = vrot.slane %v4124, 4
  %v4126 = vmax.f32 %v4124, %v4125
  %v4127 = vrot.slane %v4126, 2
  %v4128 = vmax.f32 %v4126, %v4127
  %v4129 = vrot.slane %v4128, 1
  %v4130 = vmax.f32 %v4128, %v4129
  %v4131 = vsel %vm87, %v4115, -inf
  %v4132 = vrot.slane %v4131, 4
  %v4133 = vmax.f32 %v4131, %v4132
  %v4134 = vrot.slane %v4133, 2
  %v4135 = vmax.f32 %v4133, %v4134
  %v4136 = vrot.slane %v4135, 1
  %v4137 = vmax.f32 %v4135, %v4136
  %v4138 = vsel %vm87, %v4116, -inf
  %v4139 = vrot.slane %v4138, 4
  %v4140 = vmax.f32 %v4138, %v4139
  %v4141 = vrot.slane %v4140, 2
  %v4142 = vmax.f32 %v4140, %v4141
  %v4143 = vrot.slane %v4142, 1
  %v4144 = vmax.f32 %v4142, %v4143
  %vm4145 = vcmask 1040384
  %v4146 = vsel %vm4145, %v4123, %v4130
  %vm4147 = vcmask 1041408
  %v4148 = vsel %vm4147, %v4146, %v4137
  %vm4149 = vcmask 1042432
  %v4150 = vsel %vm4149, %v4148, %v4144
  %v4151 = vld [vmem:[%s12] sm:$0xff]
  %v4152 = vld [vmem:[%s12 + $0x8] sm:$0xff]
  %v4153 = vld [vmem:[%s12 + $0x10] sm:$0xff]
  %v4154 = vld [vmem:[%s12 + $0x18] sm:$0xff]
  %v4155 = vld [vmem:[%s13] sm:$0x1]
  %v4157 = vperm.slane %v4155, 0
  %v4160 = vsel %vm87, %v4150, 0
  %4162 = vmatpush.msra.mxu0 0.0
  %4163 = vmatpush.msra.mxu0 0.0
  %4164 = vmatpush.msra.mxu0 0.0
  %4165 = vmatpush.msra.mxu0 0.0
  %4166 = vmatpush.msra.mxu0 0.0
  %4167 = vmatpush.msra.mxu0 0.0
  %4168 = vmatpush.msra.mxu0 0.0
  %4169 = vmatpush.msra.mxu0 0.0
  %4170 = vmatpush.msra.mxu0 0.0
  %4171 = vmatpush.msra.mxu0 0.0
  %4172 = vmatpush.msra.mxu0 0.0
  %4173 = vmatpush.msra.mxu0 0.0
  %4174 = vmatpush.msra.mxu0 %v4154
  %4175 = vmatpush.msra.mxu0 %v4153
  %4176 = vmatpush.msra.mxu0 %v4152
  %4177 = vmatpush.msra.mxu0 %v4151
  %4178 = vmatmul.f32.gmra.mxu0 %v4160
  %v4179 = vpop.f32.mrf.mxu0
  %v4180 = vadd.f32 %v4157, %v4179
  %4181 = vdwg.mxu0
  %v4182 = vld [vmem:[%s14] sm:$0xff]
  %v4183 = vld [vmem:[%s14 + $0x8] sm:$0xff]
  %v4184 = vld [vmem:[%s14 + $0x10] sm:$0xff]
  %v4185 = vld [vmem:[%s14 + $0x18] sm:$0xff]
  %v4186 = vld [vmem:[%s14 + $0x20] sm:$0xff]
  %v4187 = vld [vmem:[%s14 + $0x28] sm:$0xff]
  %v4188 = vld [vmem:[%s14 + $0x30] sm:$0xff]
  %v4189 = vld [vmem:[%s14 + $0x38] sm:$0xff]
  %v4191 = vrot.slane %v4180, 2
  %v4192 = vsel %vm87, %v4191, 0
  %4194 = vmatpush.msra.mxu0 0.0
  %4195 = vmatpush.msra.mxu0 0.0
  %4196 = vmatpush.msra.mxu0 0.0
  %4197 = vmatpush.msra.mxu0 0.0
  %4198 = vmatpush.msra.mxu0 0.0
  %4199 = vmatpush.msra.mxu0 0.0
  %4200 = vmatpush.msra.mxu0 0.0
  %4201 = vmatpush.msra.mxu0 0.0
  %4202 = vmatpush.msra.mxu0 0.0
  %4203 = vmatpush.msra.mxu0 0.0
  %4204 = vmatpush.msra.mxu0 0.0
  %4205 = vmatpush.msra.mxu0 0.0
  %4206 = vmatpush.msra.mxu0 %v4189
  %4207 = vmatpush.msra.mxu0 %v4188
  %4208 = vmatpush.msra.mxu0 %v4187
  %4209 = vmatpush.msra.mxu0 %v4186
  %4210 = vmatmul.f32.gmra.mxu0 %v4192
  %v4211 = vpop.f32.mrf.mxu0
  %v4212 = vadd.f32 0.0, %v4211
  %4213 = vdwg.mxu0
  %v4214 = vsel %vm87, %v4180, 0
  %4216 = vmatpush.msra.mxu0 0.0
  %4217 = vmatpush.msra.mxu0 0.0
  %4218 = vmatpush.msra.mxu0 0.0
  %4219 = vmatpush.msra.mxu0 0.0
  %4220 = vmatpush.msra.mxu0 0.0
  %4221 = vmatpush.msra.mxu0 0.0
  %4222 = vmatpush.msra.mxu0 0.0
  %4223 = vmatpush.msra.mxu0 0.0
  %4224 = vmatpush.msra.mxu0 0.0
  %4225 = vmatpush.msra.mxu0 0.0
  %4226 = vmatpush.msra.mxu0 0.0
  %4227 = vmatpush.msra.mxu0 0.0
  %4228 = vmatpush.msra.mxu0 %v4185
  %4229 = vmatpush.msra.mxu0 %v4184
  %4230 = vmatpush.msra.mxu0 %v4183
  %4231 = vmatpush.msra.mxu0 %v4182
  %4232 = vmatmul.f32.gmra.mxu0 %v4214
  %v4233 = vpop.f32.mrf.mxu0
  %v4234 = vadd.f32 %v4212, %v4233
  %4235 = vdwg.mxu0
  %v4236 = vld [vmem:[%s15] sm:$0x1]
  %v4238 = vperm.slane %v4236, 0
  %v4240 = vadd.f32 %v4234, %v4238
  %v4241 = vmax.f32 %v4240, 0.0
  %v4242 = vld [vmem:[%s16] sm:$0xff]
  %v4243 = vld [vmem:[%s16 + $0x8] sm:$0xff]
  %v4244 = vld [vmem:[%s16 + $0x10] sm:$0xff]
  %v4245 = vld [vmem:[%s16 + $0x18] sm:$0xff]
  %v4246 = vld [vmem:[%s17] sm:$0x1]
  %v4248 = vperm.slane %v4246, 0
  %v4251 = vsel %vm87, %v4241, 0
  %4253 = vmatpush.msra.mxu0 0.0
  %4254 = vmatpush.msra.mxu0 0.0
  %4255 = vmatpush.msra.mxu0 0.0
  %4256 = vmatpush.msra.mxu0 0.0
  %4257 = vmatpush.msra.mxu0 0.0
  %4258 = vmatpush.msra.mxu0 0.0
  %4259 = vmatpush.msra.mxu0 0.0
  %4260 = vmatpush.msra.mxu0 0.0
  %4261 = vmatpush.msra.mxu0 0.0
  %4262 = vmatpush.msra.mxu0 0.0
  %4263 = vmatpush.msra.mxu0 0.0
  %4264 = vmatpush.msra.mxu0 0.0
  %4265 = vmatpush.msra.mxu0 %v4245
  %4266 = vmatpush.msra.mxu0 %v4244
  %4267 = vmatpush.msra.mxu0 %v4243
  %4268 = vmatpush.msra.mxu0 %v4242
  %4269 = vmatmul.f32.gmra.mxu0 %v4251
  %v4270 = vpop.f32.mrf.mxu0
  %v4271 = vadd.f32 %v4248, %v4270
  %4272 = vdwg.mxu0
  %v4273 = vmax.f32 %v4271, 0.0
  %v4274 = vld [vmem:[%s18] sm:$0xff]
  %v4275 = vld [vmem:[%s18 + $0x8] sm:$0xff]
  %v4276 = vld [vmem:[%s18 + $0x10] sm:$0xff]
  %v4277 = vld [vmem:[%s18 + $0x18] sm:$0xff]
  %v4278 = vld [vmem:[#allocation2] sm:$0x1]
  %v4280 = vperm.slane %v4278, 0
  %v4283 = vsel %vm87, %v4273, 0
  %4285 = vmatpush.msra.mxu0 0.0
  %4286 = vmatpush.msra.mxu0 0.0
  %4287 = vmatpush.msra.mxu0 0.0
  %4288 = vmatpush.msra.mxu0 0.0
  %4289 = vmatpush.msra.mxu0 0.0
  %4290 = vmatpush.msra.mxu0 0.0
  %4291 = vmatpush.msra.mxu0 0.0
  %4292 = vmatpush.msra.mxu0 0.0
  %4293 = vmatpush.msra.mxu0 0.0
  %4294 = vmatpush.msra.mxu0 0.0
  %4295 = vmatpush.msra.mxu0 0.0
  %4296 = vmatpush.msra.mxu0 0.0
  %4297 = vmatpush.msra.mxu0 %v4277
  %4298 = vmatpush.msra.mxu0 %v4276
  %4299 = vmatpush.msra.mxu0 %v4275
  %4300 = vmatpush.msra.mxu0 %v4274
  %4301 = vmatmul.f32.gmra.mxu0 %v4283
  %v4302 = vpop.f32.mrf.mxu0
  %v4303 = vadd.f32 %v4280, %v4302
  %4304 = vdwg.mxu0
  %v4305 = vxor.u32 %v4303, 2147483648
  %v4306 = vmul.f32 %v4305, 1.442695
  %v4307 = vpow.pop %v4306
  %v4308 = vadd.f32 %v4307, 1.0
  %v4309 = vrcp.pop %v4308
  %v4310 = vmul.f32 %v4308, %v4309
  %v4311 = vsub.f32 1.0, %v4310
  %v4312 = vmul.f32 %v4309, %v4311
  %v4313 = vadd.f32 %v4309, %v4312
  %vm4314 = vweird.f32 %v4308
  %vm4315 = vweird.f32 %v4309
  %vm4316 = vmor %vm4314, %vm4315
  %v4317 = vsel %vm4316, %v4309, %v4313
  %v4318 = vand.u32 2147483647, %v4308
  %vm4319 = vcmp.eq.f32.partialorder %v4318, 8.507059e+37
  %v4320 = vand.u32 %v4308, 2147483648
  %v4321 = vor.u32 1.1754944e-38, %v4320
  %v4322 = vsel %vm4319, %v4321, %v4317
  %v4323 = vmul.f32 1.0, %v4322
  %vm4324 = vcmask 1024
  %4325 = vst.msk [vmem:[%s20] sm:$0x3] %vm4324, %v4323
  // Predicated region
  $region82: #{siamese_forward.1} parent=0 // pred_check
    _
  $region83: #{siamese_forward.1} parent=0 // pred_check_branch
    %4327 = sbr.rel (0) target = $region85
  $region84: #{siamese_forward.1} parent=0 // pred_region
    _
  $region85: #{siamese_forward.1} parent=0 // pred_fallthru
    _
  // Predicated region
  $region86: #{siamese_forward.1} parent=0 // pred_check
    _
  $region87: #{siamese_forward.1} parent=0 // pred_check_branch
    %4329 = sbr.rel (0) target = $region89
  $region88: #{siamese_forward.1} parent=0 // pred_region
    _
  $region89: #{siamese_forward.1} parent=0 // pred_fallthru
    _

</llo_original>
